<compile_context>
chip_gen: v7x
topology: tpu7x:2x2x1
jax: 0.10.0
libtpu: 0.0.40
codegen_flags: <defaults>
</compile_context>

<pallas_src>
import functools

import jax
import jax.numpy as jnp
from jax.experimental import pallas as pl
from jax.experimental.pallas import tpu as pltpu


def _round_up(x, m):
    return ((x + m - 1) // m) * m


def _pad_to(x, shape):
    pads = [(0, t - s) for s, t in zip(x.shape, shape)]
    return jnp.pad(x, pads)


def _epilogue_dtype():
    """bf16 epilogue on chips with a bf16 VPU (v6e/v7x+), f32 otherwise."""
    try:
        kind = jax.devices()[0].device_kind.lower()
    except Exception:
        return jnp.float32
    if any(t in kind for t in ("v2", "v3", "v4", "v5")):
        return jnp.float32
    return jnp.bfloat16


# ----------------------------------------------------------------------------
# Fused kernel: one grid step == one ensemble member's full forward pass.
# ----------------------------------------------------------------------------
def mimo_gin_kernel(num_shared, ep,
                    a_ref, x_ref, p_ref,
                    c1w1_ref, c1b1_ref, c1w2_ref, c1b2_ref, c1sc_ref, c1sh_ref,
                    cvw1_ref, cvb1_ref, cvw2_ref, cvb2_ref, cvsc_ref, cvsh_ref,
                    l1w_ref, l1b_ref, l2w_ref, l2b_ref,
                    xs_ref, h_ref, y_ref):
    f32 = jnp.float32
    bf16 = jnp.bfloat16
    a = a_ref[0]                      # (N, N) bf16, loaded once, reused per layer

    def gin(x_in, w1, b1, w2, b2, sc, sh):
        # message passing: (A + (1 + eps) I) @ X   (eps folded into A)
        agg = jnp.dot(a, x_in, preferred_element_type=f32)
        # MLP: Linear -> ReLU -> Linear -> ReLU -> BN(affine) ; epilogue in `ep`
        h1 = jnp.dot(agg.astype(bf16), w1, preferred_element_type=f32)
        h1 = jnp.maximum(h1.astype(ep) + b1, 0.0)
        h2 = jnp.dot(h1.astype(bf16), w2, preferred_element_type=f32)
        h2 = jnp.maximum(h2.astype(ep) + b2, 0.0)
        # BN as post-ReLU affine (valid for any gamma sign) + outer F.relu
        return jnp.maximum(h2 * sc + sh, 0.0)

    x = gin(x_ref[0], c1w1_ref[0], c1b1_ref[0], c1w2_ref[0], c1b2_ref[0],
            c1sc_ref[0], c1sh_ref[0])
    xs_ref[0, 0] = x.astype(xs_ref.dtype)
    # TODO(synk): for deep models switch to lax.fori_loop to bound live ranges.
    for l in range(num_shared):       # static unroll; shared convs stay in VMEM
        x = gin(x.astype(bf16), cvw1_ref[l], cvb1_ref[l], cvw2_ref[l],
                cvb2_ref[l], cvsc_ref[l], cvsh_ref[l])
        xs_ref[0, l + 1] = x.astype(xs_ref.dtype)

    # global mean pool (P @ X) in f32 for numerics, then the classifier head
    h = jnp.dot(p_ref[0], x.astype(f32), preferred_element_type=f32)
    h_ref[0] = h
    z = jnp.maximum(
        jnp.dot(h.astype(bf16), l1w_ref[0], preferred_element_type=f32) + l1b_ref[0],
        0.0)
    # TODO(synk): training-mode dropout not implemented (eval-mode identity).
    y_ref[0] = jnp.dot(z.astype(bf16), l2w_ref[0],
                       preferred_element_type=f32) + l2b_ref[0]


# ----------------------------------------------------------------------------
# BlockSpec helpers: per-member blocks indexed by the grid, shared blocks with
# a constant index_map (fetched once, single-buffered, VMEM-resident).
# ----------------------------------------------------------------------------
def _member_spec(tail_shape):
    n = len(tail_shape)

    def idx(e):
        return (e,) + (0,) * n

    return pl.BlockSpec((1,) + tuple(tail_shape), idx)


def _shared_spec(shape):
    n = len(shape)

    def idx(e):
        return (0,) * n

    # Constant block index across the grid: fetched once; single buffer halves
    # its VMEM footprint. Fall back to default buffering on older signatures.
    try:
        return pl.BlockSpec(tuple(shape), idx, pipeline_mode=pl.Buffered(1))
    except TypeError:
        return pl.BlockSpec(tuple(shape), idx)


def _block_bytes(shape, dtype, nbuf):
    s = list(shape)
    if len(s) >= 2:
        s[-2] = _round_up(s[-2], 8)
    s[-1] = _round_up(s[-1], 128)
    n = 1
    for d in s:
        n *= d
    return nbuf * n * jnp.dtype(dtype).itemsize


_PACK_KEYS = ("c1w1", "c1b1", "c1w2", "c1b2", "c1sc", "c1sh",
              "cvw1", "cvb1", "cvw2", "cvb2", "cvsc", "cvsh",
              "l1w", "l1b", "l2w", "l2b")


def _mimo_gin_pallas(packed, a_p, x_p, p_p, *, ep_dtype):
    E, N, _ = a_p.shape
    G = p_p.shape[1]
    Fp = x_p.shape[-1]
    Hp = packed["c1w1"].shape[-1]
    Cp = packed["l2w"].shape[-1]
    Lm1 = packed["cvw1"].shape[0]
    L = Lm1 + 1

    kernel = functools.partial(mimo_gin_kernel, Lm1, ep_dtype)

    in_specs = [
        _member_spec((N, N)),          # A_hat
        _member_spec((N, Fp)),         # X
        _member_spec((G, N)),          # pooling matrix (f32)
        _member_spec((Fp, Hp)),        # conv1 w1
        _member_spec((1, Hp)),         # conv1 b1
        _member_spec((Hp, Hp)),        # conv1 w2
        _member_spec((1, Hp)),         # conv1 b2
        _member_spec((1, Hp)),         # conv1 BN scale
        _member_spec((1, Hp)),         # conv1 BN shift
        _shared_spec((Lm1, Hp, Hp)),   # shared convs w1
        _shared_spec((Lm1, 1, Hp)),    # shared convs b1
        _shared_spec((Lm1, Hp, Hp)),   # shared convs w2
        _shared_spec((Lm1, 1, Hp)),    # shared convs b2
        _shared_spec((Lm1, 1, Hp)),    # shared convs BN scale
        _shared_spec((Lm1, 1, Hp)),    # shared convs BN shift
        _member_spec((Hp, Hp)),        # lin1 w
        _member_spec((1, Hp)),         # lin1 b
        _member_spec((Hp, Cp)),        # lin2 w
        _member_spec((1, Cp)),         # lin2 b
    ]
    out_specs = (
        _member_spec((L, N, Hp)),      # per-layer node embeddings (xss), bf16
        _member_spec((G, Hp)),         # pooled graph embeddings (hs)
        _member_spec((G, Cp)),         # logits (ys)
    )
    out_shape = (
        jax.ShapeDtypeStruct((E, L, N, Hp), jnp.bfloat16),
        jax.ShapeDtypeStruct((E, G, Hp), jnp.float32),
        jax.ShapeDtypeStruct((E, G, Cp), jnp.float32),
    )

    # --- VMEM budget (block bytes x buffering, with headroom) ----------------
    est = 0
    est += _block_bytes((N, N), jnp.bfloat16, 2)          # A
    est += _block_bytes((N, Fp), jnp.bfloat16, 2)         # X
    est += _block_bytes((G, N), jnp.float32, 2)           # pool
    est += _block_bytes((Fp, Hp), jnp.bfloat16, 2)        # c1 w1
    est += _block_bytes((Hp, Hp), jnp.bfloat16, 2)        # c1 w2
    est += 4 * _block_bytes((1, Hp), ep_dtype, 2)         # c1 b1,b2,sc,sh
    est += 2 * _block_bytes((Lm1, Hp, Hp), jnp.bfloat16, 1)   # shared w1,w2
    est += 4 * _block_bytes((Lm1, 1, Hp), ep_dtype, 1)        # shared vectors
    est += _block_bytes((Hp, Hp), jnp.bfloat16, 2)        # lin1 w
    est += _block_bytes((Hp, Cp), jnp.bfloat16, 2)        # lin2 w
    est += _block_bytes((1, Hp), jnp.float32, 2)          # lin1 b
    est += _block_bytes((1, Cp), jnp.float32, 2)          # lin2 b
    est += _block_bytes((L, N, Hp), jnp.bfloat16, 2)      # xs out
    est += _block_bytes((G, Hp), jnp.float32, 2)          # h out
    est += _block_bytes((G, Cp), jnp.float32, 2)          # y out
    vmem_limit = int(min(64 * 2**20, max(4 * est, 16 * 2**20)))

    # --- advisory cost estimate ----------------------------------------------
    flops_member = (
        2 * N * N * Fp + 2 * N * Fp * Hp + 2 * N * Hp * Hp          # conv1
        + Lm1 * (2 * N * N * Hp + 4 * N * Hp * Hp)                  # shared convs
        + 2 * G * N * Hp + 2 * G * Hp * Hp + 2 * G * Hp * Cp        # pool + head
    )
    operands = (a_p, x_p, p_p) + tuple(packed[k] for k in _PACK_KEYS)
    bytes_accessed = sum(int(v.size) * v.dtype.itemsize for v in operands)
    bytes_accessed += E * (L * N * Hp * 2 + G * Hp * 4 + G * Cp * 4)
    cost = pl.CostEstimate(flops=int(E * flops_member), transcendentals=0,
                           bytes_accessed=int(bytes_accessed))

    return pl.pallas_call(
        kernel,
        out_shape=out_shape,
        grid_spec=pltpu.PrefetchScalarGridSpec(
            num_scalar_prefetch=0,
            grid=(E,),
            in_specs=in_specs,
            out_specs=out_specs,
        ),
        compiler_params=pltpu.CompilerParams(
            dimension_semantics=("parallel",),
            vmem_limit_bytes=vmem_limit,
        ),
        cost_estimate=cost,
    )(*operands)


# ----------------------------------------------------------------------------
# Parameter init (deterministic, PyTorch-like uniform fan-in init) + packing
# ----------------------------------------------------------------------------
def _linear_init(key, fan_in, fan_out):
    kw, kb = jax.random.split(key)
    bound = 1.0 / jnp.sqrt(jnp.float32(fan_in))
    w = jax.random.uniform(kw, (fan_in, fan_out), jnp.float32, -bound, bound)
    b = jax.random.uniform(kb, (1, fan_out), jnp.float32, -bound, bound)
    return w, b


def _gin_mlp_init(key, in_dim, hidden):
    k1, k2 = jax.random.split(key)
    w1, b1 = _linear_init(k1, in_dim, hidden)
    w2, b2 = _linear_init(k2, hidden, hidden)
    # BatchNorm1d eval-mode affine: gamma=1, beta=0, running_mean=0, running_var=1
    bn_eps = 1e-5
    bn_scale = jnp.full((1, hidden), 1.0 / jnp.sqrt(1.0 + bn_eps), jnp.float32)
    bn_shift = jnp.zeros((1, hidden), jnp.float32)
    return (w1, b1, w2, b2, bn_scale, bn_shift)


def init_mimo_gin_params(key, in_dim, num_classes, num_layers, hidden,
                         num_ensemble):
    keys = jax.random.split(key, 4)
    conv1s = [_gin_mlp_init(k, in_dim, hidden)
              for k in jax.random.split(keys[0], num_ensemble)]
    convs = [_gin_mlp_init(k, hidden, hidden)
             for k in jax.random.split(keys[1], num_layers - 1)]
    lin1s = [_linear_init(k, hidden, hidden)
             for k in jax.random.split(keys[2], num_ensemble)]
    lin2s = [_linear_init(k, hidden, num_classes)
             for k in jax.random.split(keys[3], num_ensemble)]
    return dict(conv1s=conv1s, convs=convs, lin1s=lin1s, lin2s=lin2s)


def pack_params(params, in_dim, hidden, num_classes, *, ep_dtype=jnp.float32):
    """Pad feature dims to 128 lanes, cast matmul weights to bf16 and the
    elementwise-epilogue vectors (biases, BN scale/shift) to `ep_dtype`,
    and stack per-member / per-layer params."""
    Fp = _round_up(in_dim, 128)
    Hp = _round_up(hidden, 128)
    Cp = _round_up(num_classes, 128)
    bf16 = jnp.bfloat16

    def pack_gin(layers, din_p):
        w1s, b1s, w2s, b2s, scs, shs = [], [], [], [], [], []
        for (w1, b1, w2, b2, bn_scale, bn_shift) in layers:
            w1s.append(_pad_to(w1, (din_p, Hp)).astype(bf16))
            b1s.append(_pad_to(b1, (1, Hp)).astype(ep_dtype))
            w2s.append(_pad_to(w2, (Hp, Hp)).astype(bf16))
            b2s.append(_pad_to(b2, (1, Hp)).astype(ep_dtype))
            # BN applied post-ReLU as x*scale + shift (valid for any gamma sign)
            scs.append(_pad_to(bn_scale, (1, Hp)).astype(ep_dtype))
            shs.append(_pad_to(bn_shift, (1, Hp)).astype(ep_dtype))
        return tuple(jnp.stack(t) for t in (w1s, b1s, w2s, b2s, scs, shs))

    c1w1, c1b1, c1w2, c1b2, c1sc, c1sh = pack_gin(params["conv1s"], Fp)
    cvw1, cvb1, cvw2, cvb2, cvsc, cvsh = pack_gin(params["convs"], Hp)

    l1w = jnp.stack([_pad_to(w, (Hp, Hp)).astype(bf16) for w, _ in params["lin1s"]])
    l1b = jnp.stack([_pad_to(b, (1, Hp)) for _, b in params["lin1s"]])
    l2w = jnp.stack([_pad_to(w, (Hp, Cp)).astype(bf16) for w, _ in params["lin2s"]])
    l2b = jnp.stack([_pad_to(b, (1, Cp)) for _, b in params["lin2s"]])

    return dict(c1w1=c1w1, c1b1=c1b1, c1w2=c1w2, c1b2=c1b2, c1sc=c1sc, c1sh=c1sh,
                cvw1=cvw1, cvb1=cvb1, cvw2=cvw2, cvb2=cvb2, cvsc=cvsc, cvsh=cvsh,
                l1w=l1w, l1b=l1b, l2w=l2w, l2b=l2b)


# ----------------------------------------------------------------------------
# Graph -> dense operators (glue, plain JAX)
# ----------------------------------------------------------------------------
def build_a_hat(edge_index, num_nodes, edge_weight=None, eps=0.0):
    """A_hat[i, j] = w(j->i) for every edge (j -> i), plus (1+eps) on the diag."""
    src, dst = edge_index[0], edge_index[1]
    if edge_weight is None:
        edge_weight = jnp.ones((src.shape[0],), jnp.float32)
    a = jnp.zeros((num_nodes, num_nodes), jnp.float32)
    a = a.at[dst, src].add(edge_weight)
    a = a + (1.0 + eps) * jnp.eye(num_nodes, dtype=jnp.float32)
    return a


def build_mean_pool_matrix(batch, num_graphs, num_nodes):
    onehot = (batch[None, :] == jnp.arange(num_graphs)[:, None]).astype(jnp.float32)
    counts = jnp.maximum(onehot.sum(axis=1, keepdims=True), 1.0)
    return onehot / counts


# ----------------------------------------------------------------------------
# Full mimoGIN forward (jit this)
# ----------------------------------------------------------------------------
def mimo_gin_forward(packed, x, a_hat, pool, *, hidden, num_classes, ep_dtype):
    """x: (E, N, F), a_hat: (E, N, N), pool: (E, G, N) -- f32, unpadded."""
    E, N, F = x.shape
    G = pool.shape[1]
    Np = _round_up(N, 128)       # node dim padded to 128 lanes/sublanes
    Fp = _round_up(F, 128)

    x_p = _pad_to(x, (E, Np, Fp)).astype(jnp.bfloat16)
    a_p = _pad_to(a_hat, (E, Np, Np)).astype(jnp.bfloat16)
    p_p = _pad_to(pool, (E, G, Np))                     # stays f32 (mean numerics)

    xs_p, h_p, y_p = _mimo_gin_pallas(packed, a_p, x_p, p_p, ep_dtype=ep_dtype)

    xs = xs_p[:, :, :N, :hidden].astype(jnp.float32)    # (E, num_layers, N, hidden)
    hs = h_p[:, :, :hidden]                              # (E, G, hidden)
    ys = y_p[:, :, :num_classes]                         # (E, G, num_classes)
    return (xs, hs), ys


# ----------------------------------------------------------------------------
# Main
# ----------------------------------------------------------------------------
if __name__ == "__main__":
    IN_DIM = 8        # node feature dim
    HIDDEN = 32
    NUM_CLASSES = 3
    NUM_LAYERS = 3    # -> 1 conv1 + 2 shared convs
    NUM_ENSEMBLE = 2
    N_NODES = 16      # 2 graphs x 8 nodes each
    N_GRAPHS = 2

    key = jax.random.PRNGKey(0)
    k_params, k_x0, k_x1 = jax.random.split(key, 3)

    EP_DTYPE = _epilogue_dtype()   # bf16 on v6e/v7x (bf16 VPU), f32 on v5e/older

    params = init_mimo_gin_params(k_params, IN_DIM, NUM_CLASSES, NUM_LAYERS,
                                  HIDDEN, NUM_ENSEMBLE)
    packed = pack_params(params, IN_DIM, HIDDEN, NUM_CLASSES, ep_dtype=EP_DTYPE)

    # Two synthetic graph batches (one per ensemble member): two 8-node rings.
    def ring_edges(offset, n):
        src = jnp.arange(n) + offset
        dst = (jnp.arange(n) + 1) % n + offset
        return jnp.stack([jnp.concatenate([src, dst]),
                          jnp.concatenate([dst, src])], axis=0)

    edge_index_a = jnp.concatenate([ring_edges(0, 8), ring_edges(8, 8)], axis=1)
    edge_index_b = edge_index_a[::-1]   # second member: reversed edge direction

    batch = jnp.concatenate([jnp.zeros(8, jnp.int32), jnp.ones(8, jnp.int32)])

    x = jnp.stack([
        jax.random.normal(k_x0, (N_NODES, IN_DIM), jnp.float32),
        jax.random.normal(k_x1, (N_NODES, IN_DIM), jnp.float32),
    ])
    a_hat = jnp.stack([
        build_a_hat(edge_index_a, N_NODES, eps=0.0),
        build_a_hat(edge_index_b, N_NODES, eps=0.0),
    ])
    pool = jnp.stack([
        build_mean_pool_matrix(batch, N_GRAPHS, N_NODES),
        build_mean_pool_matrix(batch, N_GRAPHS, N_NODES),
    ])

    fwd = jax.jit(functools.partial(mimo_gin_forward, hidden=HIDDEN,
                                    num_classes=NUM_CLASSES, ep_dtype=EP_DTYPE))
    (xs, hs), ys = fwd(packed, x, a_hat, pool)
    jax.block_until_ready((xs, hs, ys))

    assert ys.shape == (NUM_ENSEMBLE, N_GRAPHS, NUM_CLASSES)
    assert hs.shape == (NUM_ENSEMBLE, N_GRAPHS, HIDDEN)
    assert xs.shape == (NUM_ENSEMBLE, NUM_LAYERS, N_NODES, HIDDEN)

    print("KERNEL_OK")
</pallas_src>

<mosaic_0001>
module attributes {stable_mosaic.version = 11 : i64} {
  func.func @mimo_gin_kernel(%arg0: i32, %arg1: memref<1x128x128xbf16, #tpu.memory_space<vmem>>, %arg2: memref<1x128x128xbf16, #tpu.memory_space<vmem>>, %arg3: memref<1x2x128xf32, #tpu.memory_space<vmem>>, %arg4: memref<1x128x128xbf16, #tpu.memory_space<vmem>>, %arg5: memref<1x1x128xbf16, #tpu.memory_space<vmem>>, %arg6: memref<1x128x128xbf16, #tpu.memory_space<vmem>>, %arg7: memref<1x1x128xbf16, #tpu.memory_space<vmem>>, %arg8: memref<1x1x128xbf16, #tpu.memory_space<vmem>>, %arg9: memref<1x1x128xbf16, #tpu.memory_space<vmem>>, %arg10: memref<2x128x128xbf16, #tpu.memory_space<vmem>>, %arg11: memref<2x1x128xbf16, #tpu.memory_space<vmem>>, %arg12: memref<2x128x128xbf16, #tpu.memory_space<vmem>>, %arg13: memref<2x1x128xbf16, #tpu.memory_space<vmem>>, %arg14: memref<2x1x128xbf16, #tpu.memory_space<vmem>>, %arg15: memref<2x1x128xbf16, #tpu.memory_space<vmem>>, %arg16: memref<1x128x128xbf16, #tpu.memory_space<vmem>>, %arg17: memref<1x1x128xf32, #tpu.memory_space<vmem>>, %arg18: memref<1x128x128xbf16, #tpu.memory_space<vmem>>, %arg19: memref<1x1x128xf32, #tpu.memory_space<vmem>>, %arg20: memref<1x3x128x128xbf16, #tpu.memory_space<vmem>>, %arg21: memref<1x2x128xf32, #tpu.memory_space<vmem>>, %arg22: memref<1x2x128xf32, #tpu.memory_space<vmem>>) attributes {dimension_semantics = [#tpu.dimension_semantics<parallel>], iteration_bounds = array<i64: 2>, scalar_prefetch = 0 : i64, scratch_operands = 0 : i64, tpu.core_type = #tpu.core_type<tc>, window_params = [{transform_indices = @transform_0, window_bounds = array<i64: 1, 128, 128>}, {transform_indices = @transform_1, window_bounds = array<i64: 1, 128, 128>}, {transform_indices = @transform_2, window_bounds = array<i64: 1, 2, 128>}, {transform_indices = @transform_3, window_bounds = array<i64: 1, 128, 128>}, {transform_indices = @transform_4, window_bounds = array<i64: 1, 1, 128>}, {transform_indices = @transform_5, window_bounds = array<i64: 1, 128, 128>}, {transform_indices = @transform_6, window_bounds = array<i64: 1, 1, 128>}, {transform_indices = @transform_7, window_bounds = array<i64: 1, 1, 128>}, {transform_indices = @transform_8, window_bounds = array<i64: 1, 1, 128>}, {pipeline_mode = #tpu.pipeline_mode<synchronous>, transform_indices = @transform_9, window_bounds = array<i64: 2, 128, 128>}, {pipeline_mode = #tpu.pipeline_mode<synchronous>, transform_indices = @transform_10, window_bounds = array<i64: 2, 1, 128>}, {pipeline_mode = #tpu.pipeline_mode<synchronous>, transform_indices = @transform_11, window_bounds = array<i64: 2, 128, 128>}, {pipeline_mode = #tpu.pipeline_mode<synchronous>, transform_indices = @transform_12, window_bounds = array<i64: 2, 1, 128>}, {pipeline_mode = #tpu.pipeline_mode<synchronous>, transform_indices = @transform_13, window_bounds = array<i64: 2, 1, 128>}, {pipeline_mode = #tpu.pipeline_mode<synchronous>, transform_indices = @transform_14, window_bounds = array<i64: 2, 1, 128>}, {transform_indices = @transform_15, window_bounds = array<i64: 1, 128, 128>}, {transform_indices = @transform_16, window_bounds = array<i64: 1, 1, 128>}, {transform_indices = @transform_17, window_bounds = array<i64: 1, 128, 128>}, {transform_indices = @transform_18, window_bounds = array<i64: 1, 1, 128>}, {transform_indices = @transform_19, window_bounds = array<i64: 1, 3, 128, 128>}, {transform_indices = @transform_20, window_bounds = array<i64: 1, 2, 128>}, {transform_indices = @transform_21, window_bounds = array<i64: 1, 2, 128>}]} {
    %c0 = arith.constant 0 : index
    %c0_0 = arith.constant 0 : index
    %c0_1 = arith.constant 0 : index
    %0 = vector.load %arg1[%c0, %c0_0, %c0_1] : memref<1x128x128xbf16, #tpu.memory_space<vmem>>, vector<1x128x128xbf16>
    %1 = vector.shape_cast %0 : vector<1x128x128xbf16> to vector<128x128xbf16>
    %c0_2 = arith.constant 0 : index
    %c0_3 = arith.constant 0 : index
    %c0_4 = arith.constant 0 : index
    %2 = vector.load %arg2[%c0_2, %c0_3, %c0_4] : memref<1x128x128xbf16, #tpu.memory_space<vmem>>, vector<1x128x128xbf16>
    %3 = vector.shape_cast %2 : vector<1x128x128xbf16> to vector<128x128xbf16>
    %c0_5 = arith.constant 0 : index
    %c0_6 = arith.constant 0 : index
    %c0_7 = arith.constant 0 : index
    %4 = vector.load %arg4[%c0_5, %c0_6, %c0_7] : memref<1x128x128xbf16, #tpu.memory_space<vmem>>, vector<1x128x128xbf16>
    %5 = vector.shape_cast %4 : vector<1x128x128xbf16> to vector<128x128xbf16>
    %c0_8 = arith.constant 0 : index
    %c0_9 = arith.constant 0 : index
    %c0_10 = arith.constant 0 : index
    %6 = vector.load %arg5[%c0_8, %c0_9, %c0_10] : memref<1x1x128xbf16, #tpu.memory_space<vmem>>, vector<1x1x128xbf16>
    %7 = vector.shape_cast %6 : vector<1x1x128xbf16> to vector<1x128xbf16>
    %c0_11 = arith.constant 0 : index
    %c0_12 = arith.constant 0 : index
    %c0_13 = arith.constant 0 : index
    %8 = vector.load %arg6[%c0_11, %c0_12, %c0_13] : memref<1x128x128xbf16, #tpu.memory_space<vmem>>, vector<1x128x128xbf16>
    %9 = vector.shape_cast %8 : vector<1x128x128xbf16> to vector<128x128xbf16>
    %c0_14 = arith.constant 0 : index
    %c0_15 = arith.constant 0 : index
    %c0_16 = arith.constant 0 : index
    %10 = vector.load %arg7[%c0_14, %c0_15, %c0_16] : memref<1x1x128xbf16, #tpu.memory_space<vmem>>, vector<1x1x128xbf16>
    %11 = vector.shape_cast %10 : vector<1x1x128xbf16> to vector<1x128xbf16>
    %c0_17 = arith.constant 0 : index
    %c0_18 = arith.constant 0 : index
    %c0_19 = arith.constant 0 : index
    %12 = vector.load %arg8[%c0_17, %c0_18, %c0_19] : memref<1x1x128xbf16, #tpu.memory_space<vmem>>, vector<1x1x128xbf16>
    %13 = vector.shape_cast %12 : vector<1x1x128xbf16> to vector<1x128xbf16>
    %c0_20 = arith.constant 0 : index
    %c0_21 = arith.constant 0 : index
    %c0_22 = arith.constant 0 : index
    %14 = vector.load %arg9[%c0_20, %c0_21, %c0_22] : memref<1x1x128xbf16, #tpu.memory_space<vmem>>, vector<1x1x128xbf16>
    %15 = vector.shape_cast %14 : vector<1x1x128xbf16> to vector<1x128xbf16>
    %cst = arith.constant dense<0.000000e+00> : vector<128x128xf32>
    %16 = tpu.matmul %1, %3, %cst {dimension_numbers = #tpu.dot_dimension_numbers<[1], [0], [0], [1], [0, 0, 1, 1], [], []>} : vector<128x128xbf16>, vector<128x128xbf16>, vector<128x128xf32> -> vector<128x128xf32>
    %17 = arith.truncf %16 : vector<128x128xf32> to vector<128x128xbf16>
    %cst_23 = arith.constant dense<0.000000e+00> : vector<128x128xf32>
    %18 = tpu.matmul %17, %5, %cst_23 {dimension_numbers = #tpu.dot_dimension_numbers<[1], [0], [0], [1], [0, 0, 1, 1], [], []>} : vector<128x128xbf16>, vector<128x128xbf16>, vector<128x128xf32> -> vector<128x128xf32>
    %19 = arith.truncf %18 : vector<128x128xf32> to vector<128x128xbf16>
    %20 = vector.broadcast %7 : vector<1x128xbf16> to vector<128x128xbf16>
    %21 = arith.addf %19, %20 : vector<128x128xbf16>
    %cst_24 = arith.constant 0.000000e+00 : bf16
    %22 = vector.broadcast %cst_24 : bf16 to vector<128x128xbf16>
    %23 = arith.maximumf %21, %22 : vector<128x128xbf16>
    %cst_25 = arith.constant dense<0.000000e+00> : vector<128x128xf32>
    %24 = tpu.matmul %23, %9, %cst_25 {dimension_numbers = #tpu.dot_dimension_numbers<[1], [0], [0], [1], [0, 0, 1, 1], [], []>} : vector<128x128xbf16>, vector<128x128xbf16>, vector<128x128xf32> -> vector<128x128xf32>
    %25 = arith.truncf %24 : vector<128x128xf32> to vector<128x128xbf16>
    %26 = vector.broadcast %11 : vector<1x128xbf16> to vector<128x128xbf16>
    %27 = arith.addf %25, %26 : vector<128x128xbf16>
    %cst_26 = arith.constant 0.000000e+00 : bf16
    %28 = vector.broadcast %cst_26 : bf16 to vector<128x128xbf16>
    %29 = arith.maximumf %27, %28 : vector<128x128xbf16>
    %30 = vector.broadcast %13 : vector<1x128xbf16> to vector<128x128xbf16>
    %31 = arith.mulf %29, %30 : vector<128x128xbf16>
    %32 = vector.broadcast %15 : vector<1x128xbf16> to vector<128x128xbf16>
    %33 = arith.addf %31, %32 : vector<128x128xbf16>
    %cst_27 = arith.constant 0.000000e+00 : bf16
    %34 = vector.broadcast %cst_27 : bf16 to vector<128x128xbf16>
    %35 = arith.maximumf %33, %34 : vector<128x128xbf16>
    %c0_28 = arith.constant 0 : index
    %c0_29 = arith.constant 0 : index
    %c0_30 = arith.constant 0 : index
    %c0_31 = arith.constant 0 : index
    %36 = vector.load %arg20[%c0_28, %c0_29, %c0_30, %c0_31] : memref<1x3x128x128xbf16, #tpu.memory_space<vmem>>, vector<1x1x128x128xbf16>
    %37 = vector.shape_cast %36 : vector<1x1x128x128xbf16> to vector<128x128xbf16>
    %38 = vector.shape_cast %35 : vector<128x128xbf16> to vector<1x1x128x128xbf16>
    tpu.vector_store %arg20[%c0_28, %c0_29, %c0_30, %c0_31], %38 {strides = array<i32>} : memref<1x3x128x128xbf16, #tpu.memory_space<vmem>>, vector<1x1x128x128xbf16>,
    %c0_32 = arith.constant 0 : index
    %c0_33 = arith.constant 0 : index
    %c0_34 = arith.constant 0 : index
    %39 = vector.load %arg10[%c0_32, %c0_33, %c0_34] : memref<2x128x128xbf16, #tpu.memory_space<vmem>>, vector<1x128x128xbf16>
    %40 = vector.shape_cast %39 : vector<1x128x128xbf16> to vector<128x128xbf16>
    %c0_35 = arith.constant 0 : index
    %c0_36 = arith.constant 0 : index
    %c0_37 = arith.constant 0 : index
    %41 = vector.load %arg11[%c0_35, %c0_36, %c0_37] : memref<2x1x128xbf16, #tpu.memory_space<vmem>>, vector<1x1x128xbf16>
    %42 = vector.shape_cast %41 : vector<1x1x128xbf16> to vector<1x128xbf16>
    %c0_38 = arith.constant 0 : index
    %c0_39 = arith.constant 0 : index
    %c0_40 = arith.constant 0 : index
    %43 = vector.load %arg12[%c0_38, %c0_39, %c0_40] : memref<2x128x128xbf16, #tpu.memory_space<vmem>>, vector<1x128x128xbf16>
    %44 = vector.shape_cast %43 : vector<1x128x128xbf16> to vector<128x128xbf16>
    %c0_41 = arith.constant 0 : index
    %c0_42 = arith.constant 0 : index
    %c0_43 = arith.constant 0 : index
    %45 = vector.load %arg13[%c0_41, %c0_42, %c0_43] : memref<2x1x128xbf16, #tpu.memory_space<vmem>>, vector<1x1x128xbf16>
    %46 = vector.shape_cast %45 : vector<1x1x128xbf16> to vector<1x128xbf16>
    %c0_44 = arith.constant 0 : index
    %c0_45 = arith.constant 0 : index
    %c0_46 = arith.constant 0 : index
    %47 = vector.load %arg14[%c0_44, %c0_45, %c0_46] : memref<2x1x128xbf16, #tpu.memory_space<vmem>>, vector<1x1x128xbf16>
    %48 = vector.shape_cast %47 : vector<1x1x128xbf16> to vector<1x128xbf16>
    %c0_47 = arith.constant 0 : index
    %c0_48 = arith.constant 0 : index
    %c0_49 = arith.constant 0 : index
    %49 = vector.load %arg15[%c0_47, %c0_48, %c0_49] : memref<2x1x128xbf16, #tpu.memory_space<vmem>>, vector<1x1x128xbf16>
    %50 = vector.shape_cast %49 : vector<1x1x128xbf16> to vector<1x128xbf16>
    %cst_50 = arith.constant dense<0.000000e+00> : vector<128x128xf32>
    %51 = tpu.matmul %1, %35, %cst_50 {dimension_numbers = #tpu.dot_dimension_numbers<[1], [0], [0], [1], [0, 0, 1, 1], [], []>} : vector<128x128xbf16>, vector<128x128xbf16>, vector<128x128xf32> -> vector<128x128xf32>
    %52 = arith.truncf %51 : vector<128x128xf32> to vector<128x128xbf16>
    %cst_51 = arith.constant dense<0.000000e+00> : vector<128x128xf32>
    %53 = tpu.matmul %52, %40, %cst_51 {dimension_numbers = #tpu.dot_dimension_numbers<[1], [0], [0], [1], [0, 0, 1, 1], [], []>} : vector<128x128xbf16>, vector<128x128xbf16>, vector<128x128xf32> -> vector<128x128xf32>
    %54 = arith.truncf %53 : vector<128x128xf32> to vector<128x128xbf16>
    %55 = vector.broadcast %42 : vector<1x128xbf16> to vector<128x128xbf16>
    %56 = arith.addf %54, %55 : vector<128x128xbf16>
    %cst_52 = arith.constant 0.000000e+00 : bf16
    %57 = vector.broadcast %cst_52 : bf16 to vector<128x128xbf16>
    %58 = arith.maximumf %56, %57 : vector<128x128xbf16>
    %cst_53 = arith.constant dense<0.000000e+00> : vector<128x128xf32>
    %59 = tpu.matmul %58, %44, %cst_53 {dimension_numbers = #tpu.dot_dimension_numbers<[1], [0], [0], [1], [0, 0, 1, 1], [], []>} : vector<128x128xbf16>, vector<128x128xbf16>, vector<128x128xf32> -> vector<128x128xf32>
    %60 = arith.truncf %59 : vector<128x128xf32> to vector<128x128xbf16>
    %61 = vector.broadcast %46 : vector<1x128xbf16> to vector<128x128xbf16>
    %62 = arith.addf %60, %61 : vector<128x128xbf16>
    %cst_54 = arith.constant 0.000000e+00 : bf16
    %63 = vector.broadcast %cst_54 : bf16 to vector<128x128xbf16>
    %64 = arith.maximumf %62, %63 : vector<128x128xbf16>
    %65 = vector.broadcast %48 : vector<1x128xbf16> to vector<128x128xbf16>
    %66 = arith.mulf %64, %65 : vector<128x128xbf16>
    %67 = vector.broadcast %50 : vector<1x128xbf16> to vector<128x128xbf16>
    %68 = arith.addf %66, %67 : vector<128x128xbf16>
    %cst_55 = arith.constant 0.000000e+00 : bf16
    %69 = vector.broadcast %cst_55 : bf16 to vector<128x128xbf16>
    %70 = arith.maximumf %68, %69 : vector<128x128xbf16>
    %c0_56 = arith.constant 0 : index
    %c1 = arith.constant 1 : index
    %c0_57 = arith.constant 0 : index
    %c0_58 = arith.constant 0 : index
    %71 = vector.load %arg20[%c0_56, %c1, %c0_57, %c0_58] : memref<1x3x128x128xbf16, #tpu.memory_space<vmem>>, vector<1x1x128x128xbf16>
    %72 = vector.shape_cast %71 : vector<1x1x128x128xbf16> to vector<128x128xbf16>
    %73 = vector.shape_cast %70 : vector<128x128xbf16> to vector<1x1x128x128xbf16>
    tpu.vector_store %arg20[%c0_56, %c1, %c0_57, %c0_58], %73 {strides = array<i32>} : memref<1x3x128x128xbf16, #tpu.memory_space<vmem>>, vector<1x1x128x128xbf16>,
    %c1_59 = arith.constant 1 : index
    %c0_60 = arith.constant 0 : index
    %c0_61 = arith.constant 0 : index
    %74 = vector.load %arg10[%c1_59, %c0_60, %c0_61] : memref<2x128x128xbf16, #tpu.memory_space<vmem>>, vector<1x128x128xbf16>
    %75 = vector.shape_cast %74 : vector<1x128x128xbf16> to vector<128x128xbf16>
    %c1_62 = arith.constant 1 : index
    %c0_63 = arith.constant 0 : index
    %c0_64 = arith.constant 0 : index
    %76 = vector.load %arg11[%c1_62, %c0_63, %c0_64] : memref<2x1x128xbf16, #tpu.memory_space<vmem>>, vector<1x1x128xbf16>
    %77 = vector.shape_cast %76 : vector<1x1x128xbf16> to vector<1x128xbf16>
    %c1_65 = arith.constant 1 : index
    %c0_66 = arith.constant 0 : index
    %c0_67 = arith.constant 0 : index
    %78 = vector.load %arg12[%c1_65, %c0_66, %c0_67] : memref<2x128x128xbf16, #tpu.memory_space<vmem>>, vector<1x128x128xbf16>
    %79 = vector.shape_cast %78 : vector<1x128x128xbf16> to vector<128x128xbf16>
    %c1_68 = arith.constant 1 : index
    %c0_69 = arith.constant 0 : index
    %c0_70 = arith.constant 0 : index
    %80 = vector.load %arg13[%c1_68, %c0_69, %c0_70] : memref<2x1x128xbf16, #tpu.memory_space<vmem>>, vector<1x1x128xbf16>
    %81 = vector.shape_cast %80 : vector<1x1x128xbf16> to vector<1x128xbf16>
    %c1_71 = arith.constant 1 : index
    %c0_72 = arith.constant 0 : index
    %c0_73 = arith.constant 0 : index
    %82 = vector.load %arg14[%c1_71, %c0_72, %c0_73] : memref<2x1x128xbf16, #tpu.memory_space<vmem>>, vector<1x1x128xbf16>
    %83 = vector.shape_cast %82 : vector<1x1x128xbf16> to vector<1x128xbf16>
    %c1_74 = arith.constant 1 : index
    %c0_75 = arith.constant 0 : index
    %c0_76 = arith.constant 0 : index
    %84 = vector.load %arg15[%c1_74, %c0_75, %c0_76] : memref<2x1x128xbf16, #tpu.memory_space<vmem>>, vector<1x1x128xbf16>
    %85 = vector.shape_cast %84 : vector<1x1x128xbf16> to vector<1x128xbf16>
    %cst_77 = arith.constant dense<0.000000e+00> : vector<128x128xf32>
    %86 = tpu.matmul %1, %70, %cst_77 {dimension_numbers = #tpu.dot_dimension_numbers<[1], [0], [0], [1], [0, 0, 1, 1], [], []>} : vector<128x128xbf16>, vector<128x128xbf16>, vector<128x128xf32> -> vector<128x128xf32>
    %87 = arith.truncf %86 : vector<128x128xf32> to vector<128x128xbf16>
    %cst_78 = arith.constant dense<0.000000e+00> : vector<128x128xf32>
    %88 = tpu.matmul %87, %75, %cst_78 {dimension_numbers = #tpu.dot_dimension_numbers<[1], [0], [0], [1], [0, 0, 1, 1], [], []>} : vector<128x128xbf16>, vector<128x128xbf16>, vector<128x128xf32> -> vector<128x128xf32>
    %89 = arith.truncf %88 : vector<128x128xf32> to vector<128x128xbf16>
    %90 = vector.broadcast %77 : vector<1x128xbf16> to vector<128x128xbf16>
    %91 = arith.addf %89, %90 : vector<128x128xbf16>
    %cst_79 = arith.constant 0.000000e+00 : bf16
    %92 = vector.broadcast %cst_79 : bf16 to vector<128x128xbf16>
    %93 = arith.maximumf %91, %92 : vector<128x128xbf16>
    %cst_80 = arith.constant dense<0.000000e+00> : vector<128x128xf32>
    %94 = tpu.matmul %93, %79, %cst_80 {dimension_numbers = #tpu.dot_dimension_numbers<[1], [0], [0], [1], [0, 0, 1, 1], [], []>} : vector<128x128xbf16>, vector<128x128xbf16>, vector<128x128xf32> -> vector<128x128xf32>
    %95 = arith.truncf %94 : vector<128x128xf32> to vector<128x128xbf16>
    %96 = vector.broadcast %81 : vector<1x128xbf16> to vector<128x128xbf16>
    %97 = arith.addf %95, %96 : vector<128x128xbf16>
    %cst_81 = arith.constant 0.000000e+00 : bf16
    %98 = vector.broadcast %cst_81 : bf16 to vector<128x128xbf16>
    %99 = arith.maximumf %97, %98 : vector<128x128xbf16>
    %100 = vector.broadcast %83 : vector<1x128xbf16> to vector<128x128xbf16>
    %101 = arith.mulf %99, %100 : vector<128x128xbf16>
    %102 = vector.broadcast %85 : vector<1x128xbf16> to vector<128x128xbf16>
    %103 = arith.addf %101, %102 : vector<128x128xbf16>
    %cst_82 = arith.constant 0.000000e+00 : bf16
    %104 = vector.broadcast %cst_82 : bf16 to vector<128x128xbf16>
    %105 = arith.maximumf %103, %104 : vector<128x128xbf16>
    %c0_83 = arith.constant 0 : index
    %c2 = arith.constant 2 : index
    %c0_84 = arith.constant 0 : index
    %c0_85 = arith.constant 0 : index
    %106 = vector.load %arg20[%c0_83, %c2, %c0_84, %c0_85] : memref<1x3x128x128xbf16, #tpu.memory_space<vmem>>, vector<1x1x128x128xbf16>
    %107 = vector.shape_cast %106 : vector<1x1x128x128xbf16> to vector<128x128xbf16>
    %108 = vector.shape_cast %105 : vector<128x128xbf16> to vector<1x1x128x128xbf16>
    tpu.vector_store %arg20[%c0_83, %c2, %c0_84, %c0_85], %108 {strides = array<i32>} : memref<1x3x128x128xbf16, #tpu.memory_space<vmem>>, vector<1x1x128x128xbf16>,
    %c0_86 = arith.constant 0 : index
    %c0_87 = arith.constant 0 : index
    %c0_88 = arith.constant 0 : index
    %109 = vector.load %arg3[%c0_86, %c0_87, %c0_88] : memref<1x2x128xf32, #tpu.memory_space<vmem>>, vector<1x2x128xf32>
    %110 = vector.shape_cast %109 : vector<1x2x128xf32> to vector<2x128xf32>
    %111 = arith.extf %105 : vector<128x128xbf16> to vector<128x128xf32>
    %cst_89 = arith.constant dense<0.000000e+00> : vector<2x128xf32>
    %112 = tpu.matmul %110, %111, %cst_89 {dimension_numbers = #tpu.dot_dimension_numbers<[1], [0], [0], [1], [0, 0, 1, 1], [], []>} : vector<2x128xf32>, vector<128x128xf32>, vector<2x128xf32> -> vector<2x128xf32>
    %c0_90 = arith.constant 0 : index
    %c0_91 = arith.constant 0 : index
    %c0_92 = arith.constant 0 : index
    %113 = vector.load %arg21[%c0_90, %c0_91, %c0_92] : memref<1x2x128xf32, #tpu.memory_space<vmem>>, vector<1x2x128xf32>
    %114 = vector.shape_cast %113 : vector<1x2x128xf32> to vector<2x128xf32>
    %115 = vector.shape_cast %112 : vector<2x128xf32> to vector<1x2x128xf32>
    tpu.vector_store %arg21[%c0_90, %c0_91, %c0_92], %115 {strides = array<i32>} : memref<1x2x128xf32, #tpu.memory_space<vmem>>, vector<1x2x128xf32>,
    %116 = arith.truncf %112 : vector<2x128xf32> to vector<2x128xbf16>
    %c0_93 = arith.constant 0 : index
    %c0_94 = arith.constant 0 : index
    %c0_95 = arith.constant 0 : index
    %117 = vector.load %arg16[%c0_93, %c0_94, %c0_95] : memref<1x128x128xbf16, #tpu.memory_space<vmem>>, vector<1x128x128xbf16>
    %118 = vector.shape_cast %117 : vector<1x128x128xbf16> to vector<128x128xbf16>
    %cst_96 = arith.constant dense<0.000000e+00> : vector<2x128xf32>
    %119 = tpu.matmul %116, %118, %cst_96 {dimension_numbers = #tpu.dot_dimension_numbers<[1], [0], [0], [1], [0, 0, 1, 1], [], []>} : vector<2x128xbf16>, vector<128x128xbf16>, vector<2x128xf32> -> vector<2x128xf32>
    %c0_97 = arith.constant 0 : index
    %c0_98 = arith.constant 0 : index
    %c0_99 = arith.constant 0 : index
    %120 = vector.load %arg17[%c0_97, %c0_98, %c0_99] : memref<1x1x128xf32, #tpu.memory_space<vmem>>, vector<1x1x128xf32>
    %121 = vector.shape_cast %120 : vector<1x1x128xf32> to vector<1x128xf32>
    %122 = vector.broadcast %121 : vector<1x128xf32> to vector<2x128xf32>
    %123 = arith.addf %119, %122 : vector<2x128xf32>
    %cst_100 = arith.constant 0.000000e+00 : f32
    %124 = vector.broadcast %cst_100 : f32 to vector<2x128xf32>
    %125 = arith.maximumf %123, %124 : vector<2x128xf32>
    %126 = arith.truncf %125 : vector<2x128xf32> to vector<2x128xbf16>
    %c0_101 = arith.constant 0 : index
    %c0_102 = arith.constant 0 : index
    %c0_103 = arith.constant 0 : index
    %127 = vector.load %arg18[%c0_101, %c0_102, %c0_103] : memref<1x128x128xbf16, #tpu.memory_space<vmem>>, vector<1x128x128xbf16>
    %128 = vector.shape_cast %127 : vector<1x128x128xbf16> to vector<128x128xbf16>
    %cst_104 = arith.constant dense<0.000000e+00> : vector<2x128xf32>
    %129 = tpu.matmul %126, %128, %cst_104 {dimension_numbers = #tpu.dot_dimension_numbers<[1], [0], [0], [1], [0, 0, 1, 1], [], []>} : vector<2x128xbf16>, vector<128x128xbf16>, vector<2x128xf32> -> vector<2x128xf32>
    %c0_105 = arith.constant 0 : index
    %c0_106 = arith.constant 0 : index
    %c0_107 = arith.constant 0 : index
    %130 = vector.load %arg19[%c0_105, %c0_106, %c0_107] : memref<1x1x128xf32, #tpu.memory_space<vmem>>, vector<1x1x128xf32>
    %131 = vector.shape_cast %130 : vector<1x1x128xf32> to vector<1x128xf32>
    %132 = vector.broadcast %131 : vector<1x128xf32> to vector<2x128xf32>
    %133 = arith.addf %129, %132 : vector<2x128xf32>
    %c0_108 = arith.constant 0 : index
    %c0_109 = arith.constant 0 : index
    %c0_110 = arith.constant 0 : index
    %134 = vector.load %arg22[%c0_108, %c0_109, %c0_110] : memref<1x2x128xf32, #tpu.memory_space<vmem>>, vector<1x2x128xf32>
    %135 = vector.shape_cast %134 : vector<1x2x128xf32> to vector<2x128xf32>
    %136 = vector.shape_cast %133 : vector<2x128xf32> to vector<1x2x128xf32>
    tpu.vector_store %arg22[%c0_108, %c0_109, %c0_110], %136 {strides = array<i32>} : memref<1x2x128xf32, #tpu.memory_space<vmem>>, vector<1x2x128xf32>,
    return
  }
  func.func @transform_0(%arg0: i32) -> (i32, i32, i32) {
    %c0_i32 = arith.constant 0 : i32
    %c0_i32_0 = arith.constant 0 : i32
    %c0_i32_1 = arith.constant 0 : i32
    return %arg0, %c0_i32, %c0_i32_0 : i32, i32, i32
  }
  func.func @transform_1(%arg0: i32) -> (i32, i32, i32) {
    %c0_i32 = arith.constant 0 : i32
    %c0_i32_0 = arith.constant 0 : i32
    %c0_i32_1 = arith.constant 0 : i32
    return %arg0, %c0_i32, %c0_i32_0 : i32, i32, i32
  }
  func.func @transform_2(%arg0: i32) -> (i32, i32, i32) {
    %c0_i32 = arith.constant 0 : i32
    %c0_i32_0 = arith.constant 0 : i32
    %c0_i32_1 = arith.constant 0 : i32
    return %arg0, %c0_i32, %c0_i32_0 : i32, i32, i32
  }
  func.func @transform_3(%arg0: i32) -> (i32, i32, i32) {
    %c0_i32 = arith.constant 0 : i32
    %c0_i32_0 = arith.constant 0 : i32
    %c0_i32_1 = arith.constant 0 : i32
    return %arg0, %c0_i32, %c0_i32_0 : i32, i32, i32
  }
  func.func @transform_4(%arg0: i32) -> (i32, i32, i32) {
    %c0_i32 = arith.constant 0 : i32
    %c0_i32_0 = arith.constant 0 : i32
    %c0_i32_1 = arith.constant 0 : i32
    return %arg0, %c0_i32, %c0_i32_0 : i32, i32, i32
  }
  func.func @transform_5(%arg0: i32) -> (i32, i32, i32) {
    %c0_i32 = arith.constant 0 : i32
    %c0_i32_0 = arith.constant 0 : i32
    %c0_i32_1 = arith.constant 0 : i32
    return %arg0, %c0_i32, %c0_i32_0 : i32, i32, i32
  }
  func.func @transform_6(%arg0: i32) -> (i32, i32, i32) {
    %c0_i32 = arith.constant 0 : i32
    %c0_i32_0 = arith.constant 0 : i32
    %c0_i32_1 = arith.constant 0 : i32
    return %arg0, %c0_i32, %c0_i32_0 : i32, i32, i32
  }
  func.func @transform_7(%arg0: i32) -> (i32, i32, i32) {
    %c0_i32 = arith.constant 0 : i32
    %c0_i32_0 = arith.constant 0 : i32
    %c0_i32_1 = arith.constant 0 : i32
    return %arg0, %c0_i32, %c0_i32_0 : i32, i32, i32
  }
  func.func @transform_8(%arg0: i32) -> (i32, i32, i32) {
    %c0_i32 = arith.constant 0 : i32
    %c0_i32_0 = arith.constant 0 : i32
    %c0_i32_1 = arith.constant 0 : i32
    return %arg0, %c0_i32, %c0_i32_0 : i32, i32, i32
  }
  func.func @transform_9(%arg0: i32) -> (i32, i32, i32) {
    %c0_i32 = arith.constant 0 : i32
    %c0_i32_0 = arith.constant 0 : i32
    %c0_i32_1 = arith.constant 0 : i32
    %c0_i32_2 = arith.constant 0 : i32
    return %c0_i32, %c0_i32_0, %c0_i32_1 : i32, i32, i32
  }
  func.func @transform_10(%arg0: i32) -> (i32, i32, i32) {
    %c0_i32 = arith.constant 0 : i32
    %c0_i32_0 = arith.constant 0 : i32
    %c0_i32_1 = arith.constant 0 : i32
    %c0_i32_2 = arith.constant 0 : i32
    return %c0_i32, %c0_i32_0, %c0_i32_1 : i32, i32, i32
  }
  func.func @transform_11(%arg0: i32) -> (i32, i32, i32) {
    %c0_i32 = arith.constant 0 : i32
    %c0_i32_0 = arith.constant 0 : i32
    %c0_i32_1 = arith.constant 0 : i32
    %c0_i32_2 = arith.constant 0 : i32
    return %c0_i32, %c0_i32_0, %c0_i32_1 : i32, i32, i32
  }
  func.func @transform_12(%arg0: i32) -> (i32, i32, i32) {
    %c0_i32 = arith.constant 0 : i32
    %c0_i32_0 = arith.constant 0 : i32
    %c0_i32_1 = arith.constant 0 : i32
    %c0_i32_2 = arith.constant 0 : i32
    return %c0_i32, %c0_i32_0, %c0_i32_1 : i32, i32, i32
  }
  func.func @transform_13(%arg0: i32) -> (i32, i32, i32) {
    %c0_i32 = arith.constant 0 : i32
    %c0_i32_0 = arith.constant 0 : i32
    %c0_i32_1 = arith.constant 0 : i32
    %c0_i32_2 = arith.constant 0 : i32
    return %c0_i32, %c0_i32_0, %c0_i32_1 : i32, i32, i32
  }
  func.func @transform_14(%arg0: i32) -> (i32, i32, i32) {
    %c0_i32 = arith.constant 0 : i32
    %c0_i32_0 = arith.constant 0 : i32
    %c0_i32_1 = arith.constant 0 : i32
    %c0_i32_2 = arith.constant 0 : i32
    return %c0_i32, %c0_i32_0, %c0_i32_1 : i32, i32, i32
  }
  func.func @transform_15(%arg0: i32) -> (i32, i32, i32) {
    %c0_i32 = arith.constant 0 : i32
    %c0_i32_0 = arith.constant 0 : i32
    %c0_i32_1 = arith.constant 0 : i32
    return %arg0, %c0_i32, %c0_i32_0 : i32, i32, i32
  }
  func.func @transform_16(%arg0: i32) -> (i32, i32, i32) {
    %c0_i32 = arith.constant 0 : i32
    %c0_i32_0 = arith.constant 0 : i32
    %c0_i32_1 = arith.constant 0 : i32
    return %arg0, %c0_i32, %c0_i32_0 : i32, i32, i32
  }
  func.func @transform_17(%arg0: i32) -> (i32, i32, i32) {
    %c0_i32 = arith.constant 0 : i32
    %c0_i32_0 = arith.constant 0 : i32
    %c0_i32_1 = arith.constant 0 : i32
    return %arg0, %c0_i32, %c0_i32_0 : i32, i32, i32
  }
  func.func @transform_18(%arg0: i32) -> (i32, i32, i32) {
    %c0_i32 = arith.constant 0 : i32
    %c0_i32_0 = arith.constant 0 : i32
    %c0_i32_1 = arith.constant 0 : i32
    return %arg0, %c0_i32, %c0_i32_0 : i32, i32, i32
  }
  func.func @transform_19(%arg0: i32) -> (i32, i32, i32, i32) {
    %c0_i32 = arith.constant 0 : i32
    %c0_i32_0 = arith.constant 0 : i32
    %c0_i32_1 = arith.constant 0 : i32
    %c0_i32_2 = arith.constant 0 : i32
    return %arg0, %c0_i32, %c0_i32_0, %c0_i32_1 : i32, i32, i32, i32
  }
  func.func @transform_20(%arg0: i32) -> (i32, i32, i32) {
    %c0_i32 = arith.constant 0 : i32
    %c0_i32_0 = arith.constant 0 : i32
    %c0_i32_1 = arith.constant 0 : i32
    return %arg0, %c0_i32, %c0_i32_0 : i32, i32, i32
  }
  func.func @transform_21(%arg0: i32) -> (i32, i32, i32) {
    %c0_i32 = arith.constant 0 : i32
    %c0_i32_0 = arith.constant 0 : i32
    %c0_i32_1 = arith.constant 0 : i32
    return %arg0, %c0_i32, %c0_i32_0 : i32, i32, i32
  }
}

</mosaic_0001>

<llo_original>
// kernel: mimo_gin_forward.1
$region0: #{mimo_gin_forward.1}
  #allocation0 [shape = 'u32[]', space=smem, size = 0x4, offset = 0x4, fixed_abs, tag = 'smem constant byte address 0x4 - core index']
  #allocation1 [shape = 'u32[144,128]{1,0:T(1,128)}', space=vmem, size = 0x12000, scoped, tag = 'internal scratch']
  %s0 = inlined_call_operand.vmem [shape: bf16[2,128,128], index: 0, kind: input, shape index: {}]
  %s1 = inlined_call_operand.vmem [shape: bf16[2,128,128], index: 1, kind: input, shape index: {}]
  %s2 = inlined_call_operand.vmem [shape: f32[2,2,128], index: 2, kind: input, shape index: {}]
  %s3 = inlined_call_operand.vmem [shape: bf16[2,128,128], index: 3, kind: input, shape index: {}]
  %s4 = inlined_call_operand.vmem [shape: bf16[2,1,128], index: 4, kind: input, shape index: {}]
  %s5 = inlined_call_operand.vmem [shape: bf16[2,128,128], index: 5, kind: input, shape index: {}]
  %s6 = inlined_call_operand.vmem [shape: bf16[2,1,128], index: 6, kind: input, shape index: {}]
  %s7 = inlined_call_operand.vmem [shape: bf16[2,1,128], index: 7, kind: input, shape index: {}]
  %s8 = inlined_call_operand.vmem [shape: bf16[2,1,128], index: 8, kind: input, shape index: {}]
  %s9 = inlined_call_operand.vmem [shape: bf16[2,128,128], index: 9, kind: input, shape index: {}]
  %s10 = inlined_call_operand.vmem [shape: bf16[2,1,128], index: 10, kind: input, shape index: {}]
  %s11 = inlined_call_operand.hbm [shape: bf16[2,128,128], index: 11, kind: input, shape index: {}]
  %s12 = inlined_call_operand.vmem [shape: bf16[2,1,128], index: 12, kind: input, shape index: {}]
  %s13 = inlined_call_operand.vmem [shape: bf16[2,1,128], index: 13, kind: input, shape index: {}]
  %s14 = inlined_call_operand.vmem [shape: bf16[2,1,128], index: 14, kind: input, shape index: {}]
  %s15 = inlined_call_operand.hbm [shape: bf16[2,128,128], index: 15, kind: input, shape index: {}]
  %s16 = inlined_call_operand.vmem [shape: f32[2,1,128], index: 16, kind: input, shape index: {}]
  %s17 = inlined_call_operand.hbm [shape: bf16[2,128,128], index: 17, kind: input, shape index: {}]
  %s18 = inlined_call_operand.vmem [shape: f32[2,1,128], index: 18, kind: input, shape index: {}]
  %s19 = inlined_call_operand.vmem [shape: bf16[2,3,128,128], index: 19, kind: output, shape index: {0}]
  %s20 = inlined_call_operand.hbm [shape: f32[2,2,128], index: 20, kind: output, shape index: {1}]
  %s21 = inlined_call_operand.hbm [shape: f32[2,2,128], index: 21, kind: output, shape index: {2}]
  %22 = xla_tuple %s19, %s20, %s21
  %s23 = sld [smem:[#allocation0]]
  $region137: #{mimo_gin_forward.1} parent=0
    _
  %s25 = ssub.s32 1, %s23
  %s26 = scalar_select 0, %s25, %s23
  $region1: #{mimo_gin_forward.1} parent=0
    #allocation2 [shape = 'u8[65536]{0}', space=vmem, size = 0x10000, scoped, tag = 'input window, operand 11, single buffered']
    #allocation3 [shape = 's32[2]{0}', space=sflag, size = 0x8, scoped, tag = 'scoped memory for mimo_gin_forward.1']
    #allocation4 [shape = 's32[2]{0}', space=sflag, size = 0x8, scoped, tag = 'scoped memory for mimo_gin_forward.1']
    #allocation5 [shape = 'u8[65536]{0}', space=vmem, size = 0x10000, scoped, tag = 'input window, operand 15']
    #allocation6 [shape = 's32[2]{0}', space=sflag, size = 0x8, scoped, tag = 'scoped memory for mimo_gin_forward.1']
    #allocation7 [shape = 'u8[65536]{0}', space=vmem, size = 0x10000, scoped, tag = 'input window, operand 17']
    #allocation8 [shape = 'u8[2048]{0}', space=vmem, size = 0x800, scoped, tag = 'output window, operand 1']
    #allocation9 [shape = 'u8[2048]{0}', space=vmem, size = 0x800, scoped, tag = 'output window, operand 2']
    #allocation10 [shape = 's32[2]{0}', space=sflag, size = 0x8, scoped, tag = 'scoped memory for mimo_gin_forward.1']
    %27 = vsyncpa [#allocation3], 0
    %28 = vsyncpa [#allocation6], 0
    %s29 = scalar_lea.sflag [#allocation6], 1
    %30 = vsyncpa %s29, 0
    %31 = vsyncpa [#allocation4], 0
    %s32 = scalar_lea.sflag [#allocation4], 1
    %33 = vsyncpa %s32, 0
    %34 = vsyncpa [#allocation10], 0
    %s35 = scalar_lea.sflag [#allocation10], 1
    %36 = vsyncpa %s35, 0
    loop: start=0, step=1, limit=4
    $region2: #{mimo_gin_forward.1} parent=1 // loop_pre_header
      _
    $region3: #{mimo_gin_forward.1} parent=1 // loop_header
      %s38 = sphi 0, %s42
      %p39 = scmp.ge.s32.totalorder %s38, 4
      %s48 = sphi 0, %s50
      %s51 = sphi 0, %s48
      %s52 = sphi 0, %s51
      %s68 = sphi 0, %s52
      %s74 = sphi 0, %s76
      %s77 = sphi 0, %s74
      %s78 = sphi 0, %s77
      %s94 = sphi 0, %s78
      %s100 = sphi 0, %s102
      %s103 = sphi 0, %s100
      %s104 = sphi 0, %s103
      %s120 = sphi 0, %s104
      %s126 = sphi 0, %s128
      %s129 = sphi 0, %s126
      %s130 = sphi 0, %s129
      %s146 = sphi 0, %s130
      %s152 = sphi 0, %s154
      %s155 = sphi 0, %s152
      %s156 = sphi 0, %s155
      %s172 = sphi 0, %s156
      %s178 = sphi 0, %s180
      %s181 = sphi 0, %s178
      %s182 = sphi 0, %s181
      %s198 = sphi 0, %s182
      %s204 = sphi 0, %s206
      %s207 = sphi 0, %s204
      %s208 = sphi 0, %s207
      %s224 = sphi 0, %s208
      %s230 = sphi 0, %s232
      %s233 = sphi 0, %s230
      %s234 = sphi 0, %s233
      %s250 = sphi 0, %s234
      %s256 = sphi 0, %s258
      %s259 = sphi 0, %s256
      %s260 = sphi 0, %s259
      %s276 = sphi 0, %s260
      %s280 = sphi 0, %s280
      %s282 = sphi 0, %s280
      %s283 = sphi 0, %s282
      %s297 = sphi 0, %s283
      %s301 = sphi 0, %s301
      %s303 = sphi 0, %s301
      %s304 = sphi 0, %s303
      %s318 = sphi 0, %s304
      %s322 = sphi 0, %s322
      %s324 = sphi 0, %s322
      %s325 = sphi 0, %s324
      %s339 = sphi 0, %s325
      %s343 = sphi 0, %s343
      %s345 = sphi 0, %s343
      %s346 = sphi 0, %s345
      %s360 = sphi 0, %s346
      %s364 = sphi 0, %s364
      %s366 = sphi 0, %s364
      %s367 = sphi 0, %s366
      %s381 = sphi 0, %s367
      %s385 = sphi 0, %s385
      %s387 = sphi 0, %s385
      %s388 = sphi 0, %s387
      %s402 = sphi 0, %s388
      %s408 = sphi 0, %s410
      %s411 = sphi 0, %s408
      %s412 = sphi 0, %s411
      %s428 = sphi 0, %s412
      %s434 = sphi 0, %s436
      %s437 = sphi 0, %s434
      %s438 = sphi 0, %s437
      %s454 = sphi 0, %s438
      %s460 = sphi 0, %s462
      %s463 = sphi 0, %s460
      %s464 = sphi 0, %s463
      %s480 = sphi 0, %s464
      %s486 = sphi 0, %s488
      %s489 = sphi 0, %s486
      %s490 = sphi 0, %s489
      %s506 = sphi 0, %s490
      %s512 = sphi 0, %s514
      %s515 = sphi 0, %s512
      %s516 = sphi 0, %s515
      %s532 = sphi 0, %s516
      %s538 = sphi 0, %s540
      %s541 = sphi 0, %s538
      %s542 = sphi 0, %s541
      %s558 = sphi 0, %s542
      %s564 = sphi 0, %s566
      %s567 = sphi 0, %s564
      %s568 = sphi 0, %s567
      %s584 = sphi 0, %s568
    $region4: #{mimo_gin_forward.1} parent=1 // loop_header_branch
      %41 = sbr.rel (%p39) target = $region8
    $region5: #{mimo_gin_forward.1} parent=1 // loop_body
      %s43 = ssub.s32 %s38, 1
      %s44 = ssub.s32 %s38, 2
      %s45 = sadd.s32 %s38, 1
      %s46 = ssub.s32 %s38, %s45
      %p47 = scmp.eq.s32.totalorder %s46, 0
      %s49 = sadd.s32 %s48, 1
      %s50 = scalar_select %p47, %s48, %s49
      %p53 = pneg %p47
      %p54 = scmp.eq.s32.totalorder %s38, 1
      %p55 = por %p53, %p54
      %p56 = scmp.ne.s32.totalorder %s48, %s51
      %p57 = scmp.eq.s32.totalorder %s38, 0
      %p58 = por %p56, %p57
      %p59 = scmp.ne.s32.totalorder %s48, %s51
      %p60 = scmp.eq.s32.totalorder %s43, 1
      %p61 = por %p59, %p60
      %p62 = scmp.ne.s32.totalorder %s51, %s52
      %p63 = scmp.eq.s32.totalorder %s43, 0
      %p64 = por %p62, %p63
      %p65 = scmp.ne.s32.totalorder %s51, %s52
      %p66 = scmp.eq.s32.totalorder %s44, 1
      %p67 = por %p65, %p66
      %p69 = scmp.ne.s32.totalorder %s52, %s68
      %p70 = scmp.eq.s32.totalorder %s44, 0
      %p71 = por %p69, %p70
      %s72 = ssub.s32 %s38, %s45
      %p73 = scmp.eq.s32.totalorder %s72, 0
      %s75 = sadd.s32 %s74, 1
      %s76 = scalar_select %p73, %s74, %s75
      %p79 = pneg %p73
      %p80 = scmp.eq.s32.totalorder %s38, 1
      %p81 = por %p79, %p80
      %p82 = scmp.ne.s32.totalorder %s74, %s77
      %p83 = scmp.eq.s32.totalorder %s38, 0
      %p84 = por %p82, %p83
      %p85 = scmp.ne.s32.totalorder %s74, %s77
      %p86 = scmp.eq.s32.totalorder %s43, 1
      %p87 = por %p85, %p86
      %p88 = scmp.ne.s32.totalorder %s77, %s78
      %p89 = scmp.eq.s32.totalorder %s43, 0
      %p90 = por %p88, %p89
      %p91 = scmp.ne.s32.totalorder %s77, %s78
      %p92 = scmp.eq.s32.totalorder %s44, 1
      %p93 = por %p91, %p92
      %p95 = scmp.ne.s32.totalorder %s78, %s94
      %p96 = scmp.eq.s32.totalorder %s44, 0
      %p97 = por %p95, %p96
      %s98 = ssub.s32 %s38, %s45
      %p99 = scmp.eq.s32.totalorder %s98, 0
      %s101 = sadd.s32 %s100, 1
      %s102 = scalar_select %p99, %s100, %s101
      %p105 = pneg %p99
      %p106 = scmp.eq.s32.totalorder %s38, 1
      %p107 = por %p105, %p106
      %p108 = scmp.ne.s32.totalorder %s100, %s103
      %p109 = scmp.eq.s32.totalorder %s38, 0
      %p110 = por %p108, %p109
      %p111 = scmp.ne.s32.totalorder %s100, %s103
      %p112 = scmp.eq.s32.totalorder %s43, 1
      %p113 = por %p111, %p112
      %p114 = scmp.ne.s32.totalorder %s103, %s104
      %p115 = scmp.eq.s32.totalorder %s43, 0
      %p116 = por %p114, %p115
      %p117 = scmp.ne.s32.totalorder %s103, %s104
      %p118 = scmp.eq.s32.totalorder %s44, 1
      %p119 = por %p117, %p118
      %p121 = scmp.ne.s32.totalorder %s104, %s120
      %p122 = scmp.eq.s32.totalorder %s44, 0
      %p123 = por %p121, %p122
      %s124 = ssub.s32 %s38, %s45
      %p125 = scmp.eq.s32.totalorder %s124, 0
      %s127 = sadd.s32 %s126, 1
      %s128 = scalar_select %p125, %s126, %s127
      %p131 = pneg %p125
      %p132 = scmp.eq.s32.totalorder %s38, 1
      %p133 = por %p131, %p132
      %p134 = scmp.ne.s32.totalorder %s126, %s129
      %p135 = scmp.eq.s32.totalorder %s38, 0
      %p136 = por %p134, %p135
      %p137 = scmp.ne.s32.totalorder %s126, %s129
      %p138 = scmp.eq.s32.totalorder %s43, 1
      %p139 = por %p137, %p138
      %p140 = scmp.ne.s32.totalorder %s129, %s130
      %p141 = scmp.eq.s32.totalorder %s43, 0
      %p142 = por %p140, %p141
      %p143 = scmp.ne.s32.totalorder %s129, %s130
      %p144 = scmp.eq.s32.totalorder %s44, 1
      %p145 = por %p143, %p144
      %p147 = scmp.ne.s32.totalorder %s130, %s146
      %p148 = scmp.eq.s32.totalorder %s44, 0
      %p149 = por %p147, %p148
      %s150 = ssub.s32 %s38, %s45
      %p151 = scmp.eq.s32.totalorder %s150, 0
      %s153 = sadd.s32 %s152, 1
      %s154 = scalar_select %p151, %s152, %s153
      %p157 = pneg %p151
      %p158 = scmp.eq.s32.totalorder %s38, 1
      %p159 = por %p157, %p158
      %p160 = scmp.ne.s32.totalorder %s152, %s155
      %p161 = scmp.eq.s32.totalorder %s38, 0
      %p162 = por %p160, %p161
      %p163 = scmp.ne.s32.totalorder %s152, %s155
      %p164 = scmp.eq.s32.totalorder %s43, 1
      %p165 = por %p163, %p164
      %p166 = scmp.ne.s32.totalorder %s155, %s156
      %p167 = scmp.eq.s32.totalorder %s43, 0
      %p168 = por %p166, %p167
      %p169 = scmp.ne.s32.totalorder %s155, %s156
      %p170 = scmp.eq.s32.totalorder %s44, 1
      %p171 = por %p169, %p170
      %p173 = scmp.ne.s32.totalorder %s156, %s172
      %p174 = scmp.eq.s32.totalorder %s44, 0
      %p175 = por %p173, %p174
      %s176 = ssub.s32 %s38, %s45
      %p177 = scmp.eq.s32.totalorder %s176, 0
      %s179 = sadd.s32 %s178, 1
      %s180 = scalar_select %p177, %s178, %s179
      %p183 = pneg %p177
      %p184 = scmp.eq.s32.totalorder %s38, 1
      %p185 = por %p183, %p184
      %p186 = scmp.ne.s32.totalorder %s178, %s181
      %p187 = scmp.eq.s32.totalorder %s38, 0
      %p188 = por %p186, %p187
      %p189 = scmp.ne.s32.totalorder %s178, %s181
      %p190 = scmp.eq.s32.totalorder %s43, 1
      %p191 = por %p189, %p190
      %p192 = scmp.ne.s32.totalorder %s181, %s182
      %p193 = scmp.eq.s32.totalorder %s43, 0
      %p194 = por %p192, %p193
      %p195 = scmp.ne.s32.totalorder %s181, %s182
      %p196 = scmp.eq.s32.totalorder %s44, 1
      %p197 = por %p195, %p196
      %p199 = scmp.ne.s32.totalorder %s182, %s198
      %p200 = scmp.eq.s32.totalorder %s44, 0
      %p201 = por %p199, %p200
      %s202 = ssub.s32 %s38, %s45
      %p203 = scmp.eq.s32.totalorder %s202, 0
      %s205 = sadd.s32 %s204, 1
      %s206 = scalar_select %p203, %s204, %s205
      %p209 = pneg %p203
      %p210 = scmp.eq.s32.totalorder %s38, 1
      %p211 = por %p209, %p210
      %p212 = scmp.ne.s32.totalorder %s204, %s207
      %p213 = scmp.eq.s32.totalorder %s38, 0
      %p214 = por %p212, %p213
      %p215 = scmp.ne.s32.totalorder %s204, %s207
      %p216 = scmp.eq.s32.totalorder %s43, 1
      %p217 = por %p215, %p216
      %p218 = scmp.ne.s32.totalorder %s207, %s208
      %p219 = scmp.eq.s32.totalorder %s43, 0
      %p220 = por %p218, %p219
      %p221 = scmp.ne.s32.totalorder %s207, %s208
      %p222 = scmp.eq.s32.totalorder %s44, 1
      %p223 = por %p221, %p222
      %p225 = scmp.ne.s32.totalorder %s208, %s224
      %p226 = scmp.eq.s32.totalorder %s44, 0
      %p227 = por %p225, %p226
      %s228 = ssub.s32 %s38, %s45
      %p229 = scmp.eq.s32.totalorder %s228, 0
      %s231 = sadd.s32 %s230, 1
      %s232 = scalar_select %p229, %s230, %s231
      %p235 = pneg %p229
      %p236 = scmp.eq.s32.totalorder %s38, 1
      %p237 = por %p235, %p236
      %p238 = scmp.ne.s32.totalorder %s230, %s233
      %p239 = scmp.eq.s32.totalorder %s38, 0
      %p240 = por %p238, %p239
      %p241 = scmp.ne.s32.totalorder %s230, %s233
      %p242 = scmp.eq.s32.totalorder %s43, 1
      %p243 = por %p241, %p242
      %p244 = scmp.ne.s32.totalorder %s233, %s234
      %p245 = scmp.eq.s32.totalorder %s43, 0
      %p246 = por %p244, %p245
      %p247 = scmp.ne.s32.totalorder %s233, %s234
      %p248 = scmp.eq.s32.totalorder %s44, 1
      %p249 = por %p247, %p248
      %p251 = scmp.ne.s32.totalorder %s234, %s250
      %p252 = scmp.eq.s32.totalorder %s44, 0
      %p253 = por %p251, %p252
      %s254 = ssub.s32 %s38, %s45
      %p255 = scmp.eq.s32.totalorder %s254, 0
      %s257 = sadd.s32 %s256, 1
      %s258 = scalar_select %p255, %s256, %s257
      %p261 = pneg %p255
      %p262 = scmp.eq.s32.totalorder %s38, 1
      %p263 = por %p261, %p262
      %p264 = scmp.ne.s32.totalorder %s256, %s259
      %p265 = scmp.eq.s32.totalorder %s38, 0
      %p266 = por %p264, %p265
      %p267 = scmp.ne.s32.totalorder %s256, %s259
      %p268 = scmp.eq.s32.totalorder %s43, 1
      %p269 = por %p267, %p268
      %p270 = scmp.ne.s32.totalorder %s259, %s260
      %p271 = scmp.eq.s32.totalorder %s43, 0
      %p272 = por %p270, %p271
      %p273 = scmp.ne.s32.totalorder %s259, %s260
      %p274 = scmp.eq.s32.totalorder %s44, 1
      %p275 = por %p273, %p274
      %p277 = scmp.ne.s32.totalorder %s260, %s276
      %p278 = scmp.eq.s32.totalorder %s44, 0
      %p279 = por %p277, %p278
      %s281 = sadd.s32 %s280, 1
      %p284 = scmp.eq.s32.totalorder %s38, 1
      %p285 = scmp.ne.s32.totalorder %s280, %s282
      %p286 = scmp.eq.s32.totalorder %s38, 0
      %p287 = por %p285, %p286
      %p288 = scmp.ne.s32.totalorder %s280, %s282
      %p289 = scmp.eq.s32.totalorder %s43, 1
      %p290 = por %p288, %p289
      %p291 = scmp.ne.s32.totalorder %s282, %s283
      %p292 = scmp.eq.s32.totalorder %s43, 0
      %p293 = por %p291, %p292
      %p294 = scmp.ne.s32.totalorder %s282, %s283
      %p295 = scmp.eq.s32.totalorder %s44, 1
      %p296 = por %p294, %p295
      %p298 = scmp.ne.s32.totalorder %s283, %s297
      %p299 = scmp.eq.s32.totalorder %s44, 0
      %p300 = por %p298, %p299
      %s302 = sadd.s32 %s301, 1
      %p305 = scmp.eq.s32.totalorder %s38, 1
      %p306 = scmp.ne.s32.totalorder %s301, %s303
      %p307 = scmp.eq.s32.totalorder %s38, 0
      %p308 = por %p306, %p307
      %p309 = scmp.ne.s32.totalorder %s301, %s303
      %p310 = scmp.eq.s32.totalorder %s43, 1
      %p311 = por %p309, %p310
      %p312 = scmp.ne.s32.totalorder %s303, %s304
      %p313 = scmp.eq.s32.totalorder %s43, 0
      %p314 = por %p312, %p313
      %p315 = scmp.ne.s32.totalorder %s303, %s304
      %p316 = scmp.eq.s32.totalorder %s44, 1
      %p317 = por %p315, %p316
      %p319 = scmp.ne.s32.totalorder %s304, %s318
      %p320 = scmp.eq.s32.totalorder %s44, 0
      %p321 = por %p319, %p320
      %s323 = sadd.s32 %s322, 1
      %p326 = scmp.eq.s32.totalorder %s38, 1
      %p327 = scmp.ne.s32.totalorder %s322, %s324
      %p328 = scmp.eq.s32.totalorder %s38, 0
      %p329 = por %p327, %p328
      %p330 = scmp.ne.s32.totalorder %s322, %s324
      %p331 = scmp.eq.s32.totalorder %s43, 1
      %p332 = por %p330, %p331
      %p333 = scmp.ne.s32.totalorder %s324, %s325
      %p334 = scmp.eq.s32.totalorder %s43, 0
      %p335 = por %p333, %p334
      %p336 = scmp.ne.s32.totalorder %s324, %s325
      %p337 = scmp.eq.s32.totalorder %s44, 1
      %p338 = por %p336, %p337
      %p340 = scmp.ne.s32.totalorder %s325, %s339
      %p341 = scmp.eq.s32.totalorder %s44, 0
      %p342 = por %p340, %p341
      %s344 = sadd.s32 %s343, 1
      %p347 = scmp.eq.s32.totalorder %s38, 1
      %p348 = scmp.ne.s32.totalorder %s343, %s345
      %p349 = scmp.eq.s32.totalorder %s38, 0
      %p350 = por %p348, %p349
      %p351 = scmp.ne.s32.totalorder %s343, %s345
      %p352 = scmp.eq.s32.totalorder %s43, 1
      %p353 = por %p351, %p352
      %p354 = scmp.ne.s32.totalorder %s345, %s346
      %p355 = scmp.eq.s32.totalorder %s43, 0
      %p356 = por %p354, %p355
      %p357 = scmp.ne.s32.totalorder %s345, %s346
      %p358 = scmp.eq.s32.totalorder %s44, 1
      %p359 = por %p357, %p358
      %p361 = scmp.ne.s32.totalorder %s346, %s360
      %p362 = scmp.eq.s32.totalorder %s44, 0
      %p363 = por %p361, %p362
      %s365 = sadd.s32 %s364, 1
      %p368 = scmp.eq.s32.totalorder %s38, 1
      %p369 = scmp.ne.s32.totalorder %s364, %s366
      %p370 = scmp.eq.s32.totalorder %s38, 0
      %p371 = por %p369, %p370
      %p372 = scmp.ne.s32.totalorder %s364, %s366
      %p373 = scmp.eq.s32.totalorder %s43, 1
      %p374 = por %p372, %p373
      %p375 = scmp.ne.s32.totalorder %s366, %s367
      %p376 = scmp.eq.s32.totalorder %s43, 0
      %p377 = por %p375, %p376
      %p378 = scmp.ne.s32.totalorder %s366, %s367
      %p379 = scmp.eq.s32.totalorder %s44, 1
      %p380 = por %p378, %p379
      %p382 = scmp.ne.s32.totalorder %s367, %s381
      %p383 = scmp.eq.s32.totalorder %s44, 0
      %p384 = por %p382, %p383
      %s386 = sadd.s32 %s385, 1
      %p389 = scmp.eq.s32.totalorder %s38, 1
      %p390 = scmp.ne.s32.totalorder %s385, %s387
      %p391 = scmp.eq.s32.totalorder %s38, 0
      %p392 = por %p390, %p391
      %p393 = scmp.ne.s32.totalorder %s385, %s387
      %p394 = scmp.eq.s32.totalorder %s43, 1
      %p395 = por %p393, %p394
      %p396 = scmp.ne.s32.totalorder %s387, %s388
      %p397 = scmp.eq.s32.totalorder %s43, 0
      %p398 = por %p396, %p397
      %p399 = scmp.ne.s32.totalorder %s387, %s388
      %p400 = scmp.eq.s32.totalorder %s44, 1
      %p401 = por %p399, %p400
      %p403 = scmp.ne.s32.totalorder %s388, %s402
      %p404 = scmp.eq.s32.totalorder %s44, 0
      %p405 = por %p403, %p404
      %s406 = ssub.s32 %s38, %s45
      %p407 = scmp.eq.s32.totalorder %s406, 0
      %s409 = sadd.s32 %s408, 1
      %s410 = scalar_select %p407, %s408, %s409
      %p413 = pneg %p407
      %p414 = scmp.eq.s32.totalorder %s38, 1
      %p415 = por %p413, %p414
      %p416 = scmp.ne.s32.totalorder %s408, %s411
      %p417 = scmp.eq.s32.totalorder %s38, 0
      %p418 = por %p416, %p417
      %p419 = scmp.ne.s32.totalorder %s408, %s411
      %p420 = scmp.eq.s32.totalorder %s43, 1
      %p421 = por %p419, %p420
      %p422 = scmp.ne.s32.totalorder %s411, %s412
      %p423 = scmp.eq.s32.totalorder %s43, 0
      %p424 = por %p422, %p423
      %p425 = scmp.ne.s32.totalorder %s411, %s412
      %p426 = scmp.eq.s32.totalorder %s44, 1
      %p427 = por %p425, %p426
      %p429 = scmp.ne.s32.totalorder %s412, %s428
      %p430 = scmp.eq.s32.totalorder %s44, 0
      %p431 = por %p429, %p430
      %s432 = ssub.s32 %s38, %s45
      %p433 = scmp.eq.s32.totalorder %s432, 0
      %s435 = sadd.s32 %s434, 1
      %s436 = scalar_select %p433, %s434, %s435
      %p439 = pneg %p433
      %p440 = scmp.eq.s32.totalorder %s38, 1
      %p441 = por %p439, %p440
      %p442 = scmp.ne.s32.totalorder %s434, %s437
      %p443 = scmp.eq.s32.totalorder %s38, 0
      %p444 = por %p442, %p443
      %p445 = scmp.ne.s32.totalorder %s434, %s437
      %p446 = scmp.eq.s32.totalorder %s43, 1
      %p447 = por %p445, %p446
      %p448 = scmp.ne.s32.totalorder %s437, %s438
      %p449 = scmp.eq.s32.totalorder %s43, 0
      %p450 = por %p448, %p449
      %p451 = scmp.ne.s32.totalorder %s437, %s438
      %p452 = scmp.eq.s32.totalorder %s44, 1
      %p453 = por %p451, %p452
      %p455 = scmp.ne.s32.totalorder %s438, %s454
      %p456 = scmp.eq.s32.totalorder %s44, 0
      %p457 = por %p455, %p456
      %s458 = ssub.s32 %s38, %s45
      %p459 = scmp.eq.s32.totalorder %s458, 0
      %s461 = sadd.s32 %s460, 1
      %s462 = scalar_select %p459, %s460, %s461
      %p465 = pneg %p459
      %p466 = scmp.eq.s32.totalorder %s38, 1
      %p467 = por %p465, %p466
      %p468 = scmp.ne.s32.totalorder %s460, %s463
      %p469 = scmp.eq.s32.totalorder %s38, 0
      %p470 = por %p468, %p469
      %p471 = scmp.ne.s32.totalorder %s460, %s463
      %p472 = scmp.eq.s32.totalorder %s43, 1
      %p473 = por %p471, %p472
      %p474 = scmp.ne.s32.totalorder %s463, %s464
      %p475 = scmp.eq.s32.totalorder %s43, 0
      %p476 = por %p474, %p475
      %p477 = scmp.ne.s32.totalorder %s463, %s464
      %p478 = scmp.eq.s32.totalorder %s44, 1
      %p479 = por %p477, %p478
      %p481 = scmp.ne.s32.totalorder %s464, %s480
      %p482 = scmp.eq.s32.totalorder %s44, 0
      %p483 = por %p481, %p482
      %s484 = ssub.s32 %s38, %s45
      %p485 = scmp.eq.s32.totalorder %s484, 0
      %s487 = sadd.s32 %s486, 1
      %s488 = scalar_select %p485, %s486, %s487
      %p491 = pneg %p485
      %p492 = scmp.eq.s32.totalorder %s38, 1
      %p493 = por %p491, %p492
      %p494 = scmp.ne.s32.totalorder %s486, %s489
      %p495 = scmp.eq.s32.totalorder %s38, 0
      %p496 = por %p494, %p495
      %p497 = scmp.ne.s32.totalorder %s486, %s489
      %p498 = scmp.eq.s32.totalorder %s43, 1
      %p499 = por %p497, %p498
      %p500 = scmp.ne.s32.totalorder %s489, %s490
      %p501 = scmp.eq.s32.totalorder %s43, 0
      %p502 = por %p500, %p501
      %p503 = scmp.ne.s32.totalorder %s489, %s490
      %p504 = scmp.eq.s32.totalorder %s44, 1
      %p505 = por %p503, %p504
      %p507 = scmp.ne.s32.totalorder %s490, %s506
      %p508 = scmp.eq.s32.totalorder %s44, 0
      %p509 = por %p507, %p508
      %s510 = ssub.s32 %s38, %s45
      %p511 = scmp.eq.s32.totalorder %s510, 0
      %s513 = sadd.s32 %s512, 1
      %s514 = scalar_select %p511, %s512, %s513
      %p517 = pneg %p511
      %p518 = scmp.eq.s32.totalorder %s38, 1
      %p519 = por %p517, %p518
      %p520 = scmp.ne.s32.totalorder %s512, %s515
      %p521 = scmp.eq.s32.totalorder %s38, 0
      %p522 = por %p520, %p521
      %p523 = scmp.ne.s32.totalorder %s512, %s515
      %p524 = scmp.eq.s32.totalorder %s43, 1
      %p525 = por %p523, %p524
      %p526 = scmp.ne.s32.totalorder %s515, %s516
      %p527 = scmp.eq.s32.totalorder %s43, 0
      %p528 = por %p526, %p527
      %p529 = scmp.ne.s32.totalorder %s515, %s516
      %p530 = scmp.eq.s32.totalorder %s44, 1
      %p531 = por %p529, %p530
      %p533 = scmp.ne.s32.totalorder %s516, %s532
      %p534 = scmp.eq.s32.totalorder %s44, 0
      %p535 = por %p533, %p534
      %s536 = ssub.s32 %s38, %s45
      %p537 = scmp.eq.s32.totalorder %s536, 0
      %s539 = sadd.s32 %s538, 1
      %s540 = scalar_select %p537, %s538, %s539
      %p543 = pneg %p537
      %p544 = scmp.eq.s32.totalorder %s38, 1
      %p545 = por %p543, %p544
      %p546 = scmp.ne.s32.totalorder %s538, %s541
      %p547 = scmp.eq.s32.totalorder %s38, 0
      %p548 = por %p546, %p547
      %p549 = scmp.ne.s32.totalorder %s538, %s541
      %p550 = scmp.eq.s32.totalorder %s43, 1
      %p551 = por %p549, %p550
      %p552 = scmp.ne.s32.totalorder %s541, %s542
      %p553 = scmp.eq.s32.totalorder %s43, 0
      %p554 = por %p552, %p553
      %p555 = scmp.ne.s32.totalorder %s541, %s542
      %p556 = scmp.eq.s32.totalorder %s44, 1
      %p557 = por %p555, %p556
      %p559 = scmp.ne.s32.totalorder %s542, %s558
      %p560 = scmp.eq.s32.totalorder %s44, 0
      %p561 = por %p559, %p560
      %s562 = ssub.s32 %s38, %s45
      %p563 = scmp.eq.s32.totalorder %s562, 0
      %s565 = sadd.s32 %s564, 1
      %s566 = scalar_select %p563, %s564, %s565
      %p569 = pneg %p563
      %p570 = scmp.eq.s32.totalorder %s38, 1
      %p571 = por %p569, %p570
      %p572 = scmp.ne.s32.totalorder %s564, %s567
      %p573 = scmp.eq.s32.totalorder %s38, 0
      %p574 = por %p572, %p573
      %p575 = scmp.ne.s32.totalorder %s564, %s567
      %p576 = scmp.eq.s32.totalorder %s43, 1
      %p577 = por %p575, %p576
      %p578 = scmp.ne.s32.totalorder %s567, %s568
      %p579 = scmp.eq.s32.totalorder %s43, 0
      %p580 = por %p578, %p579
      %p581 = scmp.ne.s32.totalorder %s567, %s568
      %p582 = scmp.eq.s32.totalorder %s44, 1
      %p583 = por %p581, %p582
      %p585 = scmp.ne.s32.totalorder %s568, %s584
      %p586 = scmp.eq.s32.totalorder %s44, 0
      %p587 = por %p585, %p586
      %p588 = scmp.le.s32.totalorder 1, %s38
      %p589 = scmp.lt.s32.totalorder %s38, 3
      %p590 = pnand %p588, %p589
      %p591 = pneg %p590
      // Predicated region
      $region9: #{mimo_gin_forward.1} parent=5 // pred_check
        _
      $region10: #{mimo_gin_forward.1} parent=5 // pred_check_branch
        %593 = sbr.rel (%p590) target = $region12
      $region11: #{mimo_gin_forward.1} parent=5 // pred_region
        %s594 = ssub.s32 %s38, 1
        // Predicated region
        $region13: #{mimo_gin_forward.1} parent=11 // pred_check
          %p595 = pneg %p293
        $region14: #{mimo_gin_forward.1} parent=11 // pred_check_branch
          %597 = sbr.rel (%p595) target = $region16
        $region15: #{mimo_gin_forward.1} parent=11 // pred_region
          _
        $region16: #{mimo_gin_forward.1} parent=11 // pred_fallthru
          _
        // Predicated region
        $region17: #{mimo_gin_forward.1} parent=11 // pred_check
          %p598 = pneg %p314
        $region18: #{mimo_gin_forward.1} parent=11 // pred_check_branch
          %600 = sbr.rel (%p598) target = $region20
        $region19: #{mimo_gin_forward.1} parent=11 // pred_region
          _
        $region20: #{mimo_gin_forward.1} parent=11 // pred_fallthru
          _
        // Predicated region
        $region21: #{mimo_gin_forward.1} parent=11 // pred_check
          %p601 = pneg %p335
        $region22: #{mimo_gin_forward.1} parent=11 // pred_check_branch
          %603 = sbr.rel (%p601) target = $region24
        $region23: #{mimo_gin_forward.1} parent=11 // pred_region
          %s605 = ssub.s32 2048, 2048
          %606 = vsyncadd [#allocation3], %s605
          %s607 = sshll.u32 [#allocation2], 4
          %s608 = int_to_ptr.vmem [resolvable:$true] %s607
          %613 = dma.hbm_to_vmem [thread:$0]  %s11, 2048, %s608, [#allocation3], 64, 64, 4
        $region24: #{mimo_gin_forward.1} parent=11 // pred_fallthru
          _
        // Predicated region
        $region25: #{mimo_gin_forward.1} parent=11 // pred_check
          %p614 = pneg %p356
        $region26: #{mimo_gin_forward.1} parent=11 // pred_check_branch
          %616 = sbr.rel (%p614) target = $region28
        $region27: #{mimo_gin_forward.1} parent=11 // pred_region
          _
        $region28: #{mimo_gin_forward.1} parent=11 // pred_fallthru
          _
        // Predicated region
        $region29: #{mimo_gin_forward.1} parent=11 // pred_check
          %p617 = pneg %p377
        $region30: #{mimo_gin_forward.1} parent=11 // pred_check_branch
          %619 = sbr.rel (%p617) target = $region32
        $region31: #{mimo_gin_forward.1} parent=11 // pred_region
          _
        $region32: #{mimo_gin_forward.1} parent=11 // pred_fallthru
          _
        // Predicated region
        $region33: #{mimo_gin_forward.1} parent=11 // pred_check
          %p620 = pneg %p398
        $region34: #{mimo_gin_forward.1} parent=11 // pred_check_branch
          %622 = sbr.rel (%p620) target = $region36
        $region35: #{mimo_gin_forward.1} parent=11 // pred_region
          _
        $region36: #{mimo_gin_forward.1} parent=11 // pred_fallthru
          _
      $region12: #{mimo_gin_forward.1} parent=5 // pred_fallthru
        _
      %p623 = scmp.lt.s32.totalorder %s38, 2
      // Predicated region
      $region37: #{mimo_gin_forward.1} parent=5 // pred_check
        %p624 = pneg %p623
      $region38: #{mimo_gin_forward.1} parent=5 // pred_check_branch
        %626 = sbr.rel (%p624) target = $region40
      $region39: #{mimo_gin_forward.1} parent=5 // pred_region
        // Predicated region
        $region41: #{mimo_gin_forward.1} parent=39 // pred_check
          %p627 = pneg %p58
        $region42: #{mimo_gin_forward.1} parent=39 // pred_check_branch
          %629 = sbr.rel (%p627) target = $region44
        $region43: #{mimo_gin_forward.1} parent=39 // pred_region
          %p630 = scmp.lt.s32.totalorder %s38, 1
          %s631 = scalar_select %p630, %s38, 1
          %s632 = smul.addr %s631, 16
          %s633 = smul.addr %s632, 4
          %s634 = scalar_lea.vmem %s0, %s633
        $region44: #{mimo_gin_forward.1} parent=39 // pred_fallthru
          _
        // Predicated region
        $region45: #{mimo_gin_forward.1} parent=39 // pred_check
          %p635 = pneg %p84
        $region46: #{mimo_gin_forward.1} parent=39 // pred_check_branch
          %637 = sbr.rel (%p635) target = $region48
        $region47: #{mimo_gin_forward.1} parent=39 // pred_region
          %p638 = scmp.lt.s32.totalorder %s38, 1
          %s639 = scalar_select %p638, %s38, 1
          %s640 = smul.addr %s639, 16
          %s641 = smul.addr %s640, 4
          %s642 = scalar_lea.vmem %s1, %s641
        $region48: #{mimo_gin_forward.1} parent=39 // pred_fallthru
          _
        // Predicated region
        $region49: #{mimo_gin_forward.1} parent=39 // pred_check
          %p643 = pneg %p110
        $region50: #{mimo_gin_forward.1} parent=39 // pred_check_branch
          %645 = sbr.rel (%p643) target = $region52
        $region51: #{mimo_gin_forward.1} parent=39 // pred_region
          %p646 = scmp.lt.s32.totalorder %s38, 1
          %s647 = scalar_select %p646, %s38, 1
          %s648 = smul.addr %s647, 2
          %s649 = scalar_lea.vmem %s2, %s648
        $region52: #{mimo_gin_forward.1} parent=39 // pred_fallthru
          _
        // Predicated region
        $region53: #{mimo_gin_forward.1} parent=39 // pred_check
          %p650 = pneg %p136
        $region54: #{mimo_gin_forward.1} parent=39 // pred_check_branch
          %652 = sbr.rel (%p650) target = $region56
        $region55: #{mimo_gin_forward.1} parent=39 // pred_region
          %p653 = scmp.lt.s32.totalorder %s38, 1
          %s654 = scalar_select %p653, %s38, 1
          %s655 = smul.addr %s654, 16
          %s656 = smul.addr %s655, 4
          %s657 = scalar_lea.vmem %s3, %s656
        $region56: #{mimo_gin_forward.1} parent=39 // pred_fallthru
          _
        // Predicated region
        $region57: #{mimo_gin_forward.1} parent=39 // pred_check
          %p658 = pneg %p162
        $region58: #{mimo_gin_forward.1} parent=39 // pred_check_branch
          %660 = sbr.rel (%p658) target = $region60
        $region59: #{mimo_gin_forward.1} parent=39 // pred_region
          %p661 = scmp.lt.s32.totalorder %s38, 1
          %s662 = scalar_select %p661, %s38, 1
          %s663 = scalar_lea.vmem %s4, %s662
        $region60: #{mimo_gin_forward.1} parent=39 // pred_fallthru
          _
        // Predicated region
        $region61: #{mimo_gin_forward.1} parent=39 // pred_check
          %p664 = pneg %p188
        $region62: #{mimo_gin_forward.1} parent=39 // pred_check_branch
          %666 = sbr.rel (%p664) target = $region64
        $region63: #{mimo_gin_forward.1} parent=39 // pred_region
          %p667 = scmp.lt.s32.totalorder %s38, 1
          %s668 = scalar_select %p667, %s38, 1
          %s669 = smul.addr %s668, 16
          %s670 = smul.addr %s669, 4
          %s671 = scalar_lea.vmem %s5, %s670
        $region64: #{mimo_gin_forward.1} parent=39 // pred_fallthru
          _
        // Predicated region
        $region65: #{mimo_gin_forward.1} parent=39 // pred_check
          %p672 = pneg %p214
        $region66: #{mimo_gin_forward.1} parent=39 // pred_check_branch
          %674 = sbr.rel (%p672) target = $region68
        $region67: #{mimo_gin_forward.1} parent=39 // pred_region
          %p675 = scmp.lt.s32.totalorder %s38, 1
          %s676 = scalar_select %p675, %s38, 1
          %s677 = scalar_lea.vmem %s6, %s676
        $region68: #{mimo_gin_forward.1} parent=39 // pred_fallthru
          _
        // Predicated region
        $region69: #{mimo_gin_forward.1} parent=39 // pred_check
          %p678 = pneg %p240
        $region70: #{mimo_gin_forward.1} parent=39 // pred_check_branch
          %680 = sbr.rel (%p678) target = $region72
        $region71: #{mimo_gin_forward.1} parent=39 // pred_region
          %p681 = scmp.lt.s32.totalorder %s38, 1
          %s682 = scalar_select %p681, %s38, 1
          %s683 = scalar_lea.vmem %s7, %s682
        $region72: #{mimo_gin_forward.1} parent=39 // pred_fallthru
          _
        // Predicated region
        $region73: #{mimo_gin_forward.1} parent=39 // pred_check
          %p684 = pneg %p266
        $region74: #{mimo_gin_forward.1} parent=39 // pred_check_branch
          %686 = sbr.rel (%p684) target = $region76
        $region75: #{mimo_gin_forward.1} parent=39 // pred_region
          %p687 = scmp.lt.s32.totalorder %s38, 1
          %s688 = scalar_select %p687, %s38, 1
          %s689 = scalar_lea.vmem %s8, %s688
        $region76: #{mimo_gin_forward.1} parent=39 // pred_fallthru
          _
        // Predicated region
        $region77: #{mimo_gin_forward.1} parent=39 // pred_check
          %p690 = pneg %p418
        $region78: #{mimo_gin_forward.1} parent=39 // pred_check_branch
          %692 = sbr.rel (%p690) target = $region80
        $region79: #{mimo_gin_forward.1} parent=39 // pred_region
          %s693 = sand.u32 %s38, 1
          %s694 = scalar_lea.sflag [#allocation6], %s693
          %s695 = sand.u32 %s408, 1
          %s696 = smul.addr %s695, 64
          %s697 = scalar_lea.vmem [#allocation5], %s696
          %s699 = ssub.s32 1024, 1024
          %700 = vsyncadd %s694, %s699
          %s701 = smul.addr %s38, 16
          %s702 = smul.addr %s701, 64
          %s703 = scalar_lea.hbm %s15, %s702
          %s704 = sshll.u32 %s697, 4
          %s705 = int_to_ptr.vmem [resolvable:$true] %s704
          %710 = dma.hbm_to_vmem [thread:$0]  %s703, 1024, %s705, %s694, 64, 64, 4
        $region80: #{mimo_gin_forward.1} parent=39 // pred_fallthru
          _
        // Predicated region
        $region81: #{mimo_gin_forward.1} parent=39 // pred_check
          %p711 = pneg %p444
        $region82: #{mimo_gin_forward.1} parent=39 // pred_check_branch
          %713 = sbr.rel (%p711) target = $region84
        $region83: #{mimo_gin_forward.1} parent=39 // pred_region
          %p714 = scmp.lt.s32.totalorder %s38, 1
          %s715 = scalar_select %p714, %s38, 1
          %s716 = scalar_lea.vmem %s16, %s715
        $region84: #{mimo_gin_forward.1} parent=39 // pred_fallthru
          _
        // Predicated region
        $region85: #{mimo_gin_forward.1} parent=39 // pred_check
          %p717 = pneg %p470
        $region86: #{mimo_gin_forward.1} parent=39 // pred_check_branch
          %719 = sbr.rel (%p717) target = $region88
        $region87: #{mimo_gin_forward.1} parent=39 // pred_region
          %s720 = sand.u32 %s38, 1
          %s721 = scalar_lea.sflag [#allocation6], %s720
          %s722 = sand.u32 %s460, 1
          %s723 = smul.addr %s722, 64
          %s724 = scalar_lea.vmem [#allocation7], %s723
          %s726 = ssub.s32 1024, 1024
          %727 = vsyncadd %s721, %s726
          %s728 = smul.addr %s38, 16
          %s729 = smul.addr %s728, 64
          %s730 = scalar_lea.hbm %s17, %s729
          %s731 = sshll.u32 %s724, 4
          %s732 = int_to_ptr.vmem [resolvable:$true] %s731
          %737 = dma.hbm_to_vmem [thread:$0]  %s730, 1024, %s732, %s721, 64, 64, 4
        $region88: #{mimo_gin_forward.1} parent=39 // pred_fallthru
          _
        // Predicated region
        $region89: #{mimo_gin_forward.1} parent=39 // pred_check
          %p738 = pneg %p496
        $region90: #{mimo_gin_forward.1} parent=39 // pred_check_branch
          %740 = sbr.rel (%p738) target = $region92
        $region91: #{mimo_gin_forward.1} parent=39 // pred_region
          %p741 = scmp.lt.s32.totalorder %s38, 1
          %s742 = scalar_select %p741, %s38, 1
          %s743 = scalar_lea.vmem %s18, %s742
        $region92: #{mimo_gin_forward.1} parent=39 // pred_fallthru
          _
      $region40: #{mimo_gin_forward.1} parent=5 // pred_fallthru
        _
      %p744 = scmp.le.s32.totalorder 1, %s38
      %p745 = scmp.lt.s32.totalorder %s38, 3
      %p746 = pnand %p744, %p745
      %p747 = pneg %p746
      // Predicated region
      $region93: #{mimo_gin_forward.1} parent=5 // pred_check
        _
      $region94: #{mimo_gin_forward.1} parent=5 // pred_check_branch
        %749 = sbr.rel (%p746) target = $region96
      $region95: #{mimo_gin_forward.1} parent=5 // pred_region
        %s750 = ssub.s32 %s38, 1
        // Predicated region
        $region97: #{mimo_gin_forward.1} parent=95 // pred_check
          %p751 = pneg %p335
        $region98: #{mimo_gin_forward.1} parent=95 // pred_check_branch
          %753 = sbr.rel (%p751) target = $region100
        $region99: #{mimo_gin_forward.1} parent=95 // pred_region
          %754 = dma.done [#allocation3], 2048
        $region100: #{mimo_gin_forward.1} parent=95 // pred_fallthru
          _
        %s755 = sand.u32 %s43, 1
        %s756 = scalar_lea.sflag [#allocation6], %s755
        %s757 = sand.u32 %s411, 1
        %s758 = smul.addr %s757, 64
        %s759 = scalar_lea.vmem [#allocation5], %s758
        // Predicated region
        $region101: #{mimo_gin_forward.1} parent=95 // pred_check
          %p760 = pneg %p424
        $region102: #{mimo_gin_forward.1} parent=95 // pred_check_branch
          %762 = sbr.rel (%p760) target = $region104
        $region103: #{mimo_gin_forward.1} parent=95 // pred_region
          %763 = dma.done %s756, 1024
        $region104: #{mimo_gin_forward.1} parent=95 // pred_fallthru
          _
        %s764 = sand.u32 %s43, 1
        %s765 = scalar_lea.sflag [#allocation6], %s764
        %s766 = sand.u32 %s463, 1
        %s767 = smul.addr %s766, 64
        %s768 = scalar_lea.vmem [#allocation7], %s767
        // Predicated region
        $region105: #{mimo_gin_forward.1} parent=95 // pred_check
          %p769 = pneg %p476
        $region106: #{mimo_gin_forward.1} parent=95 // pred_check_branch
          %771 = sbr.rel (%p769) target = $region108
        $region107: #{mimo_gin_forward.1} parent=95 // pred_region
          %772 = dma.done %s765, 1024
        $region108: #{mimo_gin_forward.1} parent=95 // pred_fallthru
          _
        %p773 = scmp.lt.s32.totalorder %s43, 1
        %s774 = scalar_select %p773, %s43, 1
        %s775 = smul.addr %s774, 16
        %s776 = smul.addr %s775, 4
        %s777 = scalar_lea.vmem %s0, %s776
        %p778 = pneg %p64
        %p779 = pneg %p61
        %p780 = scmp.lt.s32.totalorder %s43, 1
        %s781 = scalar_select %p780, %s43, 1
        %s782 = smul.addr %s781, 16
        %s783 = smul.addr %s782, 4
        %s784 = scalar_lea.vmem %s1, %s783
        %p785 = pneg %p90
        %p786 = pneg %p87
        %p787 = scmp.lt.s32.totalorder %s43, 1
        %s788 = scalar_select %p787, %s43, 1
        %s789 = smul.addr %s788, 2
        %s790 = scalar_lea.vmem %s2, %s789
        %p791 = pneg %p116
        %p792 = pneg %p113
        %p793 = scmp.lt.s32.totalorder %s43, 1
        %s794 = scalar_select %p793, %s43, 1
        %s795 = smul.addr %s794, 16
        %s796 = smul.addr %s795, 4
        %s797 = scalar_lea.vmem %s3, %s796
        %p798 = pneg %p142
        %p799 = pneg %p139
        %p800 = scmp.lt.s32.totalorder %s43, 1
        %s801 = scalar_select %p800, %s43, 1
        %s802 = scalar_lea.vmem %s4, %s801
        %p803 = pneg %p168
        %p804 = pneg %p165
        %p805 = scmp.lt.s32.totalorder %s43, 1
        %s806 = scalar_select %p805, %s43, 1
        %s807 = smul.addr %s806, 16
        %s808 = smul.addr %s807, 4
        %s809 = scalar_lea.vmem %s5, %s808
        %p810 = pneg %p194
        %p811 = pneg %p191
        %p812 = scmp.lt.s32.totalorder %s43, 1
        %s813 = scalar_select %p812, %s43, 1
        %s814 = scalar_lea.vmem %s6, %s813
        %p815 = pneg %p220
        %p816 = pneg %p217
        %p817 = scmp.lt.s32.totalorder %s43, 1
        %s818 = scalar_select %p817, %s43, 1
        %s819 = scalar_lea.vmem %s7, %s818
        %p820 = pneg %p246
        %p821 = pneg %p243
        %p822 = scmp.lt.s32.totalorder %s43, 1
        %s823 = scalar_select %p822, %s43, 1
        %s824 = scalar_lea.vmem %s8, %s823
        %p825 = pneg %p272
        %p826 = pneg %p269
        %p827 = pneg %p293
        %p828 = pneg %p290
        %p829 = pneg %p314
        %p830 = pneg %p311
        %p831 = pneg %p335
        %p832 = pneg %p332
        %p833 = pneg %p356
        %p834 = pneg %p353
        %p835 = pneg %p377
        %p836 = pneg %p374
        %p837 = pneg %p398
        %p838 = pneg %p395
        %s839 = sand.u32 %s43, 1
        %s840 = scalar_lea.sflag [#allocation6], %s839
        %s841 = sand.u32 %s411, 1
        %s842 = smul.addr %s841, 64
        %s843 = scalar_lea.vmem [#allocation5], %s842
        %p844 = pneg %p424
        %p845 = pneg %p421
        %p846 = scmp.lt.s32.totalorder %s43, 1
        %s847 = scalar_select %p846, %s43, 1
        %s848 = scalar_lea.vmem %s16, %s847
        %p849 = pneg %p450
        %p850 = pneg %p447
        %s851 = sand.u32 %s43, 1
        %s852 = scalar_lea.sflag [#allocation6], %s851
        %s853 = sand.u32 %s463, 1
        %s854 = smul.addr %s853, 64
        %s855 = scalar_lea.vmem [#allocation7], %s854
        %p856 = pneg %p476
        %p857 = pneg %p473
        %p858 = scmp.lt.s32.totalorder %s43, 1
        %s859 = scalar_select %p858, %s43, 1
        %s860 = scalar_lea.vmem %s18, %s859
        %p861 = pneg %p502
        %p862 = pneg %p499
        %p863 = pneg %p528
        %p864 = pneg %p525
        %p865 = scmp.lt.s32.totalorder %s43, 1
        %s866 = scalar_select %p865, %s43, 1
        %s867 = smul.addr %s866, 48
        %s868 = smul.addr %s867, 4
        %s869 = scalar_lea.vmem %s19, %s868
        %p870 = pneg %p554
        %p871 = pneg %p551
        %s872 = sand.u32 %s541, 1
        %s873 = scalar_lea.sflag [#allocation4], %s872
        %s874 = sand.u32 %s541, 1
        %s875 = smul.addr %s874, 2
        %s876 = scalar_lea.vmem [#allocation8], %s875
        %p877 = pneg %p580
        %p878 = pneg %p577
        %s879 = sand.u32 %s567, 1
        %s880 = scalar_lea.sflag [#allocation10], %s879
        %s881 = sand.u32 %s567, 1
        %s882 = smul.addr %s881, 2
        %s883 = scalar_lea.vmem [#allocation9], %s882
        %p884 = scmp.lt.s32.totalorder %s43, 1
        %s885 = scalar_select %p884, %s43, 1
        %s886 = smul.addr %s885, 16
        %s887 = smul.addr %s886, 4
        %s888 = scalar_lea.vmem %s0, %s887
        %p889 = scmp.lt.s32.totalorder %s43, 1
        %s890 = scalar_select %p889, %s43, 1
        %s891 = smul.addr %s890, 16
        %s892 = smul.addr %s891, 4
        %s893 = scalar_lea.vmem %s1, %s892
        %p894 = scmp.lt.s32.totalorder %s43, 1
        %s895 = scalar_select %p894, %s43, 1
        %s896 = smul.addr %s895, 2
        %s897 = scalar_lea.vmem %s2, %s896
        %p898 = scmp.lt.s32.totalorder %s43, 1
        %s899 = scalar_select %p898, %s43, 1
        %s900 = smul.addr %s899, 16
        %s901 = smul.addr %s900, 4
        %s902 = scalar_lea.vmem %s3, %s901
        %p903 = scmp.lt.s32.totalorder %s43, 1
        %s904 = scalar_select %p903, %s43, 1
        %s905 = scalar_lea.vmem %s4, %s904
        %p906 = scmp.lt.s32.totalorder %s43, 1
        %s907 = scalar_select %p906, %s43, 1
        %s908 = smul.addr %s907, 16
        %s909 = smul.addr %s908, 4
        %s910 = scalar_lea.vmem %s5, %s909
        %p911 = scmp.lt.s32.totalorder %s43, 1
        %s912 = scalar_select %p911, %s43, 1
        %s913 = scalar_lea.vmem %s6, %s912
        %p914 = scmp.lt.s32.totalorder %s43, 1
        %s915 = scalar_select %p914, %s43, 1
        %s916 = scalar_lea.vmem %s7, %s915
        %p917 = scmp.lt.s32.totalorder %s43, 1
        %s918 = scalar_select %p917, %s43, 1
        %s919 = scalar_lea.vmem %s8, %s918
        %p920 = scmp.lt.s32.totalorder %s43, 1
        %s921 = scalar_select %p920, %s43, 1
        %s922 = scalar_lea.vmem %s16, %s921
        %p923 = scmp.lt.s32.totalorder %s43, 1
        %s924 = scalar_select %p923, %s43, 1
        %s925 = scalar_lea.vmem %s18, %s924
        %p926 = scmp.lt.s32.totalorder %s43, 1
        %s927 = scalar_select %p926, %s43, 1
        %s928 = smul.addr %s927, 48
        %s929 = smul.addr %s928, 4
        %s930 = scalar_lea.vmem %s19, %s929
        %v932 = vld [vmem:[%s888] sm:$0xf]
        %v933 = vld [vmem:[%s888 + $0x4] sm:$0xf]
        %v934 = vld [vmem:[%s888 + $0x8] sm:$0xf]
        %v935 = vld [vmem:[%s888 + $0xc] sm:$0xf]
        %v936 = vld [vmem:[%s888 + $0x10] sm:$0xf]
        %v937 = vld [vmem:[%s888 + $0x14] sm:$0xf]
        %v938 = vld [vmem:[%s888 + $0x18] sm:$0xf]
        %v939 = vld [vmem:[%s888 + $0x1c] sm:$0xf]
        %v940 = vld [vmem:[%s888 + $0x20] sm:$0xf]
        %v941 = vld [vmem:[%s888 + $0x24] sm:$0xf]
        %v942 = vld [vmem:[%s888 + $0x28] sm:$0xf]
        %v943 = vld [vmem:[%s888 + $0x2c] sm:$0xf]
        %v944 = vld [vmem:[%s888 + $0x30] sm:$0xf]
        %v945 = vld [vmem:[%s888 + $0x34] sm:$0xf]
        %v946 = vld [vmem:[%s888 + $0x38] sm:$0xf]
        %v947 = vld [vmem:[%s888 + $0x3c] sm:$0xf]
        %v948 = vld [vmem:[%s893] sm:$0xf]
        %v949 = vld [vmem:[%s893 + $0x4] sm:$0xf]
        %v950 = vld [vmem:[%s893 + $0x8] sm:$0xf]
        %v951 = vld [vmem:[%s893 + $0xc] sm:$0xf]
        %v952 = vld [vmem:[%s893 + $0x10] sm:$0xf]
        %v953 = vld [vmem:[%s893 + $0x14] sm:$0xf]
        %v954 = vld [vmem:[%s893 + $0x18] sm:$0xf]
        %v955 = vld [vmem:[%s893 + $0x1c] sm:$0xf]
        %v956 = vld [vmem:[%s893 + $0x20] sm:$0xf]
        %v957 = vld [vmem:[%s893 + $0x24] sm:$0xf]
        %v958 = vld [vmem:[%s893 + $0x28] sm:$0xf]
        %v959 = vld [vmem:[%s893 + $0x2c] sm:$0xf]
        %v960 = vld [vmem:[%s893 + $0x30] sm:$0xf]
        %v961 = vld [vmem:[%s893 + $0x34] sm:$0xf]
        %v962 = vld [vmem:[%s893 + $0x38] sm:$0xf]
        %v963 = vld [vmem:[%s893 + $0x3c] sm:$0xf]
        %v964 = vld [vmem:[%s902] sm:$0xf]
        %v965 = vld [vmem:[%s902 + $0x4] sm:$0xf]
        %v966 = vld [vmem:[%s902 + $0x8] sm:$0xf]
        %v967 = vld [vmem:[%s902 + $0xc] sm:$0xf]
        %v968 = vld [vmem:[%s902 + $0x10] sm:$0xf]
        %v969 = vld [vmem:[%s902 + $0x14] sm:$0xf]
        %v970 = vld [vmem:[%s902 + $0x18] sm:$0xf]
        %v971 = vld [vmem:[%s902 + $0x1c] sm:$0xf]
        %v972 = vld [vmem:[%s902 + $0x20] sm:$0xf]
        %v973 = vld [vmem:[%s902 + $0x24] sm:$0xf]
        %v974 = vld [vmem:[%s902 + $0x28] sm:$0xf]
        %v975 = vld [vmem:[%s902 + $0x2c] sm:$0xf]
        %v976 = vld [vmem:[%s902 + $0x30] sm:$0xf]
        %v977 = vld [vmem:[%s902 + $0x34] sm:$0xf]
        %v978 = vld [vmem:[%s902 + $0x38] sm:$0xf]
        %v979 = vld [vmem:[%s902 + $0x3c] sm:$0xf]
        %v980 = vld [vmem:[%s905] sm:$0x1]
        %v981 = vld [vmem:[%s910] sm:$0xf]
        %v982 = vld [vmem:[%s910 + $0x4] sm:$0xf]
        %v983 = vld [vmem:[%s910 + $0x8] sm:$0xf]
        %v984 = vld [vmem:[%s910 + $0xc] sm:$0xf]
        %v985 = vld [vmem:[%s910 + $0x10] sm:$0xf]
        %v986 = vld [vmem:[%s910 + $0x14] sm:$0xf]
        %v987 = vld [vmem:[%s910 + $0x18] sm:$0xf]
        %v988 = vld [vmem:[%s910 + $0x1c] sm:$0xf]
        %v989 = vld [vmem:[%s910 + $0x20] sm:$0xf]
        %v990 = vld [vmem:[%s910 + $0x24] sm:$0xf]
        %v991 = vld [vmem:[%s910 + $0x28] sm:$0xf]
        %v992 = vld [vmem:[%s910 + $0x2c] sm:$0xf]
        %v993 = vld [vmem:[%s910 + $0x30] sm:$0xf]
        %v994 = vld [vmem:[%s910 + $0x34] sm:$0xf]
        %v995 = vld [vmem:[%s910 + $0x38] sm:$0xf]
        %v996 = vld [vmem:[%s910 + $0x3c] sm:$0xf]
        %v997 = vld [vmem:[%s913] sm:$0x1]
        %v998 = vld [vmem:[%s916] sm:$0x1]
        %v999 = vld [vmem:[%s919] sm:$0x1]
        %v1016 = vunpack.c.l.b16 %v932
        %v1017 = vunpack.c.l.b16 %v933
        %v1018 = vunpack.c.l.b16 %v934
        %v1019 = vunpack.c.l.b16 %v935
        %v1020 = vunpack.c.l.b16 %v936
        %v1021 = vunpack.c.l.b16 %v937
        %v1022 = vunpack.c.l.b16 %v938
        %v1023 = vunpack.c.l.b16 %v939
        %v1024 = vunpack.c.l.b16 %v940
        %v1025 = vunpack.c.l.b16 %v941
        %v1026 = vunpack.c.l.b16 %v942
        %v1027 = vunpack.c.l.b16 %v943
        %v1028 = vunpack.c.l.b16 %v944
        %v1029 = vunpack.c.l.b16 %v945
        %v1030 = vunpack.c.l.b16 %v946
        %v1031 = vunpack.c.l.b16 %v947
        %v1032 = vpack.c.b16 %v1017, %v1016
        %v1033 = vpack.c.b16 %v1019, %v1018
        %v1034 = vpack.c.b16 %v1021, %v1020
        %v1035 = vpack.c.b16 %v1023, %v1022
        %v1036 = vpack.c.b16 %v1025, %v1024
        %v1037 = vpack.c.b16 %v1027, %v1026
        %v1038 = vpack.c.b16 %v1029, %v1028
        %v1039 = vpack.c.b16 %v1031, %v1030
        %v1064 = vunpack.c.l.b16 %v948
        %v1065 = vunpack.c.l.b16 %v949
        %v1066 = vunpack.c.l.b16 %v950
        %v1067 = vunpack.c.l.b16 %v951
        %v1068 = vunpack.c.l.b16 %v952
        %v1069 = vunpack.c.l.b16 %v953
        %v1070 = vunpack.c.l.b16 %v954
        %v1071 = vunpack.c.l.b16 %v955
        %v1072 = vunpack.c.l.b16 %v956
        %v1073 = vunpack.c.l.b16 %v957
        %v1074 = vunpack.c.l.b16 %v958
        %v1075 = vunpack.c.l.b16 %v959
        %v1076 = vunpack.c.l.b16 %v960
        %v1077 = vunpack.c.l.b16 %v961
        %v1078 = vunpack.c.l.b16 %v962
        %v1079 = vunpack.c.l.b16 %v963
        %v1080 = vpack.c.b16 %v1065, %v1064
        %v1081 = vpack.c.b16 %v1067, %v1066
        %v1082 = vpack.c.b16 %v1069, %v1068
        %v1083 = vpack.c.b16 %v1071, %v1070
        %v1084 = vpack.c.b16 %v1073, %v1072
        %v1085 = vpack.c.b16 %v1075, %v1074
        %v1086 = vpack.c.b16 %v1077, %v1076
        %v1087 = vpack.c.b16 %v1079, %v1078
        %1096 = vmatprep.subr.bf16.mxu0 0
        %1097 = vmatpush1.bf16.msra.mxu0 %v1080
        %1098 = vmatprep.subr.bf16.mxu0 0
        %1099 = vmatpush1.bf16.msra.mxu0 %v1081
        %1100 = vmatprep.subr.bf16.mxu0 0
        %1101 = vmatpush1.bf16.msra.mxu0 %v1082
        %1102 = vmatprep.subr.bf16.mxu0 0
        %1103 = vmatpush1.bf16.msra.mxu0 %v1083
        %1104 = vmatprep.subr.bf16.mxu0 0
        %1105 = vmatpush1.bf16.msra.mxu0 %v1084
        %1106 = vmatprep.subr.bf16.mxu0 0
        %1107 = vmatpush1.bf16.msra.mxu0 %v1085
        %1108 = vmatprep.subr.bf16.mxu0 0
        %1109 = vmatpush1.bf16.msra.mxu0 %v1086
        %1110 = vmatprep.subr.bf16.mxu0 0
        %1111 = vmatpush1.bf16.msra.mxu0 %v1087
        %1112 = vmatprep.subr.bf16.mxu0 0
        %1113 = vmatpush1.bf16.msra.mxu0 0
        %1114 = vmatprep.subr.bf16.mxu0 0
        %1115 = vmatpush1.bf16.msra.mxu0 0
        %1116 = vmatprep.subr.bf16.mxu0 0
        %1117 = vmatpush1.bf16.msra.mxu0 0
        %1118 = vmatprep.subr.bf16.mxu0 0
        %1119 = vmatpush1.bf16.msra.mxu0 0
        %1120 = vmatprep.subr.bf16.mxu0 0
        %1121 = vmatpush1.bf16.msra.mxu0 0
        %1122 = vmatprep.subr.bf16.mxu0 0
        %1123 = vmatpush1.bf16.msra.mxu0 0
        %1124 = vmatprep.subr.bf16.mxu0 0
        %1125 = vmatpush1.bf16.msra.mxu0 0
        %1126 = vmatprep.subr.bf16.mxu0 0
        %1127 = vmatpush1.bf16.msra.mxu0 0
        %1128 = vmatprep.mubr.bf16.mxu0 0
        %1129 = vmatmul.mubr.bf16.gmra.mrb[0].mxu0 %v1032
        %v1130 = vpop.f32.mrb[0].mxu0
        %v1131 = vadd.f32 0.0, %v1130
        %v1132 = vpop.f32.mrb[0].mxu0
        %v1133 = vpop.f32.mrb[0].mxu0
        %v1134 = vadd.f32 0.0, %v1133
        %v1135 = vpop.f32.mrb[0].mxu0
        %1136 = vmatprep.mubr.bf16.mxu0 0
        %1137 = vmatmul.mubr.bf16.gmra.mrb[0].mxu0 %v1033
        %v1138 = vpop.f32.mrb[0].mxu0
        %v1139 = vadd.f32 0.0, %v1138
        %v1140 = vpop.f32.mrb[0].mxu0
        %v1141 = vpop.f32.mrb[0].mxu0
        %v1142 = vadd.f32 0.0, %v1141
        %v1143 = vpop.f32.mrb[0].mxu0
        %1144 = vmatprep.mubr.bf16.mxu0 0
        %1145 = vmatmul.mubr.bf16.gmra.mrb[0].mxu0 %v1034
        %v1146 = vpop.f32.mrb[0].mxu0
        %v1147 = vadd.f32 0.0, %v1146
        %v1148 = vpop.f32.mrb[0].mxu0
        %v1149 = vpop.f32.mrb[0].mxu0
        %v1150 = vadd.f32 0.0, %v1149
        %v1151 = vpop.f32.mrb[0].mxu0
        %1152 = vmatprep.mubr.bf16.mxu0 0
        %1153 = vmatmul.mubr.bf16.gmra.mrb[0].mxu0 %v1035
        %v1154 = vpop.f32.mrb[0].mxu0
        %v1155 = vadd.f32 0.0, %v1154
        %v1156 = vpop.f32.mrb[0].mxu0
        %v1157 = vpop.f32.mrb[0].mxu0
        %v1158 = vadd.f32 0.0, %v1157
        %v1159 = vpop.f32.mrb[0].mxu0
        %1160 = vmatprep.mubr.bf16.mxu0 0
        %1161 = vmatmul.mubr.bf16.gmra.mrb[0].mxu0 %v1036
        %v1162 = vpop.f32.mrb[0].mxu0
        %v1163 = vadd.f32 0.0, %v1162
        %v1164 = vpop.f32.mrb[0].mxu0
        %v1165 = vpop.f32.mrb[0].mxu0
        %v1166 = vadd.f32 0.0, %v1165
        %v1167 = vpop.f32.mrb[0].mxu0
        %1168 = vmatprep.mubr.bf16.mxu0 0
        %1169 = vmatmul.mubr.bf16.gmra.mrb[0].mxu0 %v1037
        %v1170 = vpop.f32.mrb[0].mxu0
        %v1171 = vadd.f32 0.0, %v1170
        %v1172 = vpop.f32.mrb[0].mxu0
        %v1173 = vpop.f32.mrb[0].mxu0
        %v1174 = vadd.f32 0.0, %v1173
        %v1175 = vpop.f32.mrb[0].mxu0
        %1176 = vmatprep.mubr.bf16.mxu0 0
        %1177 = vmatmul.mubr.bf16.gmra.mrb[0].mxu0 %v1038
        %v1178 = vpop.f32.mrb[0].mxu0
        %v1179 = vadd.f32 0.0, %v1178
        %v1180 = vpop.f32.mrb[0].mxu0
        %v1181 = vpop.f32.mrb[0].mxu0
        %v1182 = vadd.f32 0.0, %v1181
        %v1183 = vpop.f32.mrb[0].mxu0
        %1184 = vmatprep.mubr.bf16.mxu0 0
        %1185 = vmatmul.mubr.bf16.gmra.mrb[0].mxu0 %v1039
        %v1186 = vpop.f32.mrb[0].mxu0
        %v1187 = vadd.f32 0.0, %v1186
        %v1188 = vpop.f32.mrb[0].mxu0
        %v1189 = vpop.f32.mrb[0].mxu0
        %v1190 = vadd.f32 0.0, %v1189
        %v1191 = vpop.f32.mrb[0].mxu0
        %1192 = vdwg.mxu0
        %v1193 = vpack.c.bf16 %v1134, %v1131
        %v1194 = vpack.c.bf16 %v1142, %v1139
        %v1195 = vpack.c.bf16 %v1150, %v1147
        %v1196 = vpack.c.bf16 %v1158, %v1155
        %v1197 = vpack.c.bf16 %v1166, %v1163
        %v1198 = vpack.c.bf16 %v1174, %v1171
        %v1199 = vpack.c.bf16 %v1182, %v1179
        %v1200 = vpack.c.bf16 %v1190, %v1187
        %v1217 = vunpack.c.l.b16 %v964
        %v1218 = vunpack.c.l.b16 %v965
        %v1219 = vunpack.c.l.b16 %v966
        %v1220 = vunpack.c.l.b16 %v967
        %v1221 = vunpack.c.l.b16 %v968
        %v1222 = vunpack.c.l.b16 %v969
        %v1223 = vunpack.c.l.b16 %v970
        %v1224 = vunpack.c.l.b16 %v971
        %v1225 = vunpack.c.l.b16 %v972
        %v1226 = vunpack.c.l.b16 %v973
        %v1227 = vunpack.c.l.b16 %v974
        %v1228 = vunpack.c.l.b16 %v975
        %v1229 = vunpack.c.l.b16 %v976
        %v1230 = vunpack.c.l.b16 %v977
        %v1231 = vunpack.c.l.b16 %v978
        %v1232 = vunpack.c.l.b16 %v979
        %v1233 = vpack.c.b16 %v1218, %v1217
        %v1234 = vpack.c.b16 %v1220, %v1219
        %v1235 = vpack.c.b16 %v1222, %v1221
        %v1236 = vpack.c.b16 %v1224, %v1223
        %v1237 = vpack.c.b16 %v1226, %v1225
        %v1238 = vpack.c.b16 %v1228, %v1227
        %v1239 = vpack.c.b16 %v1230, %v1229
        %v1240 = vpack.c.b16 %v1232, %v1231
        %1249 = vmatprep.subr.bf16.mxu0 0
        %1250 = vmatpush1.bf16.msra.mxu0 %v1233
        %1251 = vmatprep.subr.bf16.mxu0 0
        %1252 = vmatpush1.bf16.msra.mxu0 %v1234
        %1253 = vmatprep.subr.bf16.mxu0 0
        %1254 = vmatpush1.bf16.msra.mxu0 %v1235
        %1255 = vmatprep.subr.bf16.mxu0 0
        %1256 = vmatpush1.bf16.msra.mxu0 %v1236
        %1257 = vmatprep.subr.bf16.mxu0 0
        %1258 = vmatpush1.bf16.msra.mxu0 %v1237
        %1259 = vmatprep.subr.bf16.mxu0 0
        %1260 = vmatpush1.bf16.msra.mxu0 %v1238
        %1261 = vmatprep.subr.bf16.mxu0 0
        %1262 = vmatpush1.bf16.msra.mxu0 %v1239
        %1263 = vmatprep.subr.bf16.mxu0 0
        %1264 = vmatpush1.bf16.msra.mxu0 %v1240
        %1265 = vmatprep.subr.bf16.mxu0 0
        %1266 = vmatpush1.bf16.msra.mxu0 0
        %1267 = vmatprep.subr.bf16.mxu0 0
        %1268 = vmatpush1.bf16.msra.mxu0 0
        %1269 = vmatprep.subr.bf16.mxu0 0
        %1270 = vmatpush1.bf16.msra.mxu0 0
        %1271 = vmatprep.subr.bf16.mxu0 0
        %1272 = vmatpush1.bf16.msra.mxu0 0
        %1273 = vmatprep.subr.bf16.mxu0 0
        %1274 = vmatpush1.bf16.msra.mxu0 0
        %1275 = vmatprep.subr.bf16.mxu0 0
        %1276 = vmatpush1.bf16.msra.mxu0 0
        %1277 = vmatprep.subr.bf16.mxu0 0
        %1278 = vmatpush1.bf16.msra.mxu0 0
        %1279 = vmatprep.subr.bf16.mxu0 0
        %1280 = vmatpush1.bf16.msra.mxu0 0
        %1281 = vmatprep.mubr.bf16.mxu0 0
        %1282 = vmatmul.mubr.bf16.gmra.mrb[0].mxu0 %v1193
        %v1283 = vpop.f32.mrb[0].mxu0
        %v1284 = vadd.f32 0.0, %v1283
        %v1285 = vpop.f32.mrb[0].mxu0
        %v1286 = vpop.f32.mrb[0].mxu0
        %v1287 = vadd.f32 0.0, %v1286
        %v1288 = vpop.f32.mrb[0].mxu0
        %1289 = vmatprep.mubr.bf16.mxu0 0
        %1290 = vmatmul.mubr.bf16.gmra.mrb[0].mxu0 %v1194
        %v1291 = vpop.f32.mrb[0].mxu0
        %v1292 = vadd.f32 0.0, %v1291
        %v1293 = vpop.f32.mrb[0].mxu0
        %v1294 = vpop.f32.mrb[0].mxu0
        %v1295 = vadd.f32 0.0, %v1294
        %v1296 = vpop.f32.mrb[0].mxu0
        %1297 = vmatprep.mubr.bf16.mxu0 0
        %1298 = vmatmul.mubr.bf16.gmra.mrb[0].mxu0 %v1195
        %v1299 = vpop.f32.mrb[0].mxu0
        %v1300 = vadd.f32 0.0, %v1299
        %v1301 = vpop.f32.mrb[0].mxu0
        %v1302 = vpop.f32.mrb[0].mxu0
        %v1303 = vadd.f32 0.0, %v1302
        %v1304 = vpop.f32.mrb[0].mxu0
        %1305 = vmatprep.mubr.bf16.mxu0 0
        %1306 = vmatmul.mubr.bf16.gmra.mrb[0].mxu0 %v1196
        %v1307 = vpop.f32.mrb[0].mxu0
        %v1308 = vadd.f32 0.0, %v1307
        %v1309 = vpop.f32.mrb[0].mxu0
        %v1310 = vpop.f32.mrb[0].mxu0
        %v1311 = vadd.f32 0.0, %v1310
        %v1312 = vpop.f32.mrb[0].mxu0
        %1313 = vmatprep.mubr.bf16.mxu0 0
        %1314 = vmatmul.mubr.bf16.gmra.mrb[0].mxu0 %v1197
        %v1315 = vpop.f32.mrb[0].mxu0
        %v1316 = vadd.f32 0.0, %v1315
        %v1317 = vpop.f32.mrb[0].mxu0
        %v1318 = vpop.f32.mrb[0].mxu0
        %v1319 = vadd.f32 0.0, %v1318
        %v1320 = vpop.f32.mrb[0].mxu0
        %1321 = vmatprep.mubr.bf16.mxu0 0
        %1322 = vmatmul.mubr.bf16.gmra.mrb[0].mxu0 %v1198
        %v1323 = vpop.f32.mrb[0].mxu0
        %v1324 = vadd.f32 0.0, %v1323
        %v1325 = vpop.f32.mrb[0].mxu0
        %v1326 = vpop.f32.mrb[0].mxu0
        %v1327 = vadd.f32 0.0, %v1326
        %v1328 = vpop.f32.mrb[0].mxu0
        %1329 = vmatprep.mubr.bf16.mxu0 0
        %1330 = vmatmul.mubr.bf16.gmra.mrb[0].mxu0 %v1199
        %v1331 = vpop.f32.mrb[0].mxu0
        %v1332 = vadd.f32 0.0, %v1331
        %v1333 = vpop.f32.mrb[0].mxu0
        %v1334 = vpop.f32.mrb[0].mxu0
        %v1335 = vadd.f32 0.0, %v1334
        %v1336 = vpop.f32.mrb[0].mxu0
        %1337 = vmatprep.mubr.bf16.mxu0 0
        %1338 = vmatmul.mubr.bf16.gmra.mrb[0].mxu0 %v1200
        %v1339 = vpop.f32.mrb[0].mxu0
        %v1340 = vadd.f32 0.0, %v1339
        %v1341 = vpop.f32.mrb[0].mxu0
        %v1342 = vpop.f32.mrb[0].mxu0
        %v1343 = vadd.f32 0.0, %v1342
        %v1344 = vpop.f32.mrb[0].mxu0
        %1345 = vdwg.mxu0
        %v1346 = vpack.c.bf16 %v1287, %v1284
        %v1347 = vpack.c.bf16 %v1295, %v1292
        %v1348 = vpack.c.bf16 %v1303, %v1300
        %v1349 = vpack.c.bf16 %v1311, %v1308
        %v1350 = vpack.c.bf16 %v1319, %v1316
        %v1351 = vpack.c.bf16 %v1327, %v1324
        %v1352 = vpack.c.bf16 %v1335, %v1332
        %v1353 = vpack.c.bf16 %v1343, %v1340
        %v1355 = vpack.i.b16 %v980, %v980
        %v1357 = vlaneseq
        %v1358 = vshrl.u32 %v1357, 7
        %v1359 = vsub.s32 0, %v1358
        %v1360 = vrot.slane %v1355, %v1359
        %v1361 = vadd.bf16 %v1346, %v1360
        %v1362 = vadd.bf16 %v1347, %v1360
        %v1363 = vadd.bf16 %v1348, %v1360
        %v1364 = vadd.bf16 %v1349, %v1360
        %v1365 = vadd.bf16 %v1350, %v1360
        %v1366 = vadd.bf16 %v1351, %v1360
        %v1367 = vadd.bf16 %v1352, %v1360
        %v1368 = vadd.bf16 %v1353, %v1360
        %v1369 = vmax.bf16 %v1361, 0
        %v1370 = vmax.bf16 %v1362, 0
        %v1371 = vmax.bf16 %v1363, 0
        %v1372 = vmax.bf16 %v1364, 0
        %v1373 = vmax.bf16 %v1365, 0
        %v1374 = vmax.bf16 %v1366, 0
        %v1375 = vmax.bf16 %v1367, 0
        %v1376 = vmax.bf16 %v1368, 0
        %v1393 = vunpack.c.l.b16 %v981
        %v1394 = vunpack.c.l.b16 %v982
        %v1395 = vunpack.c.l.b16 %v983
        %v1396 = vunpack.c.l.b16 %v984
        %v1397 = vunpack.c.l.b16 %v985
        %v1398 = vunpack.c.l.b16 %v986
        %v1399 = vunpack.c.l.b16 %v987
        %v1400 = vunpack.c.l.b16 %v988
        %v1401 = vunpack.c.l.b16 %v989
        %v1402 = vunpack.c.l.b16 %v990
        %v1403 = vunpack.c.l.b16 %v991
        %v1404 = vunpack.c.l.b16 %v992
        %v1405 = vunpack.c.l.b16 %v993
        %v1406 = vunpack.c.l.b16 %v994
        %v1407 = vunpack.c.l.b16 %v995
        %v1408 = vunpack.c.l.b16 %v996
        %v1409 = vpack.c.b16 %v1394, %v1393
        %v1410 = vpack.c.b16 %v1396, %v1395
        %v1411 = vpack.c.b16 %v1398, %v1397
        %v1412 = vpack.c.b16 %v1400, %v1399
        %v1413 = vpack.c.b16 %v1402, %v1401
        %v1414 = vpack.c.b16 %v1404, %v1403
        %v1415 = vpack.c.b16 %v1406, %v1405
        %v1416 = vpack.c.b16 %v1408, %v1407
        %1425 = vmatprep.subr.bf16.mxu0 0
        %1426 = vmatpush1.bf16.msra.mxu0 %v1409
        %1427 = vmatprep.subr.bf16.mxu0 0
        %1428 = vmatpush1.bf16.msra.mxu0 %v1410
        %1429 = vmatprep.subr.bf16.mxu0 0
        %1430 = vmatpush1.bf16.msra.mxu0 %v1411
        %1431 = vmatprep.subr.bf16.mxu0 0
        %1432 = vmatpush1.bf16.msra.mxu0 %v1412
        %1433 = vmatprep.subr.bf16.mxu0 0
        %1434 = vmatpush1.bf16.msra.mxu0 %v1413
        %1435 = vmatprep.subr.bf16.mxu0 0
        %1436 = vmatpush1.bf16.msra.mxu0 %v1414
        %1437 = vmatprep.subr.bf16.mxu0 0
        %1438 = vmatpush1.bf16.msra.mxu0 %v1415
        %1439 = vmatprep.subr.bf16.mxu0 0
        %1440 = vmatpush1.bf16.msra.mxu0 %v1416
        %1441 = vmatprep.subr.bf16.mxu0 0
        %1442 = vmatpush1.bf16.msra.mxu0 0
        %1443 = vmatprep.subr.bf16.mxu0 0
        %1444 = vmatpush1.bf16.msra.mxu0 0
        %1445 = vmatprep.subr.bf16.mxu0 0
        %1446 = vmatpush1.bf16.msra.mxu0 0
        %1447 = vmatprep.subr.bf16.mxu0 0
        %1448 = vmatpush1.bf16.msra.mxu0 0
        %1449 = vmatprep.subr.bf16.mxu0 0
        %1450 = vmatpush1.bf16.msra.mxu0 0
        %1451 = vmatprep.subr.bf16.mxu0 0
        %1452 = vmatpush1.bf16.msra.mxu0 0
        %1453 = vmatprep.subr.bf16.mxu0 0
        %1454 = vmatpush1.bf16.msra.mxu0 0
        %1455 = vmatprep.subr.bf16.mxu0 0
        %1456 = vmatpush1.bf16.msra.mxu0 0
        %1457 = vmatprep.mubr.bf16.mxu0 0
        %1458 = vmatmul.mubr.bf16.gmra.mrb[0].mxu0 %v1369
        %v1459 = vpop.f32.mrb[0].mxu0
        %v1460 = vadd.f32 0.0, %v1459
        %v1461 = vpop.f32.mrb[0].mxu0
        %v1462 = vpop.f32.mrb[0].mxu0
        %v1463 = vadd.f32 0.0, %v1462
        %v1464 = vpop.f32.mrb[0].mxu0
        %1465 = vmatprep.mubr.bf16.mxu0 0
        %1466 = vmatmul.mubr.bf16.gmra.mrb[0].mxu0 %v1370
        %v1467 = vpop.f32.mrb[0].mxu0
        %v1468 = vadd.f32 0.0, %v1467
        %v1469 = vpop.f32.mrb[0].mxu0
        %v1470 = vpop.f32.mrb[0].mxu0
        %v1471 = vadd.f32 0.0, %v1470
        %v1472 = vpop.f32.mrb[0].mxu0
        %1473 = vmatprep.mubr.bf16.mxu0 0
        %1474 = vmatmul.mubr.bf16.gmra.mrb[0].mxu0 %v1371
        %v1475 = vpop.f32.mrb[0].mxu0
        %v1476 = vadd.f32 0.0, %v1475
        %v1477 = vpop.f32.mrb[0].mxu0
        %v1478 = vpop.f32.mrb[0].mxu0
        %v1479 = vadd.f32 0.0, %v1478
        %v1480 = vpop.f32.mrb[0].mxu0
        %1481 = vmatprep.mubr.bf16.mxu0 0
        %1482 = vmatmul.mubr.bf16.gmra.mrb[0].mxu0 %v1372
        %v1483 = vpop.f32.mrb[0].mxu0
        %v1484 = vadd.f32 0.0, %v1483
        %v1485 = vpop.f32.mrb[0].mxu0
        %v1486 = vpop.f32.mrb[0].mxu0
        %v1487 = vadd.f32 0.0, %v1486
        %v1488 = vpop.f32.mrb[0].mxu0
        %1489 = vmatprep.mubr.bf16.mxu0 0
        %1490 = vmatmul.mubr.bf16.gmra.mrb[0].mxu0 %v1373
        %v1491 = vpop.f32.mrb[0].mxu0
        %v1492 = vadd.f32 0.0, %v1491
        %v1493 = vpop.f32.mrb[0].mxu0
        %v1494 = vpop.f32.mrb[0].mxu0
        %v1495 = vadd.f32 0.0, %v1494
        %v1496 = vpop.f32.mrb[0].mxu0
        %1497 = vmatprep.mubr.bf16.mxu0 0
        %1498 = vmatmul.mubr.bf16.gmra.mrb[0].mxu0 %v1374
        %v1499 = vpop.f32.mrb[0].mxu0
        %v1500 = vadd.f32 0.0, %v1499
        %v1501 = vpop.f32.mrb[0].mxu0
        %v1502 = vpop.f32.mrb[0].mxu0
        %v1503 = vadd.f32 0.0, %v1502
        %v1504 = vpop.f32.mrb[0].mxu0
        %1505 = vmatprep.mubr.bf16.mxu0 0
        %1506 = vmatmul.mubr.bf16.gmra.mrb[0].mxu0 %v1375
        %v1507 = vpop.f32.mrb[0].mxu0
        %v1508 = vadd.f32 0.0, %v1507
        %v1509 = vpop.f32.mrb[0].mxu0
        %v1510 = vpop.f32.mrb[0].mxu0
        %v1511 = vadd.f32 0.0, %v1510
        %v1512 = vpop.f32.mrb[0].mxu0
        %1513 = vmatprep.mubr.bf16.mxu0 0
        %1514 = vmatmul.mubr.bf16.gmra.mrb[0].mxu0 %v1376
        %v1515 = vpop.f32.mrb[0].mxu0
        %v1516 = vadd.f32 0.0, %v1515
        %v1517 = vpop.f32.mrb[0].mxu0
        %v1518 = vpop.f32.mrb[0].mxu0
        %v1519 = vadd.f32 0.0, %v1518
        %v1520 = vpop.f32.mrb[0].mxu0
        %1521 = vdwg.mxu0
        %v1522 = vpack.c.bf16 %v1463, %v1460
        %v1523 = vpack.c.bf16 %v1471, %v1468
        %v1524 = vpack.c.bf16 %v1479, %v1476
        %v1525 = vpack.c.bf16 %v1487, %v1484
        %v1526 = vpack.c.bf16 %v1495, %v1492
        %v1527 = vpack.c.bf16 %v1503, %v1500
        %v1528 = vpack.c.bf16 %v1511, %v1508
        %v1529 = vpack.c.bf16 %v1519, %v1516
        %v1531 = vpack.i.b16 %v997, %v997
        %v1533 = vlaneseq
        %v1534 = vshrl.u32 %v1533, 7
        %v1535 = vsub.s32 0, %v1534
        %v1536 = vrot.slane %v1531, %v1535
        %v1537 = vadd.bf16 %v1522, %v1536
        %v1538 = vadd.bf16 %v1523, %v1536
        %v1539 = vadd.bf16 %v1524, %v1536
        %v1540 = vadd.bf16 %v1525, %v1536
        %v1541 = vadd.bf16 %v1526, %v1536
        %v1542 = vadd.bf16 %v1527, %v1536
        %v1543 = vadd.bf16 %v1528, %v1536
        %v1544 = vadd.bf16 %v1529, %v1536
        %v1545 = vmax.bf16 %v1537, 0
        %v1546 = vmax.bf16 %v1538, 0
        %v1547 = vmax.bf16 %v1539, 0
        %v1548 = vmax.bf16 %v1540, 0
        %v1549 = vmax.bf16 %v1541, 0
        %v1550 = vmax.bf16 %v1542, 0
        %v1551 = vmax.bf16 %v1543, 0
        %v1552 = vmax.bf16 %v1544, 0
        %v1554 = vpack.i.b16 %v998, %v998
        %v1556 = vlaneseq
        %v1557 = vshrl.u32 %v1556, 7
        %v1558 = vsub.s32 0, %v1557
        %v1559 = vrot.slane %v1554, %v1558
        %v1560 = vmul.bf16 %v1545, %v1559
        %v1561 = vmul.bf16 %v1546, %v1559
        %v1562 = vmul.bf16 %v1547, %v1559
        %v1563 = vmul.bf16 %v1548, %v1559
        %v1564 = vmul.bf16 %v1549, %v1559
        %v1565 = vmul.bf16 %v1550, %v1559
        %v1566 = vmul.bf16 %v1551, %v1559
        %v1567 = vmul.bf16 %v1552, %v1559
        %v1569 = vpack.i.b16 %v999, %v999
        %v1571 = vlaneseq
        %v1572 = vshrl.u32 %v1571, 7
        %v1573 = vsub.s32 0, %v1572
        %v1574 = vrot.slane %v1569, %v1573
        %v1575 = vadd.bf16 %v1560, %v1574
        %v1576 = vadd.bf16 %v1561, %v1574
        %v1577 = vadd.bf16 %v1562, %v1574
        %v1578 = vadd.bf16 %v1563, %v1574
        %v1579 = vadd.bf16 %v1564, %v1574
        %v1580 = vadd.bf16 %v1565, %v1574
        %v1581 = vadd.bf16 %v1566, %v1574
        %v1582 = vadd.bf16 %v1567, %v1574
        %v1583 = vmax.bf16 %v1575, 0
        %v1584 = vmax.bf16 %v1576, 0
        %v1585 = vmax.bf16 %v1577, 0
        %v1586 = vmax.bf16 %v1578, 0
        %v1587 = vmax.bf16 %v1579, 0
        %v1588 = vmax.bf16 %v1580, 0
        %v1589 = vmax.bf16 %v1581, 0
        %v1590 = vmax.bf16 %v1582, 0
        %v1599 = vunpack.c.l.b16 %v1583
        %v1600 = vunpack.c.h.b16 %v1583
        %v1601 = vunpack.c.l.b16 %v1584
        %v1602 = vunpack.c.h.b16 %v1584
        %v1603 = vunpack.c.l.b16 %v1585
        %v1604 = vunpack.c.h.b16 %v1585
        %v1605 = vunpack.c.l.b16 %v1586
        %v1606 = vunpack.c.h.b16 %v1586
        %v1607 = vunpack.c.l.b16 %v1587
        %v1608 = vunpack.c.h.b16 %v1587
        %v1609 = vunpack.c.l.b16 %v1588
        %v1610 = vunpack.c.h.b16 %v1588
        %v1611 = vunpack.c.l.b16 %v1589
        %v1612 = vunpack.c.h.b16 %v1589
        %v1613 = vunpack.c.l.b16 %v1590
        %v1614 = vunpack.c.h.b16 %v1590
        %v1615 = vpack.c.b16 %v1599, %v1599
        %v1616 = vpack.c.b16 %v1600, %v1600
        %v1617 = vpack.c.b16 %v1601, %v1601
        %v1618 = vpack.c.b16 %v1602, %v1602
        %v1619 = vpack.c.b16 %v1603, %v1603
        %v1620 = vpack.c.b16 %v1604, %v1604
        %v1621 = vpack.c.b16 %v1605, %v1605
        %v1622 = vpack.c.b16 %v1606, %v1606
        %v1623 = vpack.c.b16 %v1607, %v1607
        %v1624 = vpack.c.b16 %v1608, %v1608
        %v1625 = vpack.c.b16 %v1609, %v1609
        %v1626 = vpack.c.b16 %v1610, %v1610
        %v1627 = vpack.c.b16 %v1611, %v1611
        %v1628 = vpack.c.b16 %v1612, %v1612
        %v1629 = vpack.c.b16 %v1613, %v1613
        %v1630 = vpack.c.b16 %v1614, %v1614
        %1647 = vst [vmem:[%s930] sm:$0xf] %v1615
        %1648 = vst [vmem:[%s930 + $0x4] sm:$0xf] %v1616
        %1649 = vst [vmem:[%s930 + $0x8] sm:$0xf] %v1617
        %1650 = vst [vmem:[%s930 + $0xc] sm:$0xf] %v1618
        %1651 = vst [vmem:[%s930 + $0x10] sm:$0xf] %v1619
        %1652 = vst [vmem:[%s930 + $0x14] sm:$0xf] %v1620
        %1653 = vst [vmem:[%s930 + $0x18] sm:$0xf] %v1621
        %1654 = vst [vmem:[%s930 + $0x1c] sm:$0xf] %v1622
        %1655 = vst [vmem:[%s930 + $0x20] sm:$0xf] %v1623
        %1656 = vst [vmem:[%s930 + $0x24] sm:$0xf] %v1624
        %1657 = vst [vmem:[%s930 + $0x28] sm:$0xf] %v1625
        %1658 = vst [vmem:[%s930 + $0x2c] sm:$0xf] %v1626
        %1659 = vst [vmem:[%s930 + $0x30] sm:$0xf] %v1627
        %1660 = vst [vmem:[%s930 + $0x34] sm:$0xf] %v1628
        %1661 = vst [vmem:[%s930 + $0x38] sm:$0xf] %v1629
        %1662 = vst [vmem:[%s930 + $0x3c] sm:$0xf] %v1630
        %v1663 = vld [vmem:[%s9] sm:$0xf]
        %v1664 = vld [vmem:[%s9 + $0x4] sm:$0xf]
        %v1665 = vld [vmem:[%s9 + $0x8] sm:$0xf]
        %v1666 = vld [vmem:[%s9 + $0xc] sm:$0xf]
        %v1667 = vld [vmem:[%s9 + $0x10] sm:$0xf]
        %v1668 = vld [vmem:[%s9 + $0x14] sm:$0xf]
        %v1669 = vld [vmem:[%s9 + $0x18] sm:$0xf]
        %v1670 = vld [vmem:[%s9 + $0x1c] sm:$0xf]
        %v1671 = vld [vmem:[%s9 + $0x20] sm:$0xf]
        %v1672 = vld [vmem:[%s9 + $0x24] sm:$0xf]
        %v1673 = vld [vmem:[%s9 + $0x28] sm:$0xf]
        %v1674 = vld [vmem:[%s9 + $0x2c] sm:$0xf]
        %v1675 = vld [vmem:[%s9 + $0x30] sm:$0xf]
        %v1676 = vld [vmem:[%s9 + $0x34] sm:$0xf]
        %v1677 = vld [vmem:[%s9 + $0x38] sm:$0xf]
        %v1678 = vld [vmem:[%s9 + $0x3c] sm:$0xf]
        %v1679 = vld [vmem:[%s10] sm:$0x1]
        %v1680 = vld [vmem:[#allocation2] sm:$0xf]
        %v1681 = vld [vmem:[#allocation2 + $0x4] sm:$0xf]
        %v1682 = vld [vmem:[#allocation2 + $0x8] sm:$0xf]
        %v1683 = vld [vmem:[#allocation2 + $0xc] sm:$0xf]
        %v1684 = vld [vmem:[#allocation2 + $0x10] sm:$0xf]
        %v1685 = vld [vmem:[#allocation2 + $0x14] sm:$0xf]
        %v1686 = vld [vmem:[#allocation2 + $0x18] sm:$0xf]
        %v1687 = vld [vmem:[#allocation2 + $0x1c] sm:$0xf]
        %v1688 = vld [vmem:[#allocation2 + $0x20] sm:$0xf]
        %v1689 = vld [vmem:[#allocation2 + $0x24] sm:$0xf]
        %v1690 = vld [vmem:[#allocation2 + $0x28] sm:$0xf]
        %v1691 = vld [vmem:[#allocation2 + $0x2c] sm:$0xf]
        %v1692 = vld [vmem:[#allocation2 + $0x30] sm:$0xf]
        %v1693 = vld [vmem:[#allocation2 + $0x34] sm:$0xf]
        %v1694 = vld [vmem:[#allocation2 + $0x38] sm:$0xf]
        %v1695 = vld [vmem:[#allocation2 + $0x3c] sm:$0xf]
        %v1696 = vld [vmem:[%s12] sm:$0x1]
        %v1697 = vld [vmem:[%s13] sm:$0x1]
        %v1698 = vld [vmem:[%s14] sm:$0x1]
        %1699 = vmatprep.subr.bf16.mxu0 0
        %1700 = vmatpush1.bf16.msra.mxu0 %v1583
        %1701 = vmatprep.subr.bf16.mxu0 0
        %1702 = vmatpush1.bf16.msra.mxu0 %v1584
        %1703 = vmatprep.subr.bf16.mxu0 0
        %1704 = vmatpush1.bf16.msra.mxu0 %v1585
        %1705 = vmatprep.subr.bf16.mxu0 0
        %1706 = vmatpush1.bf16.msra.mxu0 %v1586
        %1707 = vmatprep.subr.bf16.mxu0 0
        %1708 = vmatpush1.bf16.msra.mxu0 %v1587
        %1709 = vmatprep.subr.bf16.mxu0 0
        %1710 = vmatpush1.bf16.msra.mxu0 %v1588
        %1711 = vmatprep.subr.bf16.mxu0 0
        %1712 = vmatpush1.bf16.msra.mxu0 %v1589
        %1713 = vmatprep.subr.bf16.mxu0 0
        %1714 = vmatpush1.bf16.msra.mxu0 %v1590
        %1715 = vmatprep.subr.bf16.mxu0 0
        %1716 = vmatpush1.bf16.msra.mxu0 0
        %1717 = vmatprep.subr.bf16.mxu0 0
        %1718 = vmatpush1.bf16.msra.mxu0 0
        %1719 = vmatprep.subr.bf16.mxu0 0
        %1720 = vmatpush1.bf16.msra.mxu0 0
        %1721 = vmatprep.subr.bf16.mxu0 0
        %1722 = vmatpush1.bf16.msra.mxu0 0
        %1723 = vmatprep.subr.bf16.mxu0 0
        %1724 = vmatpush1.bf16.msra.mxu0 0
        %1725 = vmatprep.subr.bf16.mxu0 0
        %1726 = vmatpush1.bf16.msra.mxu0 0
        %1727 = vmatprep.subr.bf16.mxu0 0
        %1728 = vmatpush1.bf16.msra.mxu0 0
        %1729 = vmatprep.subr.bf16.mxu0 0
        %1730 = vmatpush1.bf16.msra.mxu0 0
        %1731 = vmatprep.mubr.bf16.mxu0 0
        %1732 = vmatmul.mubr.bf16.gmra.mrb[0].mxu0 %v1032
        %v1733 = vpop.f32.mrb[0].mxu0
        %v1734 = vadd.f32 0.0, %v1733
        %v1735 = vpop.f32.mrb[0].mxu0
        %v1736 = vpop.f32.mrb[0].mxu0
        %v1737 = vadd.f32 0.0, %v1736
        %v1738 = vpop.f32.mrb[0].mxu0
        %1739 = vmatprep.mubr.bf16.mxu0 0
        %1740 = vmatmul.mubr.bf16.gmra.mrb[0].mxu0 %v1033
        %v1741 = vpop.f32.mrb[0].mxu0
        %v1742 = vadd.f32 0.0, %v1741
        %v1743 = vpop.f32.mrb[0].mxu0
        %v1744 = vpop.f32.mrb[0].mxu0
        %v1745 = vadd.f32 0.0, %v1744
        %v1746 = vpop.f32.mrb[0].mxu0
        %1747 = vmatprep.mubr.bf16.mxu0 0
        %1748 = vmatmul.mubr.bf16.gmra.mrb[0].mxu0 %v1034
        %v1749 = vpop.f32.mrb[0].mxu0
        %v1750 = vadd.f32 0.0, %v1749
        %v1751 = vpop.f32.mrb[0].mxu0
        %v1752 = vpop.f32.mrb[0].mxu0
        %v1753 = vadd.f32 0.0, %v1752
        %v1754 = vpop.f32.mrb[0].mxu0
        %1755 = vmatprep.mubr.bf16.mxu0 0
        %1756 = vmatmul.mubr.bf16.gmra.mrb[0].mxu0 %v1035
        %v1757 = vpop.f32.mrb[0].mxu0
        %v1758 = vadd.f32 0.0, %v1757
        %v1759 = vpop.f32.mrb[0].mxu0
        %v1760 = vpop.f32.mrb[0].mxu0
        %v1761 = vadd.f32 0.0, %v1760
        %v1762 = vpop.f32.mrb[0].mxu0
        %1763 = vmatprep.mubr.bf16.mxu0 0
        %1764 = vmatmul.mubr.bf16.gmra.mrb[0].mxu0 %v1036
        %v1765 = vpop.f32.mrb[0].mxu0
        %v1766 = vadd.f32 0.0, %v1765
        %v1767 = vpop.f32.mrb[0].mxu0
        %v1768 = vpop.f32.mrb[0].mxu0
        %v1769 = vadd.f32 0.0, %v1768
        %v1770 = vpop.f32.mrb[0].mxu0
        %1771 = vmatprep.mubr.bf16.mxu0 0
        %1772 = vmatmul.mubr.bf16.gmra.mrb[0].mxu0 %v1037
        %v1773 = vpop.f32.mrb[0].mxu0
        %v1774 = vadd.f32 0.0, %v1773
        %v1775 = vpop.f32.mrb[0].mxu0
        %v1776 = vpop.f32.mrb[0].mxu0
        %v1777 = vadd.f32 0.0, %v1776
        %v1778 = vpop.f32.mrb[0].mxu0
        %1779 = vmatprep.mubr.bf16.mxu0 0
        %1780 = vmatmul.mubr.bf16.gmra.mrb[0].mxu0 %v1038
        %v1781 = vpop.f32.mrb[0].mxu0
        %v1782 = vadd.f32 0.0, %v1781
        %v1783 = vpop.f32.mrb[0].mxu0
        %v1784 = vpop.f32.mrb[0].mxu0
        %v1785 = vadd.f32 0.0, %v1784
        %v1786 = vpop.f32.mrb[0].mxu0
        %1787 = vmatprep.mubr.bf16.mxu0 0
        %1788 = vmatmul.mubr.bf16.gmra.mrb[0].mxu0 %v1039
        %v1789 = vpop.f32.mrb[0].mxu0
        %v1790 = vadd.f32 0.0, %v1789
        %v1791 = vpop.f32.mrb[0].mxu0
        %v1792 = vpop.f32.mrb[0].mxu0
        %v1793 = vadd.f32 0.0, %v1792
        %v1794 = vpop.f32.mrb[0].mxu0
        %1795 = vdwg.mxu0
        %v1796 = vpack.c.bf16 %v1737, %v1734
        %v1797 = vpack.c.bf16 %v1745, %v1742
        %v1798 = vpack.c.bf16 %v1753, %v1750
        %v1799 = vpack.c.bf16 %v1761, %v1758
        %v1800 = vpack.c.bf16 %v1769, %v1766
        %v1801 = vpack.c.bf16 %v1777, %v1774
        %v1802 = vpack.c.bf16 %v1785, %v1782
        %v1803 = vpack.c.bf16 %v1793, %v1790
        %v1820 = vunpack.c.l.b16 %v1663
        %v1821 = vunpack.c.l.b16 %v1664
        %v1822 = vunpack.c.l.b16 %v1665
        %v1823 = vunpack.c.l.b16 %v1666
        %v1824 = vunpack.c.l.b16 %v1667
        %v1825 = vunpack.c.l.b16 %v1668
        %v1826 = vunpack.c.l.b16 %v1669
        %v1827 = vunpack.c.l.b16 %v1670
        %v1828 = vunpack.c.l.b16 %v1671
        %v1829 = vunpack.c.l.b16 %v1672
        %v1830 = vunpack.c.l.b16 %v1673
        %v1831 = vunpack.c.l.b16 %v1674
        %v1832 = vunpack.c.l.b16 %v1675
        %v1833 = vunpack.c.l.b16 %v1676
        %v1834 = vunpack.c.l.b16 %v1677
        %v1835 = vunpack.c.l.b16 %v1678
        %v1836 = vpack.c.b16 %v1821, %v1820
        %v1837 = vpack.c.b16 %v1823, %v1822
        %v1838 = vpack.c.b16 %v1825, %v1824
        %v1839 = vpack.c.b16 %v1827, %v1826
        %v1840 = vpack.c.b16 %v1829, %v1828
        %v1841 = vpack.c.b16 %v1831, %v1830
        %v1842 = vpack.c.b16 %v1833, %v1832
        %v1843 = vpack.c.b16 %v1835, %v1834
        %1852 = vmatprep.subr.bf16.mxu0 0
        %1853 = vmatpush1.bf16.msra.mxu0 %v1836
        %1854 = vmatprep.subr.bf16.mxu0 0
        %1855 = vmatpush1.bf16.msra.mxu0 %v1837
        %1856 = vmatprep.subr.bf16.mxu0 0
        %1857 = vmatpush1.bf16.msra.mxu0 %v1838
        %1858 = vmatprep.subr.bf16.mxu0 0
        %1859 = vmatpush1.bf16.msra.mxu0 %v1839
        %1860 = vmatprep.subr.bf16.mxu0 0
        %1861 = vmatpush1.bf16.msra.mxu0 %v1840
        %1862 = vmatprep.subr.bf16.mxu0 0
        %1863 = vmatpush1.bf16.msra.mxu0 %v1841
        %1864 = vmatprep.subr.bf16.mxu0 0
        %1865 = vmatpush1.bf16.msra.mxu0 %v1842
        %1866 = vmatprep.subr.bf16.mxu0 0
        %1867 = vmatpush1.bf16.msra.mxu0 %v1843
        %1868 = vmatprep.subr.bf16.mxu0 0
        %1869 = vmatpush1.bf16.msra.mxu0 0
        %1870 = vmatprep.subr.bf16.mxu0 0
        %1871 = vmatpush1.bf16.msra.mxu0 0
        %1872 = vmatprep.subr.bf16.mxu0 0
        %1873 = vmatpush1.bf16.msra.mxu0 0
        %1874 = vmatprep.subr.bf16.mxu0 0
        %1875 = vmatpush1.bf16.msra.mxu0 0
        %1876 = vmatprep.subr.bf16.mxu0 0
        %1877 = vmatpush1.bf16.msra.mxu0 0
        %1878 = vmatprep.subr.bf16.mxu0 0
        %1879 = vmatpush1.bf16.msra.mxu0 0
        %1880 = vmatprep.subr.bf16.mxu0 0
        %1881 = vmatpush1.bf16.msra.mxu0 0
        %1882 = vmatprep.subr.bf16.mxu0 0
        %1883 = vmatpush1.bf16.msra.mxu0 0
        %1884 = vmatprep.mubr.bf16.mxu0 0
        %1885 = vmatmul.mubr.bf16.gmra.mrb[0].mxu0 %v1796
        %v1886 = vpop.f32.mrb[0].mxu0
        %v1887 = vadd.f32 0.0, %v1886
        %v1888 = vpop.f32.mrb[0].mxu0
        %v1889 = vpop.f32.mrb[0].mxu0
        %v1890 = vadd.f32 0.0, %v1889
        %v1891 = vpop.f32.mrb[0].mxu0
        %1892 = vmatprep.mubr.bf16.mxu0 0
        %1893 = vmatmul.mubr.bf16.gmra.mrb[0].mxu0 %v1797
        %v1894 = vpop.f32.mrb[0].mxu0
        %v1895 = vadd.f32 0.0, %v1894
        %v1896 = vpop.f32.mrb[0].mxu0
        %v1897 = vpop.f32.mrb[0].mxu0
        %v1898 = vadd.f32 0.0, %v1897
        %v1899 = vpop.f32.mrb[0].mxu0
        %1900 = vmatprep.mubr.bf16.mxu0 0
        %1901 = vmatmul.mubr.bf16.gmra.mrb[0].mxu0 %v1798
        %v1902 = vpop.f32.mrb[0].mxu0
        %v1903 = vadd.f32 0.0, %v1902
        %v1904 = vpop.f32.mrb[0].mxu0
        %v1905 = vpop.f32.mrb[0].mxu0
        %v1906 = vadd.f32 0.0, %v1905
        %v1907 = vpop.f32.mrb[0].mxu0
        %1908 = vmatprep.mubr.bf16.mxu0 0
        %1909 = vmatmul.mubr.bf16.gmra.mrb[0].mxu0 %v1799
        %v1910 = vpop.f32.mrb[0].mxu0
        %v1911 = vadd.f32 0.0, %v1910
        %v1912 = vpop.f32.mrb[0].mxu0
        %v1913 = vpop.f32.mrb[0].mxu0
        %v1914 = vadd.f32 0.0, %v1913
        %v1915 = vpop.f32.mrb[0].mxu0
        %1916 = vmatprep.mubr.bf16.mxu0 0
        %1917 = vmatmul.mubr.bf16.gmra.mrb[0].mxu0 %v1800
        %v1918 = vpop.f32.mrb[0].mxu0
        %v1919 = vadd.f32 0.0, %v1918
        %v1920 = vpop.f32.mrb[0].mxu0
        %v1921 = vpop.f32.mrb[0].mxu0
        %v1922 = vadd.f32 0.0, %v1921
        %v1923 = vpop.f32.mrb[0].mxu0
        %1924 = vmatprep.mubr.bf16.mxu0 0
        %1925 = vmatmul.mubr.bf16.gmra.mrb[0].mxu0 %v1801
        %v1926 = vpop.f32.mrb[0].mxu0
        %v1927 = vadd.f32 0.0, %v1926
        %v1928 = vpop.f32.mrb[0].mxu0
        %v1929 = vpop.f32.mrb[0].mxu0
        %v1930 = vadd.f32 0.0, %v1929
        %v1931 = vpop.f32.mrb[0].mxu0
        %1932 = vmatprep.mubr.bf16.mxu0 0
        %1933 = vmatmul.mubr.bf16.gmra.mrb[0].mxu0 %v1802
        %v1934 = vpop.f32.mrb[0].mxu0
        %v1935 = vadd.f32 0.0, %v1934
        %v1936 = vpop.f32.mrb[0].mxu0
        %v1937 = vpop.f32.mrb[0].mxu0
        %v1938 = vadd.f32 0.0, %v1937
        %v1939 = vpop.f32.mrb[0].mxu0
        %1940 = vmatprep.mubr.bf16.mxu0 0
        %1941 = vmatmul.mubr.bf16.gmra.mrb[0].mxu0 %v1803
        %v1942 = vpop.f32.mrb[0].mxu0
        %v1943 = vadd.f32 0.0, %v1942
        %v1944 = vpop.f32.mrb[0].mxu0
        %v1945 = vpop.f32.mrb[0].mxu0
        %v1946 = vadd.f32 0.0, %v1945
        %v1947 = vpop.f32.mrb[0].mxu0
        %1948 = vdwg.mxu0
        %v1949 = vpack.c.bf16 %v1890, %v1887
        %v1950 = vpack.c.bf16 %v1898, %v1895
        %v1951 = vpack.c.bf16 %v1906, %v1903
        %v1952 = vpack.c.bf16 %v1914, %v1911
        %v1953 = vpack.c.bf16 %v1922, %v1919
        %v1954 = vpack.c.bf16 %v1930, %v1927
        %v1955 = vpack.c.bf16 %v1938, %v1935
        %v1956 = vpack.c.bf16 %v1946, %v1943
        %v1958 = vpack.i.b16 %v1679, %v1679
        %v1960 = vlaneseq
        %v1961 = vshrl.u32 %v1960, 7
        %v1962 = vsub.s32 0, %v1961
        %v1963 = vrot.slane %v1958, %v1962
        %v1964 = vadd.bf16 %v1949, %v1963
        %v1965 = vadd.bf16 %v1950, %v1963
        %v1966 = vadd.bf16 %v1951, %v1963
        %v1967 = vadd.bf16 %v1952, %v1963
        %v1968 = vadd.bf16 %v1953, %v1963
        %v1969 = vadd.bf16 %v1954, %v1963
        %v1970 = vadd.bf16 %v1955, %v1963
        %v1971 = vadd.bf16 %v1956, %v1963
        %v1972 = vmax.bf16 %v1964, 0
        %v1973 = vmax.bf16 %v1965, 0
        %v1974 = vmax.bf16 %v1966, 0
        %v1975 = vmax.bf16 %v1967, 0
        %v1976 = vmax.bf16 %v1968, 0
        %v1977 = vmax.bf16 %v1969, 0
        %v1978 = vmax.bf16 %v1970, 0
        %v1979 = vmax.bf16 %v1971, 0
        %v1996 = vunpack.c.l.b16 %v1680
        %v1997 = vunpack.c.l.b16 %v1681
        %v1998 = vunpack.c.l.b16 %v1682
        %v1999 = vunpack.c.l.b16 %v1683
        %v2000 = vunpack.c.l.b16 %v1684
        %v2001 = vunpack.c.l.b16 %v1685
        %v2002 = vunpack.c.l.b16 %v1686
        %v2003 = vunpack.c.l.b16 %v1687
        %v2004 = vunpack.c.l.b16 %v1688
        %v2005 = vunpack.c.l.b16 %v1689
        %v2006 = vunpack.c.l.b16 %v1690
        %v2007 = vunpack.c.l.b16 %v1691
        %v2008 = vunpack.c.l.b16 %v1692
        %v2009 = vunpack.c.l.b16 %v1693
        %v2010 = vunpack.c.l.b16 %v1694
        %v2011 = vunpack.c.l.b16 %v1695
        %v2012 = vpack.c.b16 %v1997, %v1996
        %v2013 = vpack.c.b16 %v1999, %v1998
        %v2014 = vpack.c.b16 %v2001, %v2000
        %v2015 = vpack.c.b16 %v2003, %v2002
        %v2016 = vpack.c.b16 %v2005, %v2004
        %v2017 = vpack.c.b16 %v2007, %v2006
        %v2018 = vpack.c.b16 %v2009, %v2008
        %v2019 = vpack.c.b16 %v2011, %v2010
        %2028 = vmatprep.subr.bf16.mxu0 0
        %2029 = vmatpush1.bf16.msra.mxu0 %v2012
        %2030 = vmatprep.subr.bf16.mxu0 0
        %2031 = vmatpush1.bf16.msra.mxu0 %v2013
        %2032 = vmatprep.subr.bf16.mxu0 0
        %2033 = vmatpush1.bf16.msra.mxu0 %v2014
        %2034 = vmatprep.subr.bf16.mxu0 0
        %2035 = vmatpush1.bf16.msra.mxu0 %v2015
        %2036 = vmatprep.subr.bf16.mxu0 0
        %2037 = vmatpush1.bf16.msra.mxu0 %v2016
        %2038 = vmatprep.subr.bf16.mxu0 0
        %2039 = vmatpush1.bf16.msra.mxu0 %v2017
        %2040 = vmatprep.subr.bf16.mxu0 0
        %2041 = vmatpush1.bf16.msra.mxu0 %v2018
        %2042 = vmatprep.subr.bf16.mxu0 0
        %2043 = vmatpush1.bf16.msra.mxu0 %v2019
        %2044 = vmatprep.subr.bf16.mxu0 0
        %2045 = vmatpush1.bf16.msra.mxu0 0
        %2046 = vmatprep.subr.bf16.mxu0 0
        %2047 = vmatpush1.bf16.msra.mxu0 0
        %2048 = vmatprep.subr.bf16.mxu0 0
        %2049 = vmatpush1.bf16.msra.mxu0 0
        %2050 = vmatprep.subr.bf16.mxu0 0
        %2051 = vmatpush1.bf16.msra.mxu0 0
        %2052 = vmatprep.subr.bf16.mxu0 0
        %2053 = vmatpush1.bf16.msra.mxu0 0
        %2054 = vmatprep.subr.bf16.mxu0 0
        %2055 = vmatpush1.bf16.msra.mxu0 0
        %2056 = vmatprep.subr.bf16.mxu0 0
        %2057 = vmatpush1.bf16.msra.mxu0 0
        %2058 = vmatprep.subr.bf16.mxu0 0
        %2059 = vmatpush1.bf16.msra.mxu0 0
        %2060 = vmatprep.mubr.bf16.mxu0 0
        %2061 = vmatmul.mubr.bf16.gmra.mrb[0].mxu0 %v1972
        %v2062 = vpop.f32.mrb[0].mxu0
        %v2063 = vadd.f32 0.0, %v2062
        %v2064 = vpop.f32.mrb[0].mxu0
        %v2065 = vpop.f32.mrb[0].mxu0
        %v2066 = vadd.f32 0.0, %v2065
        %v2067 = vpop.f32.mrb[0].mxu0
        %2068 = vmatprep.mubr.bf16.mxu0 0
        %2069 = vmatmul.mubr.bf16.gmra.mrb[0].mxu0 %v1973
        %v2070 = vpop.f32.mrb[0].mxu0
        %v2071 = vadd.f32 0.0, %v2070
        %v2072 = vpop.f32.mrb[0].mxu0
        %v2073 = vpop.f32.mrb[0].mxu0
        %v2074 = vadd.f32 0.0, %v2073
        %v2075 = vpop.f32.mrb[0].mxu0
        %2076 = vmatprep.mubr.bf16.mxu0 0
        %2077 = vmatmul.mubr.bf16.gmra.mrb[0].mxu0 %v1974
        %v2078 = vpop.f32.mrb[0].mxu0
        %v2079 = vadd.f32 0.0, %v2078
        %v2080 = vpop.f32.mrb[0].mxu0
        %v2081 = vpop.f32.mrb[0].mxu0
        %v2082 = vadd.f32 0.0, %v2081
        %v2083 = vpop.f32.mrb[0].mxu0
        %2084 = vmatprep.mubr.bf16.mxu0 0
        %2085 = vmatmul.mubr.bf16.gmra.mrb[0].mxu0 %v1975
        %v2086 = vpop.f32.mrb[0].mxu0
        %v2087 = vadd.f32 0.0, %v2086
        %v2088 = vpop.f32.mrb[0].mxu0
        %v2089 = vpop.f32.mrb[0].mxu0
        %v2090 = vadd.f32 0.0, %v2089
        %v2091 = vpop.f32.mrb[0].mxu0
        %2092 = vmatprep.mubr.bf16.mxu0 0
        %2093 = vmatmul.mubr.bf16.gmra.mrb[0].mxu0 %v1976
        %v2094 = vpop.f32.mrb[0].mxu0
        %v2095 = vadd.f32 0.0, %v2094
        %v2096 = vpop.f32.mrb[0].mxu0
        %v2097 = vpop.f32.mrb[0].mxu0
        %v2098 = vadd.f32 0.0, %v2097
        %v2099 = vpop.f32.mrb[0].mxu0
        %2100 = vmatprep.mubr.bf16.mxu0 0
        %2101 = vmatmul.mubr.bf16.gmra.mrb[0].mxu0 %v1977
        %v2102 = vpop.f32.mrb[0].mxu0
        %v2103 = vadd.f32 0.0, %v2102
        %v2104 = vpop.f32.mrb[0].mxu0
        %v2105 = vpop.f32.mrb[0].mxu0
        %v2106 = vadd.f32 0.0, %v2105
        %v2107 = vpop.f32.mrb[0].mxu0
        %2108 = vmatprep.mubr.bf16.mxu0 0
        %2109 = vmatmul.mubr.bf16.gmra.mrb[0].mxu0 %v1978
        %v2110 = vpop.f32.mrb[0].mxu0
        %v2111 = vadd.f32 0.0, %v2110
        %v2112 = vpop.f32.mrb[0].mxu0
        %v2113 = vpop.f32.mrb[0].mxu0
        %v2114 = vadd.f32 0.0, %v2113
        %v2115 = vpop.f32.mrb[0].mxu0
        %2116 = vmatprep.mubr.bf16.mxu0 0
        %2117 = vmatmul.mubr.bf16.gmra.mrb[0].mxu0 %v1979
        %v2118 = vpop.f32.mrb[0].mxu0
        %v2119 = vadd.f32 0.0, %v2118
        %v2120 = vpop.f32.mrb[0].mxu0
        %v2121 = vpop.f32.mrb[0].mxu0
        %v2122 = vadd.f32 0.0, %v2121
        %v2123 = vpop.f32.mrb[0].mxu0
        %2124 = vdwg.mxu0
        %v2125 = vpack.c.bf16 %v2066, %v2063
        %v2126 = vpack.c.bf16 %v2074, %v2071
        %v2127 = vpack.c.bf16 %v2082, %v2079
        %v2128 = vpack.c.bf16 %v2090, %v2087
        %v2129 = vpack.c.bf16 %v2098, %v2095
        %v2130 = vpack.c.bf16 %v2106, %v2103
        %v2131 = vpack.c.bf16 %v2114, %v2111
        %v2132 = vpack.c.bf16 %v2122, %v2119
        %v2134 = vpack.i.b16 %v1696, %v1696
        %v2136 = vlaneseq
        %v2137 = vshrl.u32 %v2136, 7
        %v2138 = vsub.s32 0, %v2137
        %v2139 = vrot.slane %v2134, %v2138
        %v2140 = vadd.bf16 %v2125, %v2139
        %v2141 = vadd.bf16 %v2126, %v2139
        %v2142 = vadd.bf16 %v2127, %v2139
        %v2143 = vadd.bf16 %v2128, %v2139
        %v2144 = vadd.bf16 %v2129, %v2139
        %v2145 = vadd.bf16 %v2130, %v2139
        %v2146 = vadd.bf16 %v2131, %v2139
        %v2147 = vadd.bf16 %v2132, %v2139
        %v2148 = vmax.bf16 %v2140, 0
        %v2149 = vmax.bf16 %v2141, 0
        %v2150 = vmax.bf16 %v2142, 0
        %v2151 = vmax.bf16 %v2143, 0
        %v2152 = vmax.bf16 %v2144, 0
        %v2153 = vmax.bf16 %v2145, 0
        %v2154 = vmax.bf16 %v2146, 0
        %v2155 = vmax.bf16 %v2147, 0
        %v2157 = vpack.i.b16 %v1697, %v1697
        %v2159 = vlaneseq
        %v2160 = vshrl.u32 %v2159, 7
        %v2161 = vsub.s32 0, %v2160
        %v2162 = vrot.slane %v2157, %v2161
        %v2163 = vmul.bf16 %v2148, %v2162
        %v2164 = vmul.bf16 %v2149, %v2162
        %v2165 = vmul.bf16 %v2150, %v2162
        %v2166 = vmul.bf16 %v2151, %v2162
        %v2167 = vmul.bf16 %v2152, %v2162
        %v2168 = vmul.bf16 %v2153, %v2162
        %v2169 = vmul.bf16 %v2154, %v2162
        %v2170 = vmul.bf16 %v2155, %v2162
        %v2172 = vpack.i.b16 %v1698, %v1698
        %v2174 = vlaneseq
        %v2175 = vshrl.u32 %v2174, 7
        %v2176 = vsub.s32 0, %v2175
        %v2177 = vrot.slane %v2172, %v2176
        %v2178 = vadd.bf16 %v2163, %v2177
        %v2179 = vadd.bf16 %v2164, %v2177
        %v2180 = vadd.bf16 %v2165, %v2177
        %v2181 = vadd.bf16 %v2166, %v2177
        %v2182 = vadd.bf16 %v2167, %v2177
        %v2183 = vadd.bf16 %v2168, %v2177
        %v2184 = vadd.bf16 %v2169, %v2177
        %v2185 = vadd.bf16 %v2170, %v2177
        %v2186 = vmax.bf16 %v2178, 0
        %v2187 = vmax.bf16 %v2179, 0
        %v2188 = vmax.bf16 %v2180, 0
        %v2189 = vmax.bf16 %v2181, 0
        %v2190 = vmax.bf16 %v2182, 0
        %v2191 = vmax.bf16 %v2183, 0
        %v2192 = vmax.bf16 %v2184, 0
        %v2193 = vmax.bf16 %v2185, 0
        %v2202 = vunpack.c.l.b16 %v2186
        %v2203 = vunpack.c.h.b16 %v2186
        %v2204 = vunpack.c.l.b16 %v2187
        %v2205 = vunpack.c.h.b16 %v2187
        %v2206 = vunpack.c.l.b16 %v2188
        %v2207 = vunpack.c.h.b16 %v2188
        %v2208 = vunpack.c.l.b16 %v2189
        %v2209 = vunpack.c.h.b16 %v2189
        %v2210 = vunpack.c.l.b16 %v2190
        %v2211 = vunpack.c.h.b16 %v2190
        %v2212 = vunpack.c.l.b16 %v2191
        %v2213 = vunpack.c.h.b16 %v2191
        %v2214 = vunpack.c.l.b16 %v2192
        %v2215 = vunpack.c.h.b16 %v2192
        %v2216 = vunpack.c.l.b16 %v2193
        %v2217 = vunpack.c.h.b16 %v2193
        %v2218 = vpack.c.b16 %v2202, %v2202
        %v2219 = vpack.c.b16 %v2203, %v2203
        %v2220 = vpack.c.b16 %v2204, %v2204
        %v2221 = vpack.c.b16 %v2205, %v2205
        %v2222 = vpack.c.b16 %v2206, %v2206
        %v2223 = vpack.c.b16 %v2207, %v2207
        %v2224 = vpack.c.b16 %v2208, %v2208
        %v2225 = vpack.c.b16 %v2209, %v2209
        %v2226 = vpack.c.b16 %v2210, %v2210
        %v2227 = vpack.c.b16 %v2211, %v2211
        %v2228 = vpack.c.b16 %v2212, %v2212
        %v2229 = vpack.c.b16 %v2213, %v2213
        %v2230 = vpack.c.b16 %v2214, %v2214
        %v2231 = vpack.c.b16 %v2215, %v2215
        %v2232 = vpack.c.b16 %v2216, %v2216
        %v2233 = vpack.c.b16 %v2217, %v2217
        %s2250 = scalar_lea.vmem %s930, 64
        %2251 = vst [vmem:[%s2250] sm:$0xf] %v2218
        %2252 = vst [vmem:[%s2250 + $0x4] sm:$0xf] %v2219
        %2253 = vst [vmem:[%s2250 + $0x8] sm:$0xf] %v2220
        %2254 = vst [vmem:[%s2250 + $0xc] sm:$0xf] %v2221
        %2255 = vst [vmem:[%s2250 + $0x10] sm:$0xf] %v2222
        %2256 = vst [vmem:[%s2250 + $0x14] sm:$0xf] %v2223
        %2257 = vst [vmem:[%s2250 + $0x18] sm:$0xf] %v2224
        %2258 = vst [vmem:[%s2250 + $0x1c] sm:$0xf] %v2225
        %2259 = vst [vmem:[%s2250 + $0x20] sm:$0xf] %v2226
        %2260 = vst [vmem:[%s2250 + $0x24] sm:$0xf] %v2227
        %2261 = vst [vmem:[%s2250 + $0x28] sm:$0xf] %v2228
        %2262 = vst [vmem:[%s2250 + $0x2c] sm:$0xf] %v2229
        %2263 = vst [vmem:[%s2250 + $0x30] sm:$0xf] %v2230
        %2264 = vst [vmem:[%s2250 + $0x34] sm:$0xf] %v2231
        %2265 = vst [vmem:[%s2250 + $0x38] sm:$0xf] %v2232
        %2266 = vst [vmem:[%s2250 + $0x3c] sm:$0xf] %v2233
        %s2267 = scalar_lea.vmem %s9, 64
        %v2268 = vld [vmem:[%s2267] sm:$0xf]
        %v2269 = vld [vmem:[%s2267 + $0x4] sm:$0xf]
        %v2270 = vld [vmem:[%s2267 + $0x8] sm:$0xf]
        %v2271 = vld [vmem:[%s2267 + $0xc] sm:$0xf]
        %v2272 = vld [vmem:[%s2267 + $0x10] sm:$0xf]
        %v2273 = vld [vmem:[%s2267 + $0x14] sm:$0xf]
        %v2274 = vld [vmem:[%s2267 + $0x18] sm:$0xf]
        %v2275 = vld [vmem:[%s2267 + $0x1c] sm:$0xf]
        %v2276 = vld [vmem:[%s2267 + $0x20] sm:$0xf]
        %v2277 = vld [vmem:[%s2267 + $0x24] sm:$0xf]
        %v2278 = vld [vmem:[%s2267 + $0x28] sm:$0xf]
        %v2279 = vld [vmem:[%s2267 + $0x2c] sm:$0xf]
        %v2280 = vld [vmem:[%s2267 + $0x30] sm:$0xf]
        %v2281 = vld [vmem:[%s2267 + $0x34] sm:$0xf]
        %v2282 = vld [vmem:[%s2267 + $0x38] sm:$0xf]
        %v2283 = vld [vmem:[%s2267 + $0x3c] sm:$0xf]
        %s2284 = scalar_lea.vmem %s10, 1
        %v2285 = vld [vmem:[%s2284] sm:$0x1]
        %s2286 = scalar_lea.vmem [#allocation2], 64
        %v2287 = vld [vmem:[%s2286] sm:$0xf]
        %v2288 = vld [vmem:[%s2286 + $0x4] sm:$0xf]
        %v2289 = vld [vmem:[%s2286 + $0x8] sm:$0xf]
        %v2290 = vld [vmem:[%s2286 + $0xc] sm:$0xf]
        %v2291 = vld [vmem:[%s2286 + $0x10] sm:$0xf]
        %v2292 = vld [vmem:[%s2286 + $0x14] sm:$0xf]
        %v2293 = vld [vmem:[%s2286 + $0x18] sm:$0xf]
        %v2294 = vld [vmem:[%s2286 + $0x1c] sm:$0xf]
        %v2295 = vld [vmem:[%s2286 + $0x20] sm:$0xf]
        %v2296 = vld [vmem:[%s2286 + $0x24] sm:$0xf]
        %v2297 = vld [vmem:[%s2286 + $0x28] sm:$0xf]
        %v2298 = vld [vmem:[%s2286 + $0x2c] sm:$0xf]
        %v2299 = vld [vmem:[%s2286 + $0x30] sm:$0xf]
        %v2300 = vld [vmem:[%s2286 + $0x34] sm:$0xf]
        %v2301 = vld [vmem:[%s2286 + $0x38] sm:$0xf]
        %v2302 = vld [vmem:[%s2286 + $0x3c] sm:$0xf]
        %s2303 = scalar_lea.vmem %s12, 1
        %v2304 = vld [vmem:[%s2303] sm:$0x1]
        %s2305 = scalar_lea.vmem %s13, 1
        %v2306 = vld [vmem:[%s2305] sm:$0x1]
        %s2307 = scalar_lea.vmem %s14, 1
        %v2308 = vld [vmem:[%s2307] sm:$0x1]
        %2309 = vmatprep.subr.bf16.mxu0 0
        %2310 = vmatpush1.bf16.msra.mxu0 %v2186
        %2311 = vmatprep.subr.bf16.mxu0 0
        %2312 = vmatpush1.bf16.msra.mxu0 %v2187
        %2313 = vmatprep.subr.bf16.mxu0 0
        %2314 = vmatpush1.bf16.msra.mxu0 %v2188
        %2315 = vmatprep.subr.bf16.mxu0 0
        %2316 = vmatpush1.bf16.msra.mxu0 %v2189
        %2317 = vmatprep.subr.bf16.mxu0 0
        %2318 = vmatpush1.bf16.msra.mxu0 %v2190
        %2319 = vmatprep.subr.bf16.mxu0 0
        %2320 = vmatpush1.bf16.msra.mxu0 %v2191
        %2321 = vmatprep.subr.bf16.mxu0 0
        %2322 = vmatpush1.bf16.msra.mxu0 %v2192
        %2323 = vmatprep.subr.bf16.mxu0 0
        %2324 = vmatpush1.bf16.msra.mxu0 %v2193
        %2325 = vmatprep.subr.bf16.mxu0 0
        %2326 = vmatpush1.bf16.msra.mxu0 0
        %2327 = vmatprep.subr.bf16.mxu0 0
        %2328 = vmatpush1.bf16.msra.mxu0 0
        %2329 = vmatprep.subr.bf16.mxu0 0
        %2330 = vmatpush1.bf16.msra.mxu0 0
        %2331 = vmatprep.subr.bf16.mxu0 0
        %2332 = vmatpush1.bf16.msra.mxu0 0
        %2333 = vmatprep.subr.bf16.mxu0 0
        %2334 = vmatpush1.bf16.msra.mxu0 0
        %2335 = vmatprep.subr.bf16.mxu0 0
        %2336 = vmatpush1.bf16.msra.mxu0 0
        %2337 = vmatprep.subr.bf16.mxu0 0
        %2338 = vmatpush1.bf16.msra.mxu0 0
        %2339 = vmatprep.subr.bf16.mxu0 0
        %2340 = vmatpush1.bf16.msra.mxu0 0
        %2341 = vmatprep.mubr.bf16.mxu0 0
        %2342 = vmatmul.mubr.bf16.gmra.mrb[0].mxu0 %v1032
        %v2343 = vpop.f32.mrb[0].mxu0
        %v2344 = vadd.f32 0.0, %v2343
        %v2345 = vpop.f32.mrb[0].mxu0
        %v2346 = vpop.f32.mrb[0].mxu0
        %v2347 = vadd.f32 0.0, %v2346
        %v2348 = vpop.f32.mrb[0].mxu0
        %2349 = vmatprep.mubr.bf16.mxu0 0
        %2350 = vmatmul.mubr.bf16.gmra.mrb[0].mxu0 %v1033
        %v2351 = vpop.f32.mrb[0].mxu0
        %v2352 = vadd.f32 0.0, %v2351
        %v2353 = vpop.f32.mrb[0].mxu0
        %v2354 = vpop.f32.mrb[0].mxu0
        %v2355 = vadd.f32 0.0, %v2354
        %v2356 = vpop.f32.mrb[0].mxu0
        %2357 = vmatprep.mubr.bf16.mxu0 0
        %2358 = vmatmul.mubr.bf16.gmra.mrb[0].mxu0 %v1034
        %v2359 = vpop.f32.mrb[0].mxu0
        %v2360 = vadd.f32 0.0, %v2359
        %v2361 = vpop.f32.mrb[0].mxu0
        %v2362 = vpop.f32.mrb[0].mxu0
        %v2363 = vadd.f32 0.0, %v2362
        %v2364 = vpop.f32.mrb[0].mxu0
        %2365 = vmatprep.mubr.bf16.mxu0 0
        %2366 = vmatmul.mubr.bf16.gmra.mrb[0].mxu0 %v1035
        %v2367 = vpop.f32.mrb[0].mxu0
        %v2368 = vadd.f32 0.0, %v2367
        %v2369 = vpop.f32.mrb[0].mxu0
        %v2370 = vpop.f32.mrb[0].mxu0
        %v2371 = vadd.f32 0.0, %v2370
        %v2372 = vpop.f32.mrb[0].mxu0
        %2373 = vmatprep.mubr.bf16.mxu0 0
        %2374 = vmatmul.mubr.bf16.gmra.mrb[0].mxu0 %v1036
        %v2375 = vpop.f32.mrb[0].mxu0
        %v2376 = vadd.f32 0.0, %v2375
        %v2377 = vpop.f32.mrb[0].mxu0
        %v2378 = vpop.f32.mrb[0].mxu0
        %v2379 = vadd.f32 0.0, %v2378
        %v2380 = vpop.f32.mrb[0].mxu0
        %2381 = vmatprep.mubr.bf16.mxu0 0
        %2382 = vmatmul.mubr.bf16.gmra.mrb[0].mxu0 %v1037
        %v2383 = vpop.f32.mrb[0].mxu0
        %v2384 = vadd.f32 0.0, %v2383
        %v2385 = vpop.f32.mrb[0].mxu0
        %v2386 = vpop.f32.mrb[0].mxu0
        %v2387 = vadd.f32 0.0, %v2386
        %v2388 = vpop.f32.mrb[0].mxu0
        %2389 = vmatprep.mubr.bf16.mxu0 0
        %2390 = vmatmul.mubr.bf16.gmra.mrb[0].mxu0 %v1038
        %v2391 = vpop.f32.mrb[0].mxu0
        %v2392 = vadd.f32 0.0, %v2391
        %v2393 = vpop.f32.mrb[0].mxu0
        %v2394 = vpop.f32.mrb[0].mxu0
        %v2395 = vadd.f32 0.0, %v2394
        %v2396 = vpop.f32.mrb[0].mxu0
        %2397 = vmatprep.mubr.bf16.mxu0 0
        %2398 = vmatmul.mubr.bf16.gmra.mrb[0].mxu0 %v1039
        %v2399 = vpop.f32.mrb[0].mxu0
        %v2400 = vadd.f32 0.0, %v2399
        %v2401 = vpop.f32.mrb[0].mxu0
        %v2402 = vpop.f32.mrb[0].mxu0
        %v2403 = vadd.f32 0.0, %v2402
        %v2404 = vpop.f32.mrb[0].mxu0
        %2405 = vdwg.mxu0
        %v2406 = vpack.c.bf16 %v2347, %v2344
        %v2407 = vpack.c.bf16 %v2355, %v2352
        %v2408 = vpack.c.bf16 %v2363, %v2360
        %v2409 = vpack.c.bf16 %v2371, %v2368
        %v2410 = vpack.c.bf16 %v2379, %v2376
        %v2411 = vpack.c.bf16 %v2387, %v2384
        %v2412 = vpack.c.bf16 %v2395, %v2392
        %v2413 = vpack.c.bf16 %v2403, %v2400
        %v2430 = vunpack.c.l.b16 %v2268
        %v2431 = vunpack.c.l.b16 %v2269
        %v2432 = vunpack.c.l.b16 %v2270
        %v2433 = vunpack.c.l.b16 %v2271
        %v2434 = vunpack.c.l.b16 %v2272
        %v2435 = vunpack.c.l.b16 %v2273
        %v2436 = vunpack.c.l.b16 %v2274
        %v2437 = vunpack.c.l.b16 %v2275
        %v2438 = vunpack.c.l.b16 %v2276
        %v2439 = vunpack.c.l.b16 %v2277
        %v2440 = vunpack.c.l.b16 %v2278
        %v2441 = vunpack.c.l.b16 %v2279
        %v2442 = vunpack.c.l.b16 %v2280
        %v2443 = vunpack.c.l.b16 %v2281
        %v2444 = vunpack.c.l.b16 %v2282
        %v2445 = vunpack.c.l.b16 %v2283
        %v2446 = vpack.c.b16 %v2431, %v2430
        %v2447 = vpack.c.b16 %v2433, %v2432
        %v2448 = vpack.c.b16 %v2435, %v2434
        %v2449 = vpack.c.b16 %v2437, %v2436
        %v2450 = vpack.c.b16 %v2439, %v2438
        %v2451 = vpack.c.b16 %v2441, %v2440
        %v2452 = vpack.c.b16 %v2443, %v2442
        %v2453 = vpack.c.b16 %v2445, %v2444
        %2462 = vmatprep.subr.bf16.mxu0 0
        %2463 = vmatpush1.bf16.msra.mxu0 %v2446
        %2464 = vmatprep.subr.bf16.mxu0 0
        %2465 = vmatpush1.bf16.msra.mxu0 %v2447
        %2466 = vmatprep.subr.bf16.mxu0 0
        %2467 = vmatpush1.bf16.msra.mxu0 %v2448
        %2468 = vmatprep.subr.bf16.mxu0 0
        %2469 = vmatpush1.bf16.msra.mxu0 %v2449
        %2470 = vmatprep.subr.bf16.mxu0 0
        %2471 = vmatpush1.bf16.msra.mxu0 %v2450
        %2472 = vmatprep.subr.bf16.mxu0 0
        %2473 = vmatpush1.bf16.msra.mxu0 %v2451
        %2474 = vmatprep.subr.bf16.mxu0 0
        %2475 = vmatpush1.bf16.msra.mxu0 %v2452
        %2476 = vmatprep.subr.bf16.mxu0 0
        %2477 = vmatpush1.bf16.msra.mxu0 %v2453
        %2478 = vmatprep.subr.bf16.mxu0 0
        %2479 = vmatpush1.bf16.msra.mxu0 0
        %2480 = vmatprep.subr.bf16.mxu0 0
        %2481 = vmatpush1.bf16.msra.mxu0 0
        %2482 = vmatprep.subr.bf16.mxu0 0
        %2483 = vmatpush1.bf16.msra.mxu0 0
        %2484 = vmatprep.subr.bf16.mxu0 0
        %2485 = vmatpush1.bf16.msra.mxu0 0
        %2486 = vmatprep.subr.bf16.mxu0 0
        %2487 = vmatpush1.bf16.msra.mxu0 0
        %2488 = vmatprep.subr.bf16.mxu0 0
        %2489 = vmatpush1.bf16.msra.mxu0 0
        %2490 = vmatprep.subr.bf16.mxu0 0
        %2491 = vmatpush1.bf16.msra.mxu0 0
        %2492 = vmatprep.subr.bf16.mxu0 0
        %2493 = vmatpush1.bf16.msra.mxu0 0
        %2494 = vmatprep.mubr.bf16.mxu0 0
        %2495 = vmatmul.mubr.bf16.gmra.mrb[0].mxu0 %v2406
        %v2496 = vpop.f32.mrb[0].mxu0
        %v2497 = vadd.f32 0.0, %v2496
        %v2498 = vpop.f32.mrb[0].mxu0
        %v2499 = vpop.f32.mrb[0].mxu0
        %v2500 = vadd.f32 0.0, %v2499
        %v2501 = vpop.f32.mrb[0].mxu0
        %2502 = vmatprep.mubr.bf16.mxu0 0
        %2503 = vmatmul.mubr.bf16.gmra.mrb[0].mxu0 %v2407
        %v2504 = vpop.f32.mrb[0].mxu0
        %v2505 = vadd.f32 0.0, %v2504
        %v2506 = vpop.f32.mrb[0].mxu0
        %v2507 = vpop.f32.mrb[0].mxu0
        %v2508 = vadd.f32 0.0, %v2507
        %v2509 = vpop.f32.mrb[0].mxu0
        %2510 = vmatprep.mubr.bf16.mxu0 0
        %2511 = vmatmul.mubr.bf16.gmra.mrb[0].mxu0 %v2408
        %v2512 = vpop.f32.mrb[0].mxu0
        %v2513 = vadd.f32 0.0, %v2512
        %v2514 = vpop.f32.mrb[0].mxu0
        %v2515 = vpop.f32.mrb[0].mxu0
        %v2516 = vadd.f32 0.0, %v2515
        %v2517 = vpop.f32.mrb[0].mxu0
        %2518 = vmatprep.mubr.bf16.mxu0 0
        %2519 = vmatmul.mubr.bf16.gmra.mrb[0].mxu0 %v2409
        %v2520 = vpop.f32.mrb[0].mxu0
        %v2521 = vadd.f32 0.0, %v2520
        %v2522 = vpop.f32.mrb[0].mxu0
        %v2523 = vpop.f32.mrb[0].mxu0
        %v2524 = vadd.f32 0.0, %v2523
        %v2525 = vpop.f32.mrb[0].mxu0
        %2526 = vmatprep.mubr.bf16.mxu0 0
        %2527 = vmatmul.mubr.bf16.gmra.mrb[0].mxu0 %v2410
        %v2528 = vpop.f32.mrb[0].mxu0
        %v2529 = vadd.f32 0.0, %v2528
        %v2530 = vpop.f32.mrb[0].mxu0
        %v2531 = vpop.f32.mrb[0].mxu0
        %v2532 = vadd.f32 0.0, %v2531
        %v2533 = vpop.f32.mrb[0].mxu0
        %2534 = vmatprep.mubr.bf16.mxu0 0
        %2535 = vmatmul.mubr.bf16.gmra.mrb[0].mxu0 %v2411
        %v2536 = vpop.f32.mrb[0].mxu0
        %v2537 = vadd.f32 0.0, %v2536
        %v2538 = vpop.f32.mrb[0].mxu0
        %v2539 = vpop.f32.mrb[0].mxu0
        %v2540 = vadd.f32 0.0, %v2539
        %v2541 = vpop.f32.mrb[0].mxu0
        %2542 = vmatprep.mubr.bf16.mxu0 0
        %2543 = vmatmul.mubr.bf16.gmra.mrb[0].mxu0 %v2412
        %v2544 = vpop.f32.mrb[0].mxu0
        %v2545 = vadd.f32 0.0, %v2544
        %v2546 = vpop.f32.mrb[0].mxu0
        %v2547 = vpop.f32.mrb[0].mxu0
        %v2548 = vadd.f32 0.0, %v2547
        %v2549 = vpop.f32.mrb[0].mxu0
        %2550 = vmatprep.mubr.bf16.mxu0 0
        %2551 = vmatmul.mubr.bf16.gmra.mrb[0].mxu0 %v2413
        %v2552 = vpop.f32.mrb[0].mxu0
        %v2553 = vadd.f32 0.0, %v2552
        %v2554 = vpop.f32.mrb[0].mxu0
        %v2555 = vpop.f32.mrb[0].mxu0
        %v2556 = vadd.f32 0.0, %v2555
        %v2557 = vpop.f32.mrb[0].mxu0
        %2558 = vdwg.mxu0
        %v2559 = vpack.c.bf16 %v2500, %v2497
        %v2560 = vpack.c.bf16 %v2508, %v2505
        %v2561 = vpack.c.bf16 %v2516, %v2513
        %v2562 = vpack.c.bf16 %v2524, %v2521
        %v2563 = vpack.c.bf16 %v2532, %v2529
        %v2564 = vpack.c.bf16 %v2540, %v2537
        %v2565 = vpack.c.bf16 %v2548, %v2545
        %v2566 = vpack.c.bf16 %v2556, %v2553
        %v2568 = vpack.i.b16 %v2285, %v2285
        %v2570 = vlaneseq
        %v2571 = vshrl.u32 %v2570, 7
        %v2572 = vsub.s32 0, %v2571
        %v2573 = vrot.slane %v2568, %v2572
        %v2574 = vadd.bf16 %v2559, %v2573
        %v2575 = vadd.bf16 %v2560, %v2573
        %v2576 = vadd.bf16 %v2561, %v2573
        %v2577 = vadd.bf16 %v2562, %v2573
        %v2578 = vadd.bf16 %v2563, %v2573
        %v2579 = vadd.bf16 %v2564, %v2573
        %v2580 = vadd.bf16 %v2565, %v2573
        %v2581 = vadd.bf16 %v2566, %v2573
        %v2582 = vmax.bf16 %v2574, 0
        %v2583 = vmax.bf16 %v2575, 0
        %v2584 = vmax.bf16 %v2576, 0
        %v2585 = vmax.bf16 %v2577, 0
        %v2586 = vmax.bf16 %v2578, 0
        %v2587 = vmax.bf16 %v2579, 0
        %v2588 = vmax.bf16 %v2580, 0
        %v2589 = vmax.bf16 %v2581, 0
        %v2606 = vunpack.c.l.b16 %v2287
        %v2607 = vunpack.c.l.b16 %v2288
        %v2608 = vunpack.c.l.b16 %v2289
        %v2609 = vunpack.c.l.b16 %v2290
        %v2610 = vunpack.c.l.b16 %v2291
        %v2611 = vunpack.c.l.b16 %v2292
        %v2612 = vunpack.c.l.b16 %v2293
        %v2613 = vunpack.c.l.b16 %v2294
        %v2614 = vunpack.c.l.b16 %v2295
        %v2615 = vunpack.c.l.b16 %v2296
        %v2616 = vunpack.c.l.b16 %v2297
        %v2617 = vunpack.c.l.b16 %v2298
        %v2618 = vunpack.c.l.b16 %v2299
        %v2619 = vunpack.c.l.b16 %v2300
        %v2620 = vunpack.c.l.b16 %v2301
        %v2621 = vunpack.c.l.b16 %v2302
        %v2622 = vpack.c.b16 %v2607, %v2606
        %v2623 = vpack.c.b16 %v2609, %v2608
        %v2624 = vpack.c.b16 %v2611, %v2610
        %v2625 = vpack.c.b16 %v2613, %v2612
        %v2626 = vpack.c.b16 %v2615, %v2614
        %v2627 = vpack.c.b16 %v2617, %v2616
        %v2628 = vpack.c.b16 %v2619, %v2618
        %v2629 = vpack.c.b16 %v2621, %v2620
        %2638 = vmatprep.subr.bf16.mxu0 0
        %2639 = vmatpush1.bf16.msra.mxu0 %v2622
        %2640 = vmatprep.subr.bf16.mxu0 0
        %2641 = vmatpush1.bf16.msra.mxu0 %v2623
        %2642 = vmatprep.subr.bf16.mxu0 0
        %2643 = vmatpush1.bf16.msra.mxu0 %v2624
        %2644 = vmatprep.subr.bf16.mxu0 0
        %2645 = vmatpush1.bf16.msra.mxu0 %v2625
        %2646 = vmatprep.subr.bf16.mxu0 0
        %2647 = vmatpush1.bf16.msra.mxu0 %v2626
        %2648 = vmatprep.subr.bf16.mxu0 0
        %2649 = vmatpush1.bf16.msra.mxu0 %v2627
        %2650 = vmatprep.subr.bf16.mxu0 0
        %2651 = vmatpush1.bf16.msra.mxu0 %v2628
        %2652 = vmatprep.subr.bf16.mxu0 0
        %2653 = vmatpush1.bf16.msra.mxu0 %v2629
        %2654 = vmatprep.subr.bf16.mxu0 0
        %2655 = vmatpush1.bf16.msra.mxu0 0
        %2656 = vmatprep.subr.bf16.mxu0 0
        %2657 = vmatpush1.bf16.msra.mxu0 0
        %2658 = vmatprep.subr.bf16.mxu0 0
        %2659 = vmatpush1.bf16.msra.mxu0 0
        %2660 = vmatprep.subr.bf16.mxu0 0
        %2661 = vmatpush1.bf16.msra.mxu0 0
        %2662 = vmatprep.subr.bf16.mxu0 0
        %2663 = vmatpush1.bf16.msra.mxu0 0
        %2664 = vmatprep.subr.bf16.mxu0 0
        %2665 = vmatpush1.bf16.msra.mxu0 0
        %2666 = vmatprep.subr.bf16.mxu0 0
        %2667 = vmatpush1.bf16.msra.mxu0 0
        %2668 = vmatprep.subr.bf16.mxu0 0
        %2669 = vmatpush1.bf16.msra.mxu0 0
        %2670 = vmatprep.mubr.bf16.mxu0 0
        %2671 = vmatmul.mubr.bf16.gmra.mrb[0].mxu0 %v2582
        %v2672 = vpop.f32.mrb[0].mxu0
        %v2673 = vadd.f32 0.0, %v2672
        %v2674 = vpop.f32.mrb[0].mxu0
        %v2675 = vpop.f32.mrb[0].mxu0
        %v2676 = vadd.f32 0.0, %v2675
        %v2677 = vpop.f32.mrb[0].mxu0
        %2678 = vmatprep.mubr.bf16.mxu0 0
        %2679 = vmatmul.mubr.bf16.gmra.mrb[0].mxu0 %v2583
        %v2680 = vpop.f32.mrb[0].mxu0
        %v2681 = vadd.f32 0.0, %v2680
        %v2682 = vpop.f32.mrb[0].mxu0
        %v2683 = vpop.f32.mrb[0].mxu0
        %v2684 = vadd.f32 0.0, %v2683
        %v2685 = vpop.f32.mrb[0].mxu0
        %2686 = vmatprep.mubr.bf16.mxu0 0
        %2687 = vmatmul.mubr.bf16.gmra.mrb[0].mxu0 %v2584
        %v2688 = vpop.f32.mrb[0].mxu0
        %v2689 = vadd.f32 0.0, %v2688
        %v2690 = vpop.f32.mrb[0].mxu0
        %v2691 = vpop.f32.mrb[0].mxu0
        %v2692 = vadd.f32 0.0, %v2691
        %v2693 = vpop.f32.mrb[0].mxu0
        %2694 = vmatprep.mubr.bf16.mxu0 0
        %2695 = vmatmul.mubr.bf16.gmra.mrb[0].mxu0 %v2585
        %v2696 = vpop.f32.mrb[0].mxu0
        %v2697 = vadd.f32 0.0, %v2696
        %v2698 = vpop.f32.mrb[0].mxu0
        %v2699 = vpop.f32.mrb[0].mxu0
        %v2700 = vadd.f32 0.0, %v2699
        %v2701 = vpop.f32.mrb[0].mxu0
        %2702 = vmatprep.mubr.bf16.mxu0 0
        %2703 = vmatmul.mubr.bf16.gmra.mrb[0].mxu0 %v2586
        %v2704 = vpop.f32.mrb[0].mxu0
        %v2705 = vadd.f32 0.0, %v2704
        %v2706 = vpop.f32.mrb[0].mxu0
        %v2707 = vpop.f32.mrb[0].mxu0
        %v2708 = vadd.f32 0.0, %v2707
        %v2709 = vpop.f32.mrb[0].mxu0
        %2710 = vmatprep.mubr.bf16.mxu0 0
        %2711 = vmatmul.mubr.bf16.gmra.mrb[0].mxu0 %v2587
        %v2712 = vpop.f32.mrb[0].mxu0
        %v2713 = vadd.f32 0.0, %v2712
        %v2714 = vpop.f32.mrb[0].mxu0
        %v2715 = vpop.f32.mrb[0].mxu0
        %v2716 = vadd.f32 0.0, %v2715
        %v2717 = vpop.f32.mrb[0].mxu0
        %2718 = vmatprep.mubr.bf16.mxu0 0
        %2719 = vmatmul.mubr.bf16.gmra.mrb[0].mxu0 %v2588
        %v2720 = vpop.f32.mrb[0].mxu0
        %v2721 = vadd.f32 0.0, %v2720
        %v2722 = vpop.f32.mrb[0].mxu0
        %v2723 = vpop.f32.mrb[0].mxu0
        %v2724 = vadd.f32 0.0, %v2723
        %v2725 = vpop.f32.mrb[0].mxu0
        %2726 = vmatprep.mubr.bf16.mxu0 0
        %2727 = vmatmul.mubr.bf16.gmra.mrb[0].mxu0 %v2589
        %v2728 = vpop.f32.mrb[0].mxu0
        %v2729 = vadd.f32 0.0, %v2728
        %v2730 = vpop.f32.mrb[0].mxu0
        %v2731 = vpop.f32.mrb[0].mxu0
        %v2732 = vadd.f32 0.0, %v2731
        %v2733 = vpop.f32.mrb[0].mxu0
        %2734 = vdwg.mxu0
        %v2735 = vpack.c.bf16 %v2676, %v2673
        %v2736 = vpack.c.bf16 %v2684, %v2681
        %v2737 = vpack.c.bf16 %v2692, %v2689
        %v2738 = vpack.c.bf16 %v2700, %v2697
        %v2739 = vpack.c.bf16 %v2708, %v2705
        %v2740 = vpack.c.bf16 %v2716, %v2713
        %v2741 = vpack.c.bf16 %v2724, %v2721
        %v2742 = vpack.c.bf16 %v2732, %v2729
        %v2744 = vpack.i.b16 %v2304, %v2304
        %v2746 = vlaneseq
        %v2747 = vshrl.u32 %v2746, 7
        %v2748 = vsub.s32 0, %v2747
        %v2749 = vrot.slane %v2744, %v2748
        %v2750 = vadd.bf16 %v2735, %v2749
        %v2751 = vadd.bf16 %v2736, %v2749
        %v2752 = vadd.bf16 %v2737, %v2749
        %v2753 = vadd.bf16 %v2738, %v2749
        %v2754 = vadd.bf16 %v2739, %v2749
        %v2755 = vadd.bf16 %v2740, %v2749
        %v2756 = vadd.bf16 %v2741, %v2749
        %v2757 = vadd.bf16 %v2742, %v2749
        %v2758 = vmax.bf16 %v2750, 0
        %v2759 = vmax.bf16 %v2751, 0
        %v2760 = vmax.bf16 %v2752, 0
        %v2761 = vmax.bf16 %v2753, 0
        %v2762 = vmax.bf16 %v2754, 0
        %v2763 = vmax.bf16 %v2755, 0
        %v2764 = vmax.bf16 %v2756, 0
        %v2765 = vmax.bf16 %v2757, 0
        %v2767 = vpack.i.b16 %v2306, %v2306
        %v2769 = vlaneseq
        %v2770 = vshrl.u32 %v2769, 7
        %v2771 = vsub.s32 0, %v2770
        %v2772 = vrot.slane %v2767, %v2771
        %v2773 = vmul.bf16 %v2758, %v2772
        %v2774 = vmul.bf16 %v2759, %v2772
        %v2775 = vmul.bf16 %v2760, %v2772
        %v2776 = vmul.bf16 %v2761, %v2772
        %v2777 = vmul.bf16 %v2762, %v2772
        %v2778 = vmul.bf16 %v2763, %v2772
        %v2779 = vmul.bf16 %v2764, %v2772
        %v2780 = vmul.bf16 %v2765, %v2772
        %v2782 = vpack.i.b16 %v2308, %v2308
        %v2784 = vlaneseq
        %v2785 = vshrl.u32 %v2784, 7
        %v2786 = vsub.s32 0, %v2785
        %v2787 = vrot.slane %v2782, %v2786
        %v2788 = vadd.bf16 %v2773, %v2787
        %v2789 = vadd.bf16 %v2774, %v2787
        %v2790 = vadd.bf16 %v2775, %v2787
        %v2791 = vadd.bf16 %v2776, %v2787
        %v2792 = vadd.bf16 %v2777, %v2787
        %v2793 = vadd.bf16 %v2778, %v2787
        %v2794 = vadd.bf16 %v2779, %v2787
        %v2795 = vadd.bf16 %v2780, %v2787
        %v2796 = vmax.bf16 %v2788, 0
        %v2797 = vmax.bf16 %v2789, 0
        %v2798 = vmax.bf16 %v2790, 0
        %v2799 = vmax.bf16 %v2791, 0
        %v2800 = vmax.bf16 %v2792, 0
        %v2801 = vmax.bf16 %v2793, 0
        %v2802 = vmax.bf16 %v2794, 0
        %v2803 = vmax.bf16 %v2795, 0
        %v2812 = vunpack.c.l.b16 %v2796
        %v2813 = vunpack.c.h.b16 %v2796
        %v2814 = vunpack.c.l.b16 %v2797
        %v2815 = vunpack.c.h.b16 %v2797
        %v2816 = vunpack.c.l.b16 %v2798
        %v2817 = vunpack.c.h.b16 %v2798
        %v2818 = vunpack.c.l.b16 %v2799
        %v2819 = vunpack.c.h.b16 %v2799
        %v2820 = vunpack.c.l.b16 %v2800
        %v2821 = vunpack.c.h.b16 %v2800
        %v2822 = vunpack.c.l.b16 %v2801
        %v2823 = vunpack.c.h.b16 %v2801
        %v2824 = vunpack.c.l.b16 %v2802
        %v2825 = vunpack.c.h.b16 %v2802
        %v2826 = vunpack.c.l.b16 %v2803
        %v2827 = vunpack.c.h.b16 %v2803
        %v2828 = vpack.c.b16 %v2812, %v2812
        %v2829 = vpack.c.b16 %v2813, %v2813
        %v2830 = vpack.c.b16 %v2814, %v2814
        %v2831 = vpack.c.b16 %v2815, %v2815
        %v2832 = vpack.c.b16 %v2816, %v2816
        %v2833 = vpack.c.b16 %v2817, %v2817
        %v2834 = vpack.c.b16 %v2818, %v2818
        %v2835 = vpack.c.b16 %v2819, %v2819
        %v2836 = vpack.c.b16 %v2820, %v2820
        %v2837 = vpack.c.b16 %v2821, %v2821
        %v2838 = vpack.c.b16 %v2822, %v2822
        %v2839 = vpack.c.b16 %v2823, %v2823
        %v2840 = vpack.c.b16 %v2824, %v2824
        %v2841 = vpack.c.b16 %v2825, %v2825
        %v2842 = vpack.c.b16 %v2826, %v2826
        %v2843 = vpack.c.b16 %v2827, %v2827
        %s2860 = scalar_lea.vmem %s930, 128
        %2861 = vst [vmem:[%s2860] sm:$0xf] %v2828
        %2862 = vst [vmem:[%s2860 + $0x4] sm:$0xf] %v2829
        %2863 = vst [vmem:[%s2860 + $0x8] sm:$0xf] %v2830
        %2864 = vst [vmem:[%s2860 + $0xc] sm:$0xf] %v2831
        %2865 = vst [vmem:[%s2860 + $0x10] sm:$0xf] %v2832
        %2866 = vst [vmem:[%s2860 + $0x14] sm:$0xf] %v2833
        %2867 = vst [vmem:[%s2860 + $0x18] sm:$0xf] %v2834
        %2868 = vst [vmem:[%s2860 + $0x1c] sm:$0xf] %v2835
        %2869 = vst [vmem:[%s2860 + $0x20] sm:$0xf] %v2836
        %2870 = vst [vmem:[%s2860 + $0x24] sm:$0xf] %v2837
        %2871 = vst [vmem:[%s2860 + $0x28] sm:$0xf] %v2838
        %2872 = vst [vmem:[%s2860 + $0x2c] sm:$0xf] %v2839
        %2873 = vst [vmem:[%s2860 + $0x30] sm:$0xf] %v2840
        %2874 = vst [vmem:[%s2860 + $0x34] sm:$0xf] %v2841
        %2875 = vst [vmem:[%s2860 + $0x38] sm:$0xf] %v2842
        %2876 = vst [vmem:[%s2860 + $0x3c] sm:$0xf] %v2843
        %v2877 = vld [vmem:[%s897] sm:$0x3]
        %v2878 = vunpack.c.l.bf16 %v2796
        %v2879 = vunpack.c.h.bf16 %v2796
        %v2880 = vunpack.c.l.bf16 %v2797
        %v2881 = vunpack.c.h.bf16 %v2797
        %v2882 = vunpack.c.l.bf16 %v2798
        %v2883 = vunpack.c.h.bf16 %v2798
        %v2884 = vunpack.c.l.bf16 %v2799
        %v2885 = vunpack.c.h.bf16 %v2799
        %v2886 = vunpack.c.l.bf16 %v2800
        %v2887 = vunpack.c.h.bf16 %v2800
        %v2888 = vunpack.c.l.bf16 %v2801
        %v2889 = vunpack.c.h.bf16 %v2801
        %v2890 = vunpack.c.l.bf16 %v2802
        %v2891 = vunpack.c.h.bf16 %v2802
        %v2892 = vunpack.c.l.bf16 %v2803
        %v2893 = vunpack.c.h.bf16 %v2803
        %2894 = vmatprep.subr.mxu0 0.0
        %2895 = vmatpush1.msra.mxu0 %v2878
        %2896 = vmatprep.subr.mxu0 0.0
        %2897 = vmatpush1.msra.mxu0 %v2879
        %2898 = vmatprep.subr.mxu0 0.0
        %2899 = vmatpush1.msra.mxu0 %v2880
        %2900 = vmatprep.subr.mxu0 0.0
        %2901 = vmatpush1.msra.mxu0 %v2881
        %2902 = vmatprep.subr.mxu0 0.0
        %2903 = vmatpush1.msra.mxu0 %v2882
        %2904 = vmatprep.subr.mxu0 0.0
        %2905 = vmatpush1.msra.mxu0 %v2883
        %2906 = vmatprep.subr.mxu0 0.0
        %2907 = vmatpush1.msra.mxu0 %v2884
        %2908 = vmatprep.subr.mxu0 0.0
        %2909 = vmatpush1.msra.mxu0 %v2885
        %2910 = vmatprep.subr.mxu0 0.0
        %2911 = vmatpush1.msra.mxu0 %v2886
        %2912 = vmatprep.subr.mxu0 0.0
        %2913 = vmatpush1.msra.mxu0 %v2887
        %2914 = vmatprep.subr.mxu0 0.0
        %2915 = vmatpush1.msra.mxu0 %v2888
        %2916 = vmatprep.subr.mxu0 0.0
        %2917 = vmatpush1.msra.mxu0 %v2889
        %2918 = vmatprep.subr.mxu0 0.0
        %2919 = vmatpush1.msra.mxu0 %v2890
        %2920 = vmatprep.subr.mxu0 0.0
        %2921 = vmatpush1.msra.mxu0 %v2891
        %2922 = vmatprep.subr.mxu0 0.0
        %2923 = vmatpush1.msra.mxu0 %v2892
        %2924 = vmatprep.subr.mxu0 0.0
        %2925 = vmatpush1.msra.mxu0 %v2893
        %2926 = vmatprep.subr.mxu0 0.0
        %2927 = vmatpush1.msra.mxu0 0.0
        %2928 = vmatprep.subr.mxu0 0.0
        %2929 = vmatpush1.msra.mxu0 0.0
        %2930 = vmatprep.subr.mxu0 0.0
        %2931 = vmatpush1.msra.mxu0 0.0
        %2932 = vmatprep.subr.mxu0 0.0
        %2933 = vmatpush1.msra.mxu0 0.0
        %2934 = vmatprep.subr.mxu0 0.0
        %2935 = vmatpush1.msra.mxu0 0.0
        %2936 = vmatprep.subr.mxu0 0.0
        %2937 = vmatpush1.msra.mxu0 0.0
        %2938 = vmatprep.subr.mxu0 0.0
        %2939 = vmatpush1.msra.mxu0 0.0
        %2940 = vmatprep.subr.mxu0 0.0
        %2941 = vmatpush1.msra.mxu0 0.0
        %2942 = vmatprep.subr.mxu0 0.0
        %2943 = vmatpush1.msra.mxu0 0.0
        %2944 = vmatprep.subr.mxu0 0.0
        %2945 = vmatpush1.msra.mxu0 0.0
        %2946 = vmatprep.subr.mxu0 0.0
        %2947 = vmatpush1.msra.mxu0 0.0
        %2948 = vmatprep.subr.mxu0 0.0
        %2949 = vmatpush1.msra.mxu0 0.0
        %2950 = vmatprep.subr.mxu0 0.0
        %2951 = vmatpush1.msra.mxu0 0.0
        %2952 = vmatprep.subr.mxu0 0.0
        %2953 = vmatpush1.msra.mxu0 0.0
        %2954 = vmatprep.subr.mxu0 0.0
        %2955 = vmatpush1.msra.mxu0 0.0
        %2956 = vmatprep.subr.mxu0 0.0
        %2957 = vmatpush1.msra.mxu0 0.0
        %2958 = vmatprep.mubr.f32.mxu0 0.0
        %2959 = vmatmul.mubr.f32.gmra.mrb[0].mxu0 %v2877
        %v2960 = vpop.f32.mrb[0].mxu0
        %v2961 = vadd.f32 0.0, %v2960
        %v2962 = vpop.f32.mrb[0].mxu0
        %2963 = vdwg.mxu0
        %2964 = vst [vmem:[%s876] sm:$0x3] %v2961
        %v2965 = vpack.c.bf16 %v2961, %v2961
        %v2966 = vld [vmem:[%s759] sm:$0xf]
        %v2967 = vld [vmem:[%s759 + $0x4] sm:$0xf]
        %v2968 = vld [vmem:[%s759 + $0x8] sm:$0xf]
        %v2969 = vld [vmem:[%s759 + $0xc] sm:$0xf]
        %v2970 = vld [vmem:[%s759 + $0x10] sm:$0xf]
        %v2971 = vld [vmem:[%s759 + $0x14] sm:$0xf]
        %v2972 = vld [vmem:[%s759 + $0x18] sm:$0xf]
        %v2973 = vld [vmem:[%s759 + $0x1c] sm:$0xf]
        %v2974 = vld [vmem:[%s759 + $0x20] sm:$0xf]
        %v2975 = vld [vmem:[%s759 + $0x24] sm:$0xf]
        %v2976 = vld [vmem:[%s759 + $0x28] sm:$0xf]
        %v2977 = vld [vmem:[%s759 + $0x2c] sm:$0xf]
        %v2978 = vld [vmem:[%s759 + $0x30] sm:$0xf]
        %v2979 = vld [vmem:[%s759 + $0x34] sm:$0xf]
        %v2980 = vld [vmem:[%s759 + $0x38] sm:$0xf]
        %v2981 = vld [vmem:[%s759 + $0x3c] sm:$0xf]
        %v2982 = vld [vmem:[%s922] sm:$0x1]
        %v2984 = vlaneseq
        %v2985 = vshrl.u32 %v2984, 7
        %v2986 = vsub.s32 0, %v2985
        %v2987 = vrot.slane %v2982, %v2986
        %v3005 = vunpack.c.l.b16 %v2966
        %v3006 = vunpack.c.l.b16 %v2967
        %v3007 = vunpack.c.l.b16 %v2968
        %v3008 = vunpack.c.l.b16 %v2969
        %v3009 = vunpack.c.l.b16 %v2970
        %v3010 = vunpack.c.l.b16 %v2971
        %v3011 = vunpack.c.l.b16 %v2972
        %v3012 = vunpack.c.l.b16 %v2973
        %v3013 = vunpack.c.l.b16 %v2974
        %v3014 = vunpack.c.l.b16 %v2975
        %v3015 = vunpack.c.l.b16 %v2976
        %v3016 = vunpack.c.l.b16 %v2977
        %v3017 = vunpack.c.l.b16 %v2978
        %v3018 = vunpack.c.l.b16 %v2979
        %v3019 = vunpack.c.l.b16 %v2980
        %v3020 = vunpack.c.l.b16 %v2981
        %v3021 = vpack.c.b16 %v3006, %v3005
        %v3022 = vpack.c.b16 %v3008, %v3007
        %v3023 = vpack.c.b16 %v3010, %v3009
        %v3024 = vpack.c.b16 %v3012, %v3011
        %v3025 = vpack.c.b16 %v3014, %v3013
        %v3026 = vpack.c.b16 %v3016, %v3015
        %v3027 = vpack.c.b16 %v3018, %v3017
        %v3028 = vpack.c.b16 %v3020, %v3019
        %3037 = vmatprep.subr.bf16.mxu0 0
        %3038 = vmatpush1.bf16.msra.mxu0 %v3021
        %3039 = vmatprep.subr.bf16.mxu0 0
        %3040 = vmatpush1.bf16.msra.mxu0 %v3022
        %3041 = vmatprep.subr.bf16.mxu0 0
        %3042 = vmatpush1.bf16.msra.mxu0 %v3023
        %3043 = vmatprep.subr.bf16.mxu0 0
        %3044 = vmatpush1.bf16.msra.mxu0 %v3024
        %3045 = vmatprep.subr.bf16.mxu0 0
        %3046 = vmatpush1.bf16.msra.mxu0 %v3025
        %3047 = vmatprep.subr.bf16.mxu0 0
        %3048 = vmatpush1.bf16.msra.mxu0 %v3026
        %3049 = vmatprep.subr.bf16.mxu0 0
        %3050 = vmatpush1.bf16.msra.mxu0 %v3027
        %3051 = vmatprep.subr.bf16.mxu0 0
        %3052 = vmatpush1.bf16.msra.mxu0 %v3028
        %3053 = vmatprep.subr.bf16.mxu0 0
        %3054 = vmatpush1.bf16.msra.mxu0 0
        %3055 = vmatprep.subr.bf16.mxu0 0
        %3056 = vmatpush1.bf16.msra.mxu0 0
        %3057 = vmatprep.subr.bf16.mxu0 0
        %3058 = vmatpush1.bf16.msra.mxu0 0
        %3059 = vmatprep.subr.bf16.mxu0 0
        %3060 = vmatpush1.bf16.msra.mxu0 0
        %3061 = vmatprep.subr.bf16.mxu0 0
        %3062 = vmatpush1.bf16.msra.mxu0 0
        %3063 = vmatprep.subr.bf16.mxu0 0
        %3064 = vmatpush1.bf16.msra.mxu0 0
        %3065 = vmatprep.subr.bf16.mxu0 0
        %3066 = vmatpush1.bf16.msra.mxu0 0
        %3067 = vmatprep.subr.bf16.mxu0 0
        %3068 = vmatpush1.bf16.msra.mxu0 0
        %3069 = vmatprep.mubr.bf16.mxu0 0
        %3070 = vmatmul.mubr.bf16.gmra.mrb[0].mxu0 %v2965
        %v3071 = vpop.f32.mrb[0].mxu0
        %v3072 = vadd.f32 %v2987, %v3071
        %v3073 = vpop.f32.mrb[0].mxu0
        %v3074 = vpop.f32.mrb[0].mxu0
        %v3075 = vpop.f32.mrb[0].mxu0
        %3076 = vdwg.mxu0
        %v3077 = vmax.f32 %v3072, 0.0
        %v3078 = vpack.c.bf16 %v3077, %v3077
        %v3079 = vld [vmem:[%s768] sm:$0xf]
        %v3080 = vld [vmem:[%s768 + $0x4] sm:$0xf]
        %v3081 = vld [vmem:[%s768 + $0x8] sm:$0xf]
        %v3082 = vld [vmem:[%s768 + $0xc] sm:$0xf]
        %v3083 = vld [vmem:[%s768 + $0x10] sm:$0xf]
        %v3084 = vld [vmem:[%s768 + $0x14] sm:$0xf]
        %v3085 = vld [vmem:[%s768 + $0x18] sm:$0xf]
        %v3086 = vld [vmem:[%s768 + $0x1c] sm:$0xf]
        %v3087 = vld [vmem:[%s768 + $0x20] sm:$0xf]
        %v3088 = vld [vmem:[%s768 + $0x24] sm:$0xf]
        %v3089 = vld [vmem:[%s768 + $0x28] sm:$0xf]
        %v3090 = vld [vmem:[%s768 + $0x2c] sm:$0xf]
        %v3091 = vld [vmem:[%s768 + $0x30] sm:$0xf]
        %v3092 = vld [vmem:[%s768 + $0x34] sm:$0xf]
        %v3093 = vld [vmem:[%s768 + $0x38] sm:$0xf]
        %v3094 = vld [vmem:[%s768 + $0x3c] sm:$0xf]
        %v3095 = vld [vmem:[%s925] sm:$0x1]
        %v3097 = vlaneseq
        %v3098 = vshrl.u32 %v3097, 7
        %v3099 = vsub.s32 0, %v3098
        %v3100 = vrot.slane %v3095, %v3099
        %v3118 = vunpack.c.l.b16 %v3079
        %v3119 = vunpack.c.l.b16 %v3080
        %v3120 = vunpack.c.l.b16 %v3081
        %v3121 = vunpack.c.l.b16 %v3082
        %v3122 = vunpack.c.l.b16 %v3083
        %v3123 = vunpack.c.l.b16 %v3084
        %v3124 = vunpack.c.l.b16 %v3085
        %v3125 = vunpack.c.l.b16 %v3086
        %v3126 = vunpack.c.l.b16 %v3087
        %v3127 = vunpack.c.l.b16 %v3088
        %v3128 = vunpack.c.l.b16 %v3089
        %v3129 = vunpack.c.l.b16 %v3090
        %v3130 = vunpack.c.l.b16 %v3091
        %v3131 = vunpack.c.l.b16 %v3092
        %v3132 = vunpack.c.l.b16 %v3093
        %v3133 = vunpack.c.l.b16 %v3094
        %v3134 = vpack.c.b16 %v3119, %v3118
        %v3135 = vpack.c.b16 %v3121, %v3120
        %v3136 = vpack.c.b16 %v3123, %v3122
        %v3137 = vpack.c.b16 %v3125, %v3124
        %v3138 = vpack.c.b16 %v3127, %v3126
        %v3139 = vpack.c.b16 %v3129, %v3128
        %v3140 = vpack.c.b16 %v3131, %v3130
        %v3141 = vpack.c.b16 %v3133, %v3132
        %3150 = vmatprep.subr.bf16.mxu0 0
        %3151 = vmatpush1.bf16.msra.mxu0 %v3134
        %3152 = vmatprep.subr.bf16.mxu0 0
        %3153 = vmatpush1.bf16.msra.mxu0 %v3135
        %3154 = vmatprep.subr.bf16.mxu0 0
        %3155 = vmatpush1.bf16.msra.mxu0 %v3136
        %3156 = vmatprep.subr.bf16.mxu0 0
        %3157 = vmatpush1.bf16.msra.mxu0 %v3137
        %3158 = vmatprep.subr.bf16.mxu0 0
        %3159 = vmatpush1.bf16.msra.mxu0 %v3138
        %3160 = vmatprep.subr.bf16.mxu0 0
        %3161 = vmatpush1.bf16.msra.mxu0 %v3139
        %3162 = vmatprep.subr.bf16.mxu0 0
        %3163 = vmatpush1.bf16.msra.mxu0 %v3140
        %3164 = vmatprep.subr.bf16.mxu0 0
        %3165 = vmatpush1.bf16.msra.mxu0 %v3141
        %3166 = vmatprep.subr.bf16.mxu0 0
        %3167 = vmatpush1.bf16.msra.mxu0 0
        %3168 = vmatprep.subr.bf16.mxu0 0
        %3169 = vmatpush1.bf16.msra.mxu0 0
        %3170 = vmatprep.subr.bf16.mxu0 0
        %3171 = vmatpush1.bf16.msra.mxu0 0
        %3172 = vmatprep.subr.bf16.mxu0 0
        %3173 = vmatpush1.bf16.msra.mxu0 0
        %3174 = vmatprep.subr.bf16.mxu0 0
        %3175 = vmatpush1.bf16.msra.mxu0 0
        %3176 = vmatprep.subr.bf16.mxu0 0
        %3177 = vmatpush1.bf16.msra.mxu0 0
        %3178 = vmatprep.subr.bf16.mxu0 0
        %3179 = vmatpush1.bf16.msra.mxu0 0
        %3180 = vmatprep.subr.bf16.mxu0 0
        %3181 = vmatpush1.bf16.msra.mxu0 0
        %3182 = vmatprep.mubr.bf16.mxu0 0
        %3183 = vmatmul.mubr.bf16.gmra.mrb[0].mxu0 %v3078
        %v3184 = vpop.f32.mrb[0].mxu0
        %v3185 = vadd.f32 %v3100, %v3184
        %v3186 = vpop.f32.mrb[0].mxu0
        %v3187 = vpop.f32.mrb[0].mxu0
        %v3188 = vpop.f32.mrb[0].mxu0
        %3189 = vdwg.mxu0
        %3190 = vst [vmem:[%s883] sm:$0x3] %v3185
        %p3191 = scmp.lt.s32.totalorder %s43, 1
        %s3192 = scalar_select %p3191, %s43, 1
        %s3193 = smul.addr %s3192, 48
        %s3194 = smul.addr %s3193, 4
        %s3195 = scalar_lea.vmem %s19, %s3194
        %s3196 = sand.u32 %s541, 1
        %s3197 = scalar_lea.sflag [#allocation4], %s3196
        %s3198 = sand.u32 %s541, 1
        %s3199 = smul.addr %s3198, 2
        %s3200 = scalar_lea.vmem [#allocation8], %s3199
        %s3201 = sand.u32 %s567, 1
        %s3202 = scalar_lea.sflag [#allocation10], %s3201
        %s3203 = sand.u32 %s567, 1
        %s3204 = smul.addr %s3203, 2
        %s3205 = scalar_lea.vmem [#allocation9], %s3204
        // Predicated region
        $region109: #{mimo_gin_forward.1} parent=95 // pred_check
          %p3206 = pneg %p525
        $region110: #{mimo_gin_forward.1} parent=95 // pred_check_branch
          %3208 = sbr.rel (%p3206) target = $region112
        $region111: #{mimo_gin_forward.1} parent=95 // pred_region
          _
        $region112: #{mimo_gin_forward.1} parent=95 // pred_fallthru
          _
        // Predicated region
        $region113: #{mimo_gin_forward.1} parent=95 // pred_check
          %p3209 = pneg %p551
        $region114: #{mimo_gin_forward.1} parent=95 // pred_check_branch
          %3211 = sbr.rel (%p3209) target = $region116
        $region115: #{mimo_gin_forward.1} parent=95 // pred_region
          %s3213 = ssub.s32 32, 32
          %3214 = vsyncadd %s3197, %s3213
          %s3215 = smul.addr %s43, 32
          %s3216 = scalar_lea.hbm %s20, %s3215
          %s3218 = sshll.u32 %s3200, 4
          %s3219 = int_to_ptr.vmem [resolvable:$true] %s3218
          %3221 = dma.vmem_to_hbm [thread:$0]  %s3219, 32, %s3216, %s3197
        $region116: #{mimo_gin_forward.1} parent=95 // pred_fallthru
          _
        // Predicated region
        $region117: #{mimo_gin_forward.1} parent=95 // pred_check
          %p3222 = pneg %p577
        $region118: #{mimo_gin_forward.1} parent=95 // pred_check_branch
          %3224 = sbr.rel (%p3222) target = $region120
        $region119: #{mimo_gin_forward.1} parent=95 // pred_region
          %s3226 = ssub.s32 32, 32
          %3227 = vsyncadd %s3202, %s3226
          %s3228 = smul.addr %s43, 32
          %s3229 = scalar_lea.hbm %s21, %s3228
          %s3231 = sshll.u32 %s3205, 4
          %s3232 = int_to_ptr.vmem [resolvable:$true] %s3231
          %3234 = dma.vmem_to_hbm [thread:$0]  %s3232, 32, %s3229, %s3202
        $region120: #{mimo_gin_forward.1} parent=95 // pred_fallthru
          _
      $region96: #{mimo_gin_forward.1} parent=5 // pred_fallthru
        _
      %p3235 = scmp.le.s32.totalorder 2, %s38
      // Predicated region
      $region121: #{mimo_gin_forward.1} parent=5 // pred_check
        %p3236 = pneg %p3235
      $region122: #{mimo_gin_forward.1} parent=5 // pred_check_branch
        %3238 = sbr.rel (%p3236) target = $region124
      $region123: #{mimo_gin_forward.1} parent=5 // pred_region
        %s3239 = ssub.s32 %s38, 2
        // Predicated region
        $region125: #{mimo_gin_forward.1} parent=123 // pred_check
          %p3240 = pneg %p531
        $region126: #{mimo_gin_forward.1} parent=123 // pred_check_branch
          %3242 = sbr.rel (%p3240) target = $region128
        $region127: #{mimo_gin_forward.1} parent=123 // pred_region
          %p3243 = scmp.lt.s32.totalorder %s44, 1
          %s3244 = scalar_select %p3243, %s44, 1
          %s3245 = smul.addr %s3244, 48
          %s3246 = smul.addr %s3245, 4
          %s3247 = scalar_lea.vmem %s19, %s3246
        $region128: #{mimo_gin_forward.1} parent=123 // pred_fallthru
          _
        // Predicated region
        $region129: #{mimo_gin_forward.1} parent=123 // pred_check
          %p3248 = pneg %p557
        $region130: #{mimo_gin_forward.1} parent=123 // pred_check_branch
          %3250 = sbr.rel (%p3248) target = $region132
        $region131: #{mimo_gin_forward.1} parent=123 // pred_region
          %s3251 = sand.u32 %s542, 1
          %s3252 = scalar_lea.sflag [#allocation4], %s3251
          %s3253 = sand.u32 %s542, 1
          %s3254 = smul.addr %s3253, 2
          %s3255 = scalar_lea.vmem [#allocation8], %s3254
          %3256 = dma.done %s3252, 32
        $region132: #{mimo_gin_forward.1} parent=123 // pred_fallthru
          _
        // Predicated region
        $region133: #{mimo_gin_forward.1} parent=123 // pred_check
          %p3257 = pneg %p583
        $region134: #{mimo_gin_forward.1} parent=123 // pred_check_branch
          %3259 = sbr.rel (%p3257) target = $region136
        $region135: #{mimo_gin_forward.1} parent=123 // pred_region
          %s3260 = sand.u32 %s568, 1
          %s3261 = scalar_lea.sflag [#allocation10], %s3260
          %s3262 = sand.u32 %s568, 1
          %s3263 = smul.addr %s3262, 2
          %s3264 = scalar_lea.vmem [#allocation9], %s3263
          %3265 = dma.done %s3261, 32
        $region136: #{mimo_gin_forward.1} parent=123 // pred_fallthru
          _
      $region124: #{mimo_gin_forward.1} parent=5 // pred_fallthru
        _
    $region6: #{mimo_gin_forward.1} parent=1 // loop_footer
      %s42 = sadd.s32 1, %s38
    $region7: #{mimo_gin_forward.1} parent=1 // loop_footer_branch
      %37 = sbr.rel target = $region3
    $region8: #{mimo_gin_forward.1} parent=1 // loop_exit
      _
    %3266 = vsyncpa [#allocation3], 1
    %s3267 = scalar_lea.sflag [#allocation3], 1
    %3268 = vsyncpa %s3267, 1
    %3269 = vsyncpa [#allocation6], 1
    %s3270 = scalar_lea.sflag [#allocation6], 1
    %3271 = vsyncpa %s3270, 1
    %3272 = vsyncpa [#allocation4], 1
    %s3273 = scalar_lea.sflag [#allocation4], 1
    %3274 = vsyncpa %s3273, 1
    %3275 = vsyncpa [#allocation10], 1
    %s3276 = scalar_lea.sflag [#allocation10], 1
    %3277 = vsyncpa %s3276, 1

</llo_original>
